<compile_context>
chip_gen: v7x
topology: tpu7x:2x2x1
jax: 0.10.0
libtpu: 0.0.40
codegen_flags: <defaults>
</compile_context>

<pallas_src>
import jax
import jax.numpy as jnp
import numpy as np
from jax.experimental import pallas as pl
from jax.experimental.pallas import tpu as pltpu


def _vmem_limit_bytes():
    """Generation-aware scoped-VMEM limit (64 MiB physical on v7x, 128 MiB on v5e/v6e)."""
    cap = 64 * 1024 * 1024
    try:
        cap = int(getattr(pltpu.get_tpu_info(), "vmem_capacity_bytes", cap))
    except Exception:
        pass
    return max(32 * 1024 * 1024, min((cap * 3) // 4, 96 * 1024 * 1024))


def _pick_lane_chunk(W):
    """Width of the interleave (spread) matmuls: largest divisor of W <= 128."""
    best = 1
    for c in range(1, min(W, 128) + 1):
        if W % c == 0:
            best = c
    if W > 128 and best < 32:   # awkward widths (e.g. primes): one chunk per row
        best = W
    return best


def _pick_rows_per_step(H, W, Cin, Cout, itemsize, wt, vmem_limit):
    """Rows of the input image processed per grid step (must divide H)."""
    fixed = (2 * 4 * Cout * Cin * itemsize        # packed weights (double-buffered)
             + 2 * 2 * wt * 2 * wt * itemsize     # spread matrices (double-buffered)
             + 2 * Cout * 4                        # bias
             + 2 * 1024 * 1024)                    # slack
    per_row = W * (2 * Cin * itemsize              # input rows, double-buffered
                   + 2 * 4 * Cout * itemsize       # output rows, double-buffered
                   + 4 * Cout * 4                  # f32 matmul accumulator
                   + 4 * Cout * itemsize)          # spread temporaries
    avail = max(vmem_limit - fixed, per_row)
    cap = min(avail // per_row,                    # fits VMEM
              max(1, 4096 // W),                   # bound lane tile (and unrolling)
              max(1, (64 * wt) // W),              # bound unrolled inner iterations
              H)
    cap = int(max(cap, 1))

    aligned, best = 0, 1
    for th in range(1, cap + 1):
        if H % th:
            continue
        best = th
        if (th * W) % 128 == 0:
            aligned = th
    if aligned:
        return aligned
    if (best * W) % 128 == 0 or best == H:
        return best
    # No 128-aligned row count: use the whole image (block dim == array dim is
    # always legal) if it roughly fits, otherwise accept the unaligned tile.
    if H * per_row <= 2 * avail:
        return H
    return best


def _upsample_impl(x, weight, bias):
    """ConvTranspose2d(kernel=2, stride=2) forward.

    x: (N, Cin, H, W); weight: (Cin, Cout, 2, 2); bias: (Cout,).
    Returns (N, Cout, 2H, 2W) in x.dtype.
    """
    N, Cin, H, W = x.shape
    wCin, Cout, KH, KW = weight.shape
    assert (wCin, KH, KW) == (Cin, 2, 2)
    S = H * W
    dt = x.dtype
    itemsize = jnp.dtype(dt).itemsize

    # NCHW -> (N, Cin, H*W): free adjacent-dim reshape, no cast, no transpose.
    x_flat = x.reshape(N, Cin, S)
    # (Cin, Cout, kh, kw) -> (kh, kw, co, ci) -> (4*Cout, Cin); row = (kh*2+kw)*Cout + co
    w_packed = jnp.transpose(weight, (2, 3, 1, 0)).reshape(4 * Cout, Cin).astype(dt)
    b_col = bias.astype(jnp.float32).reshape(Cout, 1)

    # Constant 0/1 spread matrices: E[kw, w, 2w + kw] = 1  (kw lane-interleave on MXU).
    wt = _pick_lane_chunk(W)
    e_np = np.zeros((2, wt, 2 * wt), dtype=np.float32)
    idx = np.arange(wt)
    e_np[0, idx, 2 * idx] = 1.0
    e_np[1, idx, 2 * idx + 1] = 1.0
    e_mat = jnp.asarray(e_np, dtype=dt)

    vmem_limit = _vmem_limit_bytes()
    TH = _pick_rows_per_step(H, W, Cin, Cout, itemsize, wt, vmem_limit)
    st = TH * W                 # input lanes per grid step (whole rows)
    nc = W // wt                # spread chunks per row
    grid = (N, S // st)

    def kernel(x_ref, w_ref, e_ref, b_ref, o_ref):
        # x_ref: (1, Cin, st)   flattened spatial tile (whole input rows)
        # w_ref: (4*Cout, Cin)  packed weights, rows (kh, kw, co)
        # e_ref: (2, wt, 2*wt)  kw-interleave spread matrices
        # b_ref: (Cout, 1)      bias (f32)
        # o_ref: (1, Cout, 4*st) lane order per input row: kh*2W + 2w + kw
        a = w_ref[...]
        e0 = e_ref[0]
        e1 = e_ref[1]
        bb = b_ref[...]
        # All four taps in one MXU pass, f32 accumulation.
        y = jnp.dot(a, x_ref[0], preferred_element_type=jnp.float32)   # (4*Cout, st)
        for t in range(TH):                       # input row within the tile
            for kh in range(2):                   # output row parity
                for ws in range(nc):              # chunk within the row
                    c0 = t * W + ws * wt
                    r0 = (2 * kh) * Cout
                    lo = y[r0:r0 + Cout, c0:c0 + wt].astype(e0.dtype)          # kw = 0
                    hi = y[r0 + Cout:r0 + 2 * Cout, c0:c0 + wt].astype(e0.dtype)  # kw = 1
                    part = (jnp.dot(lo, e0, preferred_element_type=jnp.float32)
                            + jnp.dot(hi, e1, preferred_element_type=jnp.float32)
                            + bb)
                    off = t * 4 * W + kh * 2 * W + 2 * ws * wt
                    o_ref[0, :, off:off + 2 * wt] = part.astype(o_ref.dtype)

    out = pl.pallas_call(
        kernel,
        out_shape=jax.ShapeDtypeStruct((N, Cout, 4 * S), dt),
        grid=grid,
        in_specs=[
            pl.BlockSpec((1, Cin, st), lambda n, h: (n, 0, h)),
            pl.BlockSpec((4 * Cout, Cin), lambda n, h: (0, 0)),
            pl.BlockSpec((2, wt, 2 * wt), lambda n, h: (0, 0, 0)),
            pl.BlockSpec((Cout, 1), lambda n, h: (0, 0)),
        ],
        out_specs=pl.BlockSpec((1, Cout, 4 * st), lambda n, h: (n, 0, h)),
        compiler_params=pltpu.CompilerParams(
            dimension_semantics=("parallel", "parallel"),
            vmem_limit_bytes=vmem_limit),
    )(x_flat, w_packed, e_mat, b_col)

    # (N, Cout, 4*H*W) -> (N, Cout, 2H, 2W): adjacent-dim split, free (no transpose).
    return out.reshape(N, Cout, 2 * H, 2 * W)


upsample = jax.jit(_upsample_impl)


def _reference(x, w, b):
    """Pure-JAX reference: explicit non-overlapping transposed-conv formula."""
    N, Cin, H, W = x.shape
    Cout = w.shape[1]
    y = jnp.einsum("nchw,cokl->nohkwl", x, w, precision=jax.lax.Precision.HIGHEST)
    return y.reshape(N, Cout, 2 * H, 2 * W) + b[None, :, None, None]


if __name__ == "__main__":
    key = jax.random.PRNGKey(0)
    kx, kw, kb = jax.random.split(key, 3)
    N, Cin, Cout, H, W = 2, 4, 2, 16, 16   # batch=2, in_channels=4, out_channels=2, 16x16

    x = jax.random.normal(kx, (N, Cin, H, W), dtype=jnp.float32)
    # nn.ConvTranspose2d parameter shapes: weight (Cin, Cout, 2, 2), bias (Cout,)
    w = jax.random.normal(kw, (Cin, Cout, 2, 2), dtype=jnp.float32) * 0.1
    b = jax.random.normal(kb, (Cout,), dtype=jnp.float32) * 0.1

    out = jax.block_until_ready(upsample(x, w, b))
    ref = jax.block_until_ready(_reference(x, w, b))

    assert out.shape == (N, Cout, 2 * H, 2 * W)
    np.testing.assert_allclose(np.asarray(out), np.asarray(ref), rtol=1e-4, atol=1e-4)
    print("KERNEL_OK")
</pallas_src>

<mosaic_0001>
module attributes {stable_mosaic.version = 11 : i64} {
  func.func @kernel(%arg0: i32, %arg1: i32, %arg2: memref<1x4x256xf32, #tpu.memory_space<vmem>>, %arg3: memref<8x4xf32, #tpu.memory_space<vmem>>, %arg4: memref<2x16x32xf32, #tpu.memory_space<vmem>>, %arg5: memref<2x1xf32, #tpu.memory_space<vmem>>, %arg6: memref<1x2x1024xf32, #tpu.memory_space<vmem>>) attributes {dimension_semantics = [#tpu.dimension_semantics<parallel>, #tpu.dimension_semantics<parallel>], iteration_bounds = array<i64: 2, 1>, scalar_prefetch = 0 : i64, scratch_operands = 0 : i64, tpu.core_type = #tpu.core_type<tc>, window_params = [{transform_indices = @transform_0, window_bounds = array<i64: 1, 4, 256>}, {pipeline_mode = #tpu.pipeline_mode<synchronous>, transform_indices = @transform_1, window_bounds = array<i64: 8, 4>}, {pipeline_mode = #tpu.pipeline_mode<synchronous>, transform_indices = @transform_2, window_bounds = array<i64: 2, 16, 32>}, {pipeline_mode = #tpu.pipeline_mode<synchronous>, transform_indices = @transform_3, window_bounds = array<i64: 2, 1>}, {transform_indices = @transform_4, window_bounds = array<i64: 1, 2, 1024>}]} {
    %c0 = arith.constant 0 : index
    %c0_0 = arith.constant 0 : index
    %0 = vector.load %arg3[%c0, %c0_0] : memref<8x4xf32, #tpu.memory_space<vmem>>, vector<8x4xf32>
    %c0_1 = arith.constant 0 : index
    %c0_2 = arith.constant 0 : index
    %c0_3 = arith.constant 0 : index
    %1 = vector.load %arg4[%c0_1, %c0_2, %c0_3] : memref<2x16x32xf32, #tpu.memory_space<vmem>>, vector<1x16x32xf32>
    %2 = vector.shape_cast %1 : vector<1x16x32xf32> to vector<16x32xf32>
    %c1 = arith.constant 1 : index
    %c0_4 = arith.constant 0 : index
    %c0_5 = arith.constant 0 : index
    %3 = vector.load %arg4[%c1, %c0_4, %c0_5] : memref<2x16x32xf32, #tpu.memory_space<vmem>>, vector<1x16x32xf32>
    %4 = vector.shape_cast %3 : vector<1x16x32xf32> to vector<16x32xf32>
    %c0_6 = arith.constant 0 : index
    %c0_7 = arith.constant 0 : index
    %5 = vector.load %arg5[%c0_6, %c0_7] : memref<2x1xf32, #tpu.memory_space<vmem>>, vector<2x1xf32>
    %c0_8 = arith.constant 0 : index
    %c0_9 = arith.constant 0 : index
    %c0_10 = arith.constant 0 : index
    %6 = vector.load %arg2[%c0_8, %c0_9, %c0_10] : memref<1x4x256xf32, #tpu.memory_space<vmem>>, vector<1x4x256xf32>
    %7 = vector.shape_cast %6 : vector<1x4x256xf32> to vector<4x256xf32>
    %cst = arith.constant dense<0.000000e+00> : vector<8x256xf32>
    %8 = tpu.matmul %0, %7, %cst {dimension_numbers = #tpu.dot_dimension_numbers<[1], [0], [0], [1], [0, 0, 1, 1], [], []>} : vector<8x4xf32>, vector<4x256xf32>, vector<8x256xf32> -> vector<8x256xf32>
    %9 = vector.extract_strided_slice %8 {offsets = [0, 0], sizes = [2, 16], strides = [1, 1]} : vector<8x256xf32> to vector<2x16xf32>
    %10 = vector.extract_strided_slice %8 {offsets = [2, 0], sizes = [2, 16], strides = [1, 1]} : vector<8x256xf32> to vector<2x16xf32>
    %cst_11 = arith.constant dense<0.000000e+00> : vector<2x32xf32>
    %11 = tpu.matmul %9, %2, %cst_11 {dimension_numbers = #tpu.dot_dimension_numbers<[1], [0], [0], [1], [0, 0, 1, 1], [], []>} : vector<2x16xf32>, vector<16x32xf32>, vector<2x32xf32> -> vector<2x32xf32>
    %cst_12 = arith.constant dense<0.000000e+00> : vector<2x32xf32>
    %12 = tpu.matmul %10, %4, %cst_12 {dimension_numbers = #tpu.dot_dimension_numbers<[1], [0], [0], [1], [0, 0, 1, 1], [], []>} : vector<2x16xf32>, vector<16x32xf32>, vector<2x32xf32> -> vector<2x32xf32>
    %13 = arith.addf %11, %12 : vector<2x32xf32>
    %14 = vector.broadcast %5 : vector<2x1xf32> to vector<2x32xf32>
    %15 = arith.addf %13, %14 : vector<2x32xf32>
    %c0_13 = arith.constant 0 : index
    %c0_14 = arith.constant 0 : index
    %c0_15 = arith.constant 0 : index
    %16 = vector.load %arg6[%c0_13, %c0_14, %c0_15] : memref<1x2x1024xf32, #tpu.memory_space<vmem>>, vector<1x2x32xf32>
    %17 = vector.shape_cast %16 : vector<1x2x32xf32> to vector<2x32xf32>
    %18 = vector.shape_cast %15 : vector<2x32xf32> to vector<1x2x32xf32>
    tpu.vector_store %arg6[%c0_13, %c0_14, %c0_15], %18 {strides = array<i32>} : memref<1x2x1024xf32, #tpu.memory_space<vmem>>, vector<1x2x32xf32>,
    %19 = vector.extract_strided_slice %8 {offsets = [4, 0], sizes = [2, 16], strides = [1, 1]} : vector<8x256xf32> to vector<2x16xf32>
    %20 = vector.extract_strided_slice %8 {offsets = [6, 0], sizes = [2, 16], strides = [1, 1]} : vector<8x256xf32> to vector<2x16xf32>
    %cst_16 = arith.constant dense<0.000000e+00> : vector<2x32xf32>
    %21 = tpu.matmul %19, %2, %cst_16 {dimension_numbers = #tpu.dot_dimension_numbers<[1], [0], [0], [1], [0, 0, 1, 1], [], []>} : vector<2x16xf32>, vector<16x32xf32>, vector<2x32xf32> -> vector<2x32xf32>
    %cst_17 = arith.constant dense<0.000000e+00> : vector<2x32xf32>
    %22 = tpu.matmul %20, %4, %cst_17 {dimension_numbers = #tpu.dot_dimension_numbers<[1], [0], [0], [1], [0, 0, 1, 1], [], []>} : vector<2x16xf32>, vector<16x32xf32>, vector<2x32xf32> -> vector<2x32xf32>
    %23 = arith.addf %21, %22 : vector<2x32xf32>
    %24 = vector.broadcast %5 : vector<2x1xf32> to vector<2x32xf32>
    %25 = arith.addf %23, %24 : vector<2x32xf32>
    %c0_18 = arith.constant 0 : index
    %c0_19 = arith.constant 0 : index
    %c32 = arith.constant 32 : index
    %26 = vector.load %arg6[%c0_18, %c0_19, %c32] : memref<1x2x1024xf32, #tpu.memory_space<vmem>>, vector<1x2x32xf32>
    %27 = vector.shape_cast %26 : vector<1x2x32xf32> to vector<2x32xf32>
    %28 = vector.shape_cast %25 : vector<2x32xf32> to vector<1x2x32xf32>
    tpu.vector_store %arg6[%c0_18, %c0_19, %c32], %28 {strides = array<i32>} : memref<1x2x1024xf32, #tpu.memory_space<vmem>>, vector<1x2x32xf32>,
    %29 = vector.extract_strided_slice %8 {offsets = [0, 16], sizes = [2, 16], strides = [1, 1]} : vector<8x256xf32> to vector<2x16xf32>
    %30 = vector.extract_strided_slice %8 {offsets = [2, 16], sizes = [2, 16], strides = [1, 1]} : vector<8x256xf32> to vector<2x16xf32>
    %cst_20 = arith.constant dense<0.000000e+00> : vector<2x32xf32>
    %31 = tpu.matmul %29, %2, %cst_20 {dimension_numbers = #tpu.dot_dimension_numbers<[1], [0], [0], [1], [0, 0, 1, 1], [], []>} : vector<2x16xf32>, vector<16x32xf32>, vector<2x32xf32> -> vector<2x32xf32>
    %cst_21 = arith.constant dense<0.000000e+00> : vector<2x32xf32>
    %32 = tpu.matmul %30, %4, %cst_21 {dimension_numbers = #tpu.dot_dimension_numbers<[1], [0], [0], [1], [0, 0, 1, 1], [], []>} : vector<2x16xf32>, vector<16x32xf32>, vector<2x32xf32> -> vector<2x32xf32>
    %33 = arith.addf %31, %32 : vector<2x32xf32>
    %34 = vector.broadcast %5 : vector<2x1xf32> to vector<2x32xf32>
    %35 = arith.addf %33, %34 : vector<2x32xf32>
    %c0_22 = arith.constant 0 : index
    %c0_23 = arith.constant 0 : index
    %c64 = arith.constant 64 : index
    %36 = vector.load %arg6[%c0_22, %c0_23, %c64] : memref<1x2x1024xf32, #tpu.memory_space<vmem>>, vector<1x2x32xf32>
    %37 = vector.shape_cast %36 : vector<1x2x32xf32> to vector<2x32xf32>
    %38 = vector.shape_cast %35 : vector<2x32xf32> to vector<1x2x32xf32>
    tpu.vector_store %arg6[%c0_22, %c0_23, %c64], %38 {strides = array<i32>} : memref<1x2x1024xf32, #tpu.memory_space<vmem>>, vector<1x2x32xf32>,
    %39 = vector.extract_strided_slice %8 {offsets = [4, 16], sizes = [2, 16], strides = [1, 1]} : vector<8x256xf32> to vector<2x16xf32>
    %40 = vector.extract_strided_slice %8 {offsets = [6, 16], sizes = [2, 16], strides = [1, 1]} : vector<8x256xf32> to vector<2x16xf32>
    %cst_24 = arith.constant dense<0.000000e+00> : vector<2x32xf32>
    %41 = tpu.matmul %39, %2, %cst_24 {dimension_numbers = #tpu.dot_dimension_numbers<[1], [0], [0], [1], [0, 0, 1, 1], [], []>} : vector<2x16xf32>, vector<16x32xf32>, vector<2x32xf32> -> vector<2x32xf32>
    %cst_25 = arith.constant dense<0.000000e+00> : vector<2x32xf32>
    %42 = tpu.matmul %40, %4, %cst_25 {dimension_numbers = #tpu.dot_dimension_numbers<[1], [0], [0], [1], [0, 0, 1, 1], [], []>} : vector<2x16xf32>, vector<16x32xf32>, vector<2x32xf32> -> vector<2x32xf32>
    %43 = arith.addf %41, %42 : vector<2x32xf32>
    %44 = vector.broadcast %5 : vector<2x1xf32> to vector<2x32xf32>
    %45 = arith.addf %43, %44 : vector<2x32xf32>
    %c0_26 = arith.constant 0 : index
    %c0_27 = arith.constant 0 : index
    %c96 = arith.constant 96 : index
    %46 = vector.load %arg6[%c0_26, %c0_27, %c96] : memref<1x2x1024xf32, #tpu.memory_space<vmem>>, vector<1x2x32xf32>
    %47 = vector.shape_cast %46 : vector<1x2x32xf32> to vector<2x32xf32>
    %48 = vector.shape_cast %45 : vector<2x32xf32> to vector<1x2x32xf32>
    tpu.vector_store %arg6[%c0_26, %c0_27, %c96], %48 {strides = array<i32>} : memref<1x2x1024xf32, #tpu.memory_space<vmem>>, vector<1x2x32xf32>,
    %49 = vector.extract_strided_slice %8 {offsets = [0, 32], sizes = [2, 16], strides = [1, 1]} : vector<8x256xf32> to vector<2x16xf32>
    %50 = vector.extract_strided_slice %8 {offsets = [2, 32], sizes = [2, 16], strides = [1, 1]} : vector<8x256xf32> to vector<2x16xf32>
    %cst_28 = arith.constant dense<0.000000e+00> : vector<2x32xf32>
    %51 = tpu.matmul %49, %2, %cst_28 {dimension_numbers = #tpu.dot_dimension_numbers<[1], [0], [0], [1], [0, 0, 1, 1], [], []>} : vector<2x16xf32>, vector<16x32xf32>, vector<2x32xf32> -> vector<2x32xf32>
    %cst_29 = arith.constant dense<0.000000e+00> : vector<2x32xf32>
    %52 = tpu.matmul %50, %4, %cst_29 {dimension_numbers = #tpu.dot_dimension_numbers<[1], [0], [0], [1], [0, 0, 1, 1], [], []>} : vector<2x16xf32>, vector<16x32xf32>, vector<2x32xf32> -> vector<2x32xf32>
    %53 = arith.addf %51, %52 : vector<2x32xf32>
    %54 = vector.broadcast %5 : vector<2x1xf32> to vector<2x32xf32>
    %55 = arith.addf %53, %54 : vector<2x32xf32>
    %c0_30 = arith.constant 0 : index
    %c0_31 = arith.constant 0 : index
    %c128 = arith.constant 128 : index
    %56 = vector.load %arg6[%c0_30, %c0_31, %c128] : memref<1x2x1024xf32, #tpu.memory_space<vmem>>, vector<1x2x32xf32>
    %57 = vector.shape_cast %56 : vector<1x2x32xf32> to vector<2x32xf32>
    %58 = vector.shape_cast %55 : vector<2x32xf32> to vector<1x2x32xf32>
    tpu.vector_store %arg6[%c0_30, %c0_31, %c128], %58 {strides = array<i32>} : memref<1x2x1024xf32, #tpu.memory_space<vmem>>, vector<1x2x32xf32>,
    %59 = vector.extract_strided_slice %8 {offsets = [4, 32], sizes = [2, 16], strides = [1, 1]} : vector<8x256xf32> to vector<2x16xf32>
    %60 = vector.extract_strided_slice %8 {offsets = [6, 32], sizes = [2, 16], strides = [1, 1]} : vector<8x256xf32> to vector<2x16xf32>
    %cst_32 = arith.constant dense<0.000000e+00> : vector<2x32xf32>
    %61 = tpu.matmul %59, %2, %cst_32 {dimension_numbers = #tpu.dot_dimension_numbers<[1], [0], [0], [1], [0, 0, 1, 1], [], []>} : vector<2x16xf32>, vector<16x32xf32>, vector<2x32xf32> -> vector<2x32xf32>
    %cst_33 = arith.constant dense<0.000000e+00> : vector<2x32xf32>
    %62 = tpu.matmul %60, %4, %cst_33 {dimension_numbers = #tpu.dot_dimension_numbers<[1], [0], [0], [1], [0, 0, 1, 1], [], []>} : vector<2x16xf32>, vector<16x32xf32>, vector<2x32xf32> -> vector<2x32xf32>
    %63 = arith.addf %61, %62 : vector<2x32xf32>
    %64 = vector.broadcast %5 : vector<2x1xf32> to vector<2x32xf32>
    %65 = arith.addf %63, %64 : vector<2x32xf32>
    %c0_34 = arith.constant 0 : index
    %c0_35 = arith.constant 0 : index
    %c160 = arith.constant 160 : index
    %66 = vector.load %arg6[%c0_34, %c0_35, %c160] : memref<1x2x1024xf32, #tpu.memory_space<vmem>>, vector<1x2x32xf32>
    %67 = vector.shape_cast %66 : vector<1x2x32xf32> to vector<2x32xf32>
    %68 = vector.shape_cast %65 : vector<2x32xf32> to vector<1x2x32xf32>
    tpu.vector_store %arg6[%c0_34, %c0_35, %c160], %68 {strides = array<i32>} : memref<1x2x1024xf32, #tpu.memory_space<vmem>>, vector<1x2x32xf32>,
    %69 = vector.extract_strided_slice %8 {offsets = [0, 48], sizes = [2, 16], strides = [1, 1]} : vector<8x256xf32> to vector<2x16xf32>
    %70 = vector.extract_strided_slice %8 {offsets = [2, 48], sizes = [2, 16], strides = [1, 1]} : vector<8x256xf32> to vector<2x16xf32>
    %cst_36 = arith.constant dense<0.000000e+00> : vector<2x32xf32>
    %71 = tpu.matmul %69, %2, %cst_36 {dimension_numbers = #tpu.dot_dimension_numbers<[1], [0], [0], [1], [0, 0, 1, 1], [], []>} : vector<2x16xf32>, vector<16x32xf32>, vector<2x32xf32> -> vector<2x32xf32>
    %cst_37 = arith.constant dense<0.000000e+00> : vector<2x32xf32>
    %72 = tpu.matmul %70, %4, %cst_37 {dimension_numbers = #tpu.dot_dimension_numbers<[1], [0], [0], [1], [0, 0, 1, 1], [], []>} : vector<2x16xf32>, vector<16x32xf32>, vector<2x32xf32> -> vector<2x32xf32>
    %73 = arith.addf %71, %72 : vector<2x32xf32>
    %74 = vector.broadcast %5 : vector<2x1xf32> to vector<2x32xf32>
    %75 = arith.addf %73, %74 : vector<2x32xf32>
    %c0_38 = arith.constant 0 : index
    %c0_39 = arith.constant 0 : index
    %c192 = arith.constant 192 : index
    %76 = vector.load %arg6[%c0_38, %c0_39, %c192] : memref<1x2x1024xf32, #tpu.memory_space<vmem>>, vector<1x2x32xf32>
    %77 = vector.shape_cast %76 : vector<1x2x32xf32> to vector<2x32xf32>
    %78 = vector.shape_cast %75 : vector<2x32xf32> to vector<1x2x32xf32>
    tpu.vector_store %arg6[%c0_38, %c0_39, %c192], %78 {strides = array<i32>} : memref<1x2x1024xf32, #tpu.memory_space<vmem>>, vector<1x2x32xf32>,
    %79 = vector.extract_strided_slice %8 {offsets = [4, 48], sizes = [2, 16], strides = [1, 1]} : vector<8x256xf32> to vector<2x16xf32>
    %80 = vector.extract_strided_slice %8 {offsets = [6, 48], sizes = [2, 16], strides = [1, 1]} : vector<8x256xf32> to vector<2x16xf32>
    %cst_40 = arith.constant dense<0.000000e+00> : vector<2x32xf32>
    %81 = tpu.matmul %79, %2, %cst_40 {dimension_numbers = #tpu.dot_dimension_numbers<[1], [0], [0], [1], [0, 0, 1, 1], [], []>} : vector<2x16xf32>, vector<16x32xf32>, vector<2x32xf32> -> vector<2x32xf32>
    %cst_41 = arith.constant dense<0.000000e+00> : vector<2x32xf32>
    %82 = tpu.matmul %80, %4, %cst_41 {dimension_numbers = #tpu.dot_dimension_numbers<[1], [0], [0], [1], [0, 0, 1, 1], [], []>} : vector<2x16xf32>, vector<16x32xf32>, vector<2x32xf32> -> vector<2x32xf32>
    %83 = arith.addf %81, %82 : vector<2x32xf32>
    %84 = vector.broadcast %5 : vector<2x1xf32> to vector<2x32xf32>
    %85 = arith.addf %83, %84 : vector<2x32xf32>
    %c0_42 = arith.constant 0 : index
    %c0_43 = arith.constant 0 : index
    %c224 = arith.constant 224 : index
    %86 = vector.load %arg6[%c0_42, %c0_43, %c224] : memref<1x2x1024xf32, #tpu.memory_space<vmem>>, vector<1x2x32xf32>
    %87 = vector.shape_cast %86 : vector<1x2x32xf32> to vector<2x32xf32>
    %88 = vector.shape_cast %85 : vector<2x32xf32> to vector<1x2x32xf32>
    tpu.vector_store %arg6[%c0_42, %c0_43, %c224], %88 {strides = array<i32>} : memref<1x2x1024xf32, #tpu.memory_space<vmem>>, vector<1x2x32xf32>,
    %89 = vector.extract_strided_slice %8 {offsets = [0, 64], sizes = [2, 16], strides = [1, 1]} : vector<8x256xf32> to vector<2x16xf32>
    %90 = vector.extract_strided_slice %8 {offsets = [2, 64], sizes = [2, 16], strides = [1, 1]} : vector<8x256xf32> to vector<2x16xf32>
    %cst_44 = arith.constant dense<0.000000e+00> : vector<2x32xf32>
    %91 = tpu.matmul %89, %2, %cst_44 {dimension_numbers = #tpu.dot_dimension_numbers<[1], [0], [0], [1], [0, 0, 1, 1], [], []>} : vector<2x16xf32>, vector<16x32xf32>, vector<2x32xf32> -> vector<2x32xf32>
    %cst_45 = arith.constant dense<0.000000e+00> : vector<2x32xf32>
    %92 = tpu.matmul %90, %4, %cst_45 {dimension_numbers = #tpu.dot_dimension_numbers<[1], [0], [0], [1], [0, 0, 1, 1], [], []>} : vector<2x16xf32>, vector<16x32xf32>, vector<2x32xf32> -> vector<2x32xf32>
    %93 = arith.addf %91, %92 : vector<2x32xf32>
    %94 = vector.broadcast %5 : vector<2x1xf32> to vector<2x32xf32>
    %95 = arith.addf %93, %94 : vector<2x32xf32>
    %c0_46 = arith.constant 0 : index
    %c0_47 = arith.constant 0 : index
    %c256 = arith.constant 256 : index
    %96 = vector.load %arg6[%c0_46, %c0_47, %c256] : memref<1x2x1024xf32, #tpu.memory_space<vmem>>, vector<1x2x32xf32>
    %97 = vector.shape_cast %96 : vector<1x2x32xf32> to vector<2x32xf32>
    %98 = vector.shape_cast %95 : vector<2x32xf32> to vector<1x2x32xf32>
    tpu.vector_store %arg6[%c0_46, %c0_47, %c256], %98 {strides = array<i32>} : memref<1x2x1024xf32, #tpu.memory_space<vmem>>, vector<1x2x32xf32>,
    %99 = vector.extract_strided_slice %8 {offsets = [4, 64], sizes = [2, 16], strides = [1, 1]} : vector<8x256xf32> to vector<2x16xf32>
    %100 = vector.extract_strided_slice %8 {offsets = [6, 64], sizes = [2, 16], strides = [1, 1]} : vector<8x256xf32> to vector<2x16xf32>
    %cst_48 = arith.constant dense<0.000000e+00> : vector<2x32xf32>
    %101 = tpu.matmul %99, %2, %cst_48 {dimension_numbers = #tpu.dot_dimension_numbers<[1], [0], [0], [1], [0, 0, 1, 1], [], []>} : vector<2x16xf32>, vector<16x32xf32>, vector<2x32xf32> -> vector<2x32xf32>
    %cst_49 = arith.constant dense<0.000000e+00> : vector<2x32xf32>
    %102 = tpu.matmul %100, %4, %cst_49 {dimension_numbers = #tpu.dot_dimension_numbers<[1], [0], [0], [1], [0, 0, 1, 1], [], []>} : vector<2x16xf32>, vector<16x32xf32>, vector<2x32xf32> -> vector<2x32xf32>
    %103 = arith.addf %101, %102 : vector<2x32xf32>
    %104 = vector.broadcast %5 : vector<2x1xf32> to vector<2x32xf32>
    %105 = arith.addf %103, %104 : vector<2x32xf32>
    %c0_50 = arith.constant 0 : index
    %c0_51 = arith.constant 0 : index
    %c288 = arith.constant 288 : index
    %106 = vector.load %arg6[%c0_50, %c0_51, %c288] : memref<1x2x1024xf32, #tpu.memory_space<vmem>>, vector<1x2x32xf32>
    %107 = vector.shape_cast %106 : vector<1x2x32xf32> to vector<2x32xf32>
    %108 = vector.shape_cast %105 : vector<2x32xf32> to vector<1x2x32xf32>
    tpu.vector_store %arg6[%c0_50, %c0_51, %c288], %108 {strides = array<i32>} : memref<1x2x1024xf32, #tpu.memory_space<vmem>>, vector<1x2x32xf32>,
    %109 = vector.extract_strided_slice %8 {offsets = [0, 80], sizes = [2, 16], strides = [1, 1]} : vector<8x256xf32> to vector<2x16xf32>
    %110 = vector.extract_strided_slice %8 {offsets = [2, 80], sizes = [2, 16], strides = [1, 1]} : vector<8x256xf32> to vector<2x16xf32>
    %cst_52 = arith.constant dense<0.000000e+00> : vector<2x32xf32>
    %111 = tpu.matmul %109, %2, %cst_52 {dimension_numbers = #tpu.dot_dimension_numbers<[1], [0], [0], [1], [0, 0, 1, 1], [], []>} : vector<2x16xf32>, vector<16x32xf32>, vector<2x32xf32> -> vector<2x32xf32>
    %cst_53 = arith.constant dense<0.000000e+00> : vector<2x32xf32>
    %112 = tpu.matmul %110, %4, %cst_53 {dimension_numbers = #tpu.dot_dimension_numbers<[1], [0], [0], [1], [0, 0, 1, 1], [], []>} : vector<2x16xf32>, vector<16x32xf32>, vector<2x32xf32> -> vector<2x32xf32>
    %113 = arith.addf %111, %112 : vector<2x32xf32>
    %114 = vector.broadcast %5 : vector<2x1xf32> to vector<2x32xf32>
    %115 = arith.addf %113, %114 : vector<2x32xf32>
    %c0_54 = arith.constant 0 : index
    %c0_55 = arith.constant 0 : index
    %c320 = arith.constant 320 : index
    %116 = vector.load %arg6[%c0_54, %c0_55, %c320] : memref<1x2x1024xf32, #tpu.memory_space<vmem>>, vector<1x2x32xf32>
    %117 = vector.shape_cast %116 : vector<1x2x32xf32> to vector<2x32xf32>
    %118 = vector.shape_cast %115 : vector<2x32xf32> to vector<1x2x32xf32>
    tpu.vector_store %arg6[%c0_54, %c0_55, %c320], %118 {strides = array<i32>} : memref<1x2x1024xf32, #tpu.memory_space<vmem>>, vector<1x2x32xf32>,
    %119 = vector.extract_strided_slice %8 {offsets = [4, 80], sizes = [2, 16], strides = [1, 1]} : vector<8x256xf32> to vector<2x16xf32>
    %120 = vector.extract_strided_slice %8 {offsets = [6, 80], sizes = [2, 16], strides = [1, 1]} : vector<8x256xf32> to vector<2x16xf32>
    %cst_56 = arith.constant dense<0.000000e+00> : vector<2x32xf32>
    %121 = tpu.matmul %119, %2, %cst_56 {dimension_numbers = #tpu.dot_dimension_numbers<[1], [0], [0], [1], [0, 0, 1, 1], [], []>} : vector<2x16xf32>, vector<16x32xf32>, vector<2x32xf32> -> vector<2x32xf32>
    %cst_57 = arith.constant dense<0.000000e+00> : vector<2x32xf32>
    %122 = tpu.matmul %120, %4, %cst_57 {dimension_numbers = #tpu.dot_dimension_numbers<[1], [0], [0], [1], [0, 0, 1, 1], [], []>} : vector<2x16xf32>, vector<16x32xf32>, vector<2x32xf32> -> vector<2x32xf32>
    %123 = arith.addf %121, %122 : vector<2x32xf32>
    %124 = vector.broadcast %5 : vector<2x1xf32> to vector<2x32xf32>
    %125 = arith.addf %123, %124 : vector<2x32xf32>
    %c0_58 = arith.constant 0 : index
    %c0_59 = arith.constant 0 : index
    %c352 = arith.constant 352 : index
    %126 = vector.load %arg6[%c0_58, %c0_59, %c352] : memref<1x2x1024xf32, #tpu.memory_space<vmem>>, vector<1x2x32xf32>
    %127 = vector.shape_cast %126 : vector<1x2x32xf32> to vector<2x32xf32>
    %128 = vector.shape_cast %125 : vector<2x32xf32> to vector<1x2x32xf32>
    tpu.vector_store %arg6[%c0_58, %c0_59, %c352], %128 {strides = array<i32>} : memref<1x2x1024xf32, #tpu.memory_space<vmem>>, vector<1x2x32xf32>,
    %129 = vector.extract_strided_slice %8 {offsets = [0, 96], sizes = [2, 16], strides = [1, 1]} : vector<8x256xf32> to vector<2x16xf32>
    %130 = vector.extract_strided_slice %8 {offsets = [2, 96], sizes = [2, 16], strides = [1, 1]} : vector<8x256xf32> to vector<2x16xf32>
    %cst_60 = arith.constant dense<0.000000e+00> : vector<2x32xf32>
    %131 = tpu.matmul %129, %2, %cst_60 {dimension_numbers = #tpu.dot_dimension_numbers<[1], [0], [0], [1], [0, 0, 1, 1], [], []>} : vector<2x16xf32>, vector<16x32xf32>, vector<2x32xf32> -> vector<2x32xf32>
    %cst_61 = arith.constant dense<0.000000e+00> : vector<2x32xf32>
    %132 = tpu.matmul %130, %4, %cst_61 {dimension_numbers = #tpu.dot_dimension_numbers<[1], [0], [0], [1], [0, 0, 1, 1], [], []>} : vector<2x16xf32>, vector<16x32xf32>, vector<2x32xf32> -> vector<2x32xf32>
    %133 = arith.addf %131, %132 : vector<2x32xf32>
    %134 = vector.broadcast %5 : vector<2x1xf32> to vector<2x32xf32>
    %135 = arith.addf %133, %134 : vector<2x32xf32>
    %c0_62 = arith.constant 0 : index
    %c0_63 = arith.constant 0 : index
    %c384 = arith.constant 384 : index
    %136 = vector.load %arg6[%c0_62, %c0_63, %c384] : memref<1x2x1024xf32, #tpu.memory_space<vmem>>, vector<1x2x32xf32>
    %137 = vector.shape_cast %136 : vector<1x2x32xf32> to vector<2x32xf32>
    %138 = vector.shape_cast %135 : vector<2x32xf32> to vector<1x2x32xf32>
    tpu.vector_store %arg6[%c0_62, %c0_63, %c384], %138 {strides = array<i32>} : memref<1x2x1024xf32, #tpu.memory_space<vmem>>, vector<1x2x32xf32>,
    %139 = vector.extract_strided_slice %8 {offsets = [4, 96], sizes = [2, 16], strides = [1, 1]} : vector<8x256xf32> to vector<2x16xf32>
    %140 = vector.extract_strided_slice %8 {offsets = [6, 96], sizes = [2, 16], strides = [1, 1]} : vector<8x256xf32> to vector<2x16xf32>
    %cst_64 = arith.constant dense<0.000000e+00> : vector<2x32xf32>
    %141 = tpu.matmul %139, %2, %cst_64 {dimension_numbers = #tpu.dot_dimension_numbers<[1], [0], [0], [1], [0, 0, 1, 1], [], []>} : vector<2x16xf32>, vector<16x32xf32>, vector<2x32xf32> -> vector<2x32xf32>
    %cst_65 = arith.constant dense<0.000000e+00> : vector<2x32xf32>
    %142 = tpu.matmul %140, %4, %cst_65 {dimension_numbers = #tpu.dot_dimension_numbers<[1], [0], [0], [1], [0, 0, 1, 1], [], []>} : vector<2x16xf32>, vector<16x32xf32>, vector<2x32xf32> -> vector<2x32xf32>
    %143 = arith.addf %141, %142 : vector<2x32xf32>
    %144 = vector.broadcast %5 : vector<2x1xf32> to vector<2x32xf32>
    %145 = arith.addf %143, %144 : vector<2x32xf32>
    %c0_66 = arith.constant 0 : index
    %c0_67 = arith.constant 0 : index
    %c416 = arith.constant 416 : index
    %146 = vector.load %arg6[%c0_66, %c0_67, %c416] : memref<1x2x1024xf32, #tpu.memory_space<vmem>>, vector<1x2x32xf32>
    %147 = vector.shape_cast %146 : vector<1x2x32xf32> to vector<2x32xf32>
    %148 = vector.shape_cast %145 : vector<2x32xf32> to vector<1x2x32xf32>
    tpu.vector_store %arg6[%c0_66, %c0_67, %c416], %148 {strides = array<i32>} : memref<1x2x1024xf32, #tpu.memory_space<vmem>>, vector<1x2x32xf32>,
    %149 = vector.extract_strided_slice %8 {offsets = [0, 112], sizes = [2, 16], strides = [1, 1]} : vector<8x256xf32> to vector<2x16xf32>
    %150 = vector.extract_strided_slice %8 {offsets = [2, 112], sizes = [2, 16], strides = [1, 1]} : vector<8x256xf32> to vector<2x16xf32>
    %cst_68 = arith.constant dense<0.000000e+00> : vector<2x32xf32>
    %151 = tpu.matmul %149, %2, %cst_68 {dimension_numbers = #tpu.dot_dimension_numbers<[1], [0], [0], [1], [0, 0, 1, 1], [], []>} : vector<2x16xf32>, vector<16x32xf32>, vector<2x32xf32> -> vector<2x32xf32>
    %cst_69 = arith.constant dense<0.000000e+00> : vector<2x32xf32>
    %152 = tpu.matmul %150, %4, %cst_69 {dimension_numbers = #tpu.dot_dimension_numbers<[1], [0], [0], [1], [0, 0, 1, 1], [], []>} : vector<2x16xf32>, vector<16x32xf32>, vector<2x32xf32> -> vector<2x32xf32>
    %153 = arith.addf %151, %152 : vector<2x32xf32>
    %154 = vector.broadcast %5 : vector<2x1xf32> to vector<2x32xf32>
    %155 = arith.addf %153, %154 : vector<2x32xf32>
    %c0_70 = arith.constant 0 : index
    %c0_71 = arith.constant 0 : index
    %c448 = arith.constant 448 : index
    %156 = vector.load %arg6[%c0_70, %c0_71, %c448] : memref<1x2x1024xf32, #tpu.memory_space<vmem>>, vector<1x2x32xf32>
    %157 = vector.shape_cast %156 : vector<1x2x32xf32> to vector<2x32xf32>
    %158 = vector.shape_cast %155 : vector<2x32xf32> to vector<1x2x32xf32>
    tpu.vector_store %arg6[%c0_70, %c0_71, %c448], %158 {strides = array<i32>} : memref<1x2x1024xf32, #tpu.memory_space<vmem>>, vector<1x2x32xf32>,
    %159 = vector.extract_strided_slice %8 {offsets = [4, 112], sizes = [2, 16], strides = [1, 1]} : vector<8x256xf32> to vector<2x16xf32>
    %160 = vector.extract_strided_slice %8 {offsets = [6, 112], sizes = [2, 16], strides = [1, 1]} : vector<8x256xf32> to vector<2x16xf32>
    %cst_72 = arith.constant dense<0.000000e+00> : vector<2x32xf32>
    %161 = tpu.matmul %159, %2, %cst_72 {dimension_numbers = #tpu.dot_dimension_numbers<[1], [0], [0], [1], [0, 0, 1, 1], [], []>} : vector<2x16xf32>, vector<16x32xf32>, vector<2x32xf32> -> vector<2x32xf32>
    %cst_73 = arith.constant dense<0.000000e+00> : vector<2x32xf32>
    %162 = tpu.matmul %160, %4, %cst_73 {dimension_numbers = #tpu.dot_dimension_numbers<[1], [0], [0], [1], [0, 0, 1, 1], [], []>} : vector<2x16xf32>, vector<16x32xf32>, vector<2x32xf32> -> vector<2x32xf32>
    %163 = arith.addf %161, %162 : vector<2x32xf32>
    %164 = vector.broadcast %5 : vector<2x1xf32> to vector<2x32xf32>
    %165 = arith.addf %163, %164 : vector<2x32xf32>
    %c0_74 = arith.constant 0 : index
    %c0_75 = arith.constant 0 : index
    %c480 = arith.constant 480 : index
    %166 = vector.load %arg6[%c0_74, %c0_75, %c480] : memref<1x2x1024xf32, #tpu.memory_space<vmem>>, vector<1x2x32xf32>
    %167 = vector.shape_cast %166 : vector<1x2x32xf32> to vector<2x32xf32>
    %168 = vector.shape_cast %165 : vector<2x32xf32> to vector<1x2x32xf32>
    tpu.vector_store %arg6[%c0_74, %c0_75, %c480], %168 {strides = array<i32>} : memref<1x2x1024xf32, #tpu.memory_space<vmem>>, vector<1x2x32xf32>,
    %169 = vector.extract_strided_slice %8 {offsets = [0, 128], sizes = [2, 16], strides = [1, 1]} : vector<8x256xf32> to vector<2x16xf32>
    %170 = vector.extract_strided_slice %8 {offsets = [2, 128], sizes = [2, 16], strides = [1, 1]} : vector<8x256xf32> to vector<2x16xf32>
    %cst_76 = arith.constant dense<0.000000e+00> : vector<2x32xf32>
    %171 = tpu.matmul %169, %2, %cst_76 {dimension_numbers = #tpu.dot_dimension_numbers<[1], [0], [0], [1], [0, 0, 1, 1], [], []>} : vector<2x16xf32>, vector<16x32xf32>, vector<2x32xf32> -> vector<2x32xf32>
    %cst_77 = arith.constant dense<0.000000e+00> : vector<2x32xf32>
    %172 = tpu.matmul %170, %4, %cst_77 {dimension_numbers = #tpu.dot_dimension_numbers<[1], [0], [0], [1], [0, 0, 1, 1], [], []>} : vector<2x16xf32>, vector<16x32xf32>, vector<2x32xf32> -> vector<2x32xf32>
    %173 = arith.addf %171, %172 : vector<2x32xf32>
    %174 = vector.broadcast %5 : vector<2x1xf32> to vector<2x32xf32>
    %175 = arith.addf %173, %174 : vector<2x32xf32>
    %c0_78 = arith.constant 0 : index
    %c0_79 = arith.constant 0 : index
    %c512 = arith.constant 512 : index
    %176 = vector.load %arg6[%c0_78, %c0_79, %c512] : memref<1x2x1024xf32, #tpu.memory_space<vmem>>, vector<1x2x32xf32>
    %177 = vector.shape_cast %176 : vector<1x2x32xf32> to vector<2x32xf32>
    %178 = vector.shape_cast %175 : vector<2x32xf32> to vector<1x2x32xf32>
    tpu.vector_store %arg6[%c0_78, %c0_79, %c512], %178 {strides = array<i32>} : memref<1x2x1024xf32, #tpu.memory_space<vmem>>, vector<1x2x32xf32>,
    %179 = vector.extract_strided_slice %8 {offsets = [4, 128], sizes = [2, 16], strides = [1, 1]} : vector<8x256xf32> to vector<2x16xf32>
    %180 = vector.extract_strided_slice %8 {offsets = [6, 128], sizes = [2, 16], strides = [1, 1]} : vector<8x256xf32> to vector<2x16xf32>
    %cst_80 = arith.constant dense<0.000000e+00> : vector<2x32xf32>
    %181 = tpu.matmul %179, %2, %cst_80 {dimension_numbers = #tpu.dot_dimension_numbers<[1], [0], [0], [1], [0, 0, 1, 1], [], []>} : vector<2x16xf32>, vector<16x32xf32>, vector<2x32xf32> -> vector<2x32xf32>
    %cst_81 = arith.constant dense<0.000000e+00> : vector<2x32xf32>
    %182 = tpu.matmul %180, %4, %cst_81 {dimension_numbers = #tpu.dot_dimension_numbers<[1], [0], [0], [1], [0, 0, 1, 1], [], []>} : vector<2x16xf32>, vector<16x32xf32>, vector<2x32xf32> -> vector<2x32xf32>
    %183 = arith.addf %181, %182 : vector<2x32xf32>
    %184 = vector.broadcast %5 : vector<2x1xf32> to vector<2x32xf32>
    %185 = arith.addf %183, %184 : vector<2x32xf32>
    %c0_82 = arith.constant 0 : index
    %c0_83 = arith.constant 0 : index
    %c544 = arith.constant 544 : index
    %186 = vector.load %arg6[%c0_82, %c0_83, %c544] : memref<1x2x1024xf32, #tpu.memory_space<vmem>>, vector<1x2x32xf32>
    %187 = vector.shape_cast %186 : vector<1x2x32xf32> to vector<2x32xf32>
    %188 = vector.shape_cast %185 : vector<2x32xf32> to vector<1x2x32xf32>
    tpu.vector_store %arg6[%c0_82, %c0_83, %c544], %188 {strides = array<i32>} : memref<1x2x1024xf32, #tpu.memory_space<vmem>>, vector<1x2x32xf32>,
    %189 = vector.extract_strided_slice %8 {offsets = [0, 144], sizes = [2, 16], strides = [1, 1]} : vector<8x256xf32> to vector<2x16xf32>
    %190 = vector.extract_strided_slice %8 {offsets = [2, 144], sizes = [2, 16], strides = [1, 1]} : vector<8x256xf32> to vector<2x16xf32>
    %cst_84 = arith.constant dense<0.000000e+00> : vector<2x32xf32>
    %191 = tpu.matmul %189, %2, %cst_84 {dimension_numbers = #tpu.dot_dimension_numbers<[1], [0], [0], [1], [0, 0, 1, 1], [], []>} : vector<2x16xf32>, vector<16x32xf32>, vector<2x32xf32> -> vector<2x32xf32>
    %cst_85 = arith.constant dense<0.000000e+00> : vector<2x32xf32>
    %192 = tpu.matmul %190, %4, %cst_85 {dimension_numbers = #tpu.dot_dimension_numbers<[1], [0], [0], [1], [0, 0, 1, 1], [], []>} : vector<2x16xf32>, vector<16x32xf32>, vector<2x32xf32> -> vector<2x32xf32>
    %193 = arith.addf %191, %192 : vector<2x32xf32>
    %194 = vector.broadcast %5 : vector<2x1xf32> to vector<2x32xf32>
    %195 = arith.addf %193, %194 : vector<2x32xf32>
    %c0_86 = arith.constant 0 : index
    %c0_87 = arith.constant 0 : index
    %c576 = arith.constant 576 : index
    %196 = vector.load %arg6[%c0_86, %c0_87, %c576] : memref<1x2x1024xf32, #tpu.memory_space<vmem>>, vector<1x2x32xf32>
    %197 = vector.shape_cast %196 : vector<1x2x32xf32> to vector<2x32xf32>
    %198 = vector.shape_cast %195 : vector<2x32xf32> to vector<1x2x32xf32>
    tpu.vector_store %arg6[%c0_86, %c0_87, %c576], %198 {strides = array<i32>} : memref<1x2x1024xf32, #tpu.memory_space<vmem>>, vector<1x2x32xf32>,
    %199 = vector.extract_strided_slice %8 {offsets = [4, 144], sizes = [2, 16], strides = [1, 1]} : vector<8x256xf32> to vector<2x16xf32>
    %200 = vector.extract_strided_slice %8 {offsets = [6, 144], sizes = [2, 16], strides = [1, 1]} : vector<8x256xf32> to vector<2x16xf32>
    %cst_88 = arith.constant dense<0.000000e+00> : vector<2x32xf32>
    %201 = tpu.matmul %199, %2, %cst_88 {dimension_numbers = #tpu.dot_dimension_numbers<[1], [0], [0], [1], [0, 0, 1, 1], [], []>} : vector<2x16xf32>, vector<16x32xf32>, vector<2x32xf32> -> vector<2x32xf32>
    %cst_89 = arith.constant dense<0.000000e+00> : vector<2x32xf32>
    %202 = tpu.matmul %200, %4, %cst_89 {dimension_numbers = #tpu.dot_dimension_numbers<[1], [0], [0], [1], [0, 0, 1, 1], [], []>} : vector<2x16xf32>, vector<16x32xf32>, vector<2x32xf32> -> vector<2x32xf32>
    %203 = arith.addf %201, %202 : vector<2x32xf32>
    %204 = vector.broadcast %5 : vector<2x1xf32> to vector<2x32xf32>
    %205 = arith.addf %203, %204 : vector<2x32xf32>
    %c0_90 = arith.constant 0 : index
    %c0_91 = arith.constant 0 : index
    %c608 = arith.constant 608 : index
    %206 = vector.load %arg6[%c0_90, %c0_91, %c608] : memref<1x2x1024xf32, #tpu.memory_space<vmem>>, vector<1x2x32xf32>
    %207 = vector.shape_cast %206 : vector<1x2x32xf32> to vector<2x32xf32>
    %208 = vector.shape_cast %205 : vector<2x32xf32> to vector<1x2x32xf32>
    tpu.vector_store %arg6[%c0_90, %c0_91, %c608], %208 {strides = array<i32>} : memref<1x2x1024xf32, #tpu.memory_space<vmem>>, vector<1x2x32xf32>,
    %209 = vector.extract_strided_slice %8 {offsets = [0, 160], sizes = [2, 16], strides = [1, 1]} : vector<8x256xf32> to vector<2x16xf32>
    %210 = vector.extract_strided_slice %8 {offsets = [2, 160], sizes = [2, 16], strides = [1, 1]} : vector<8x256xf32> to vector<2x16xf32>
    %cst_92 = arith.constant dense<0.000000e+00> : vector<2x32xf32>
    %211 = tpu.matmul %209, %2, %cst_92 {dimension_numbers = #tpu.dot_dimension_numbers<[1], [0], [0], [1], [0, 0, 1, 1], [], []>} : vector<2x16xf32>, vector<16x32xf32>, vector<2x32xf32> -> vector<2x32xf32>
    %cst_93 = arith.constant dense<0.000000e+00> : vector<2x32xf32>
    %212 = tpu.matmul %210, %4, %cst_93 {dimension_numbers = #tpu.dot_dimension_numbers<[1], [0], [0], [1], [0, 0, 1, 1], [], []>} : vector<2x16xf32>, vector<16x32xf32>, vector<2x32xf32> -> vector<2x32xf32>
    %213 = arith.addf %211, %212 : vector<2x32xf32>
    %214 = vector.broadcast %5 : vector<2x1xf32> to vector<2x32xf32>
    %215 = arith.addf %213, %214 : vector<2x32xf32>
    %c0_94 = arith.constant 0 : index
    %c0_95 = arith.constant 0 : index
    %c640 = arith.constant 640 : index
    %216 = vector.load %arg6[%c0_94, %c0_95, %c640] : memref<1x2x1024xf32, #tpu.memory_space<vmem>>, vector<1x2x32xf32>
    %217 = vector.shape_cast %216 : vector<1x2x32xf32> to vector<2x32xf32>
    %218 = vector.shape_cast %215 : vector<2x32xf32> to vector<1x2x32xf32>
    tpu.vector_store %arg6[%c0_94, %c0_95, %c640], %218 {strides = array<i32>} : memref<1x2x1024xf32, #tpu.memory_space<vmem>>, vector<1x2x32xf32>,
    %219 = vector.extract_strided_slice %8 {offsets = [4, 160], sizes = [2, 16], strides = [1, 1]} : vector<8x256xf32> to vector<2x16xf32>
    %220 = vector.extract_strided_slice %8 {offsets = [6, 160], sizes = [2, 16], strides = [1, 1]} : vector<8x256xf32> to vector<2x16xf32>
    %cst_96 = arith.constant dense<0.000000e+00> : vector<2x32xf32>
    %221 = tpu.matmul %219, %2, %cst_96 {dimension_numbers = #tpu.dot_dimension_numbers<[1], [0], [0], [1], [0, 0, 1, 1], [], []>} : vector<2x16xf32>, vector<16x32xf32>, vector<2x32xf32> -> vector<2x32xf32>
    %cst_97 = arith.constant dense<0.000000e+00> : vector<2x32xf32>
    %222 = tpu.matmul %220, %4, %cst_97 {dimension_numbers = #tpu.dot_dimension_numbers<[1], [0], [0], [1], [0, 0, 1, 1], [], []>} : vector<2x16xf32>, vector<16x32xf32>, vector<2x32xf32> -> vector<2x32xf32>
    %223 = arith.addf %221, %222 : vector<2x32xf32>
    %224 = vector.broadcast %5 : vector<2x1xf32> to vector<2x32xf32>
    %225 = arith.addf %223, %224 : vector<2x32xf32>
    %c0_98 = arith.constant 0 : index
    %c0_99 = arith.constant 0 : index
    %c672 = arith.constant 672 : index
    %226 = vector.load %arg6[%c0_98, %c0_99, %c672] : memref<1x2x1024xf32, #tpu.memory_space<vmem>>, vector<1x2x32xf32>
    %227 = vector.shape_cast %226 : vector<1x2x32xf32> to vector<2x32xf32>
    %228 = vector.shape_cast %225 : vector<2x32xf32> to vector<1x2x32xf32>
    tpu.vector_store %arg6[%c0_98, %c0_99, %c672], %228 {strides = array<i32>} : memref<1x2x1024xf32, #tpu.memory_space<vmem>>, vector<1x2x32xf32>,
    %229 = vector.extract_strided_slice %8 {offsets = [0, 176], sizes = [2, 16], strides = [1, 1]} : vector<8x256xf32> to vector<2x16xf32>
    %230 = vector.extract_strided_slice %8 {offsets = [2, 176], sizes = [2, 16], strides = [1, 1]} : vector<8x256xf32> to vector<2x16xf32>
    %cst_100 = arith.constant dense<0.000000e+00> : vector<2x32xf32>
    %231 = tpu.matmul %229, %2, %cst_100 {dimension_numbers = #tpu.dot_dimension_numbers<[1], [0], [0], [1], [0, 0, 1, 1], [], []>} : vector<2x16xf32>, vector<16x32xf32>, vector<2x32xf32> -> vector<2x32xf32>
    %cst_101 = arith.constant dense<0.000000e+00> : vector<2x32xf32>
    %232 = tpu.matmul %230, %4, %cst_101 {dimension_numbers = #tpu.dot_dimension_numbers<[1], [0], [0], [1], [0, 0, 1, 1], [], []>} : vector<2x16xf32>, vector<16x32xf32>, vector<2x32xf32> -> vector<2x32xf32>
    %233 = arith.addf %231, %232 : vector<2x32xf32>
    %234 = vector.broadcast %5 : vector<2x1xf32> to vector<2x32xf32>
    %235 = arith.addf %233, %234 : vector<2x32xf32>
    %c0_102 = arith.constant 0 : index
    %c0_103 = arith.constant 0 : index
    %c704 = arith.constant 704 : index
    %236 = vector.load %arg6[%c0_102, %c0_103, %c704] : memref<1x2x1024xf32, #tpu.memory_space<vmem>>, vector<1x2x32xf32>
    %237 = vector.shape_cast %236 : vector<1x2x32xf32> to vector<2x32xf32>
    %238 = vector.shape_cast %235 : vector<2x32xf32> to vector<1x2x32xf32>
    tpu.vector_store %arg6[%c0_102, %c0_103, %c704], %238 {strides = array<i32>} : memref<1x2x1024xf32, #tpu.memory_space<vmem>>, vector<1x2x32xf32>,
    %239 = vector.extract_strided_slice %8 {offsets = [4, 176], sizes = [2, 16], strides = [1, 1]} : vector<8x256xf32> to vector<2x16xf32>
    %240 = vector.extract_strided_slice %8 {offsets = [6, 176], sizes = [2, 16], strides = [1, 1]} : vector<8x256xf32> to vector<2x16xf32>
    %cst_104 = arith.constant dense<0.000000e+00> : vector<2x32xf32>
    %241 = tpu.matmul %239, %2, %cst_104 {dimension_numbers = #tpu.dot_dimension_numbers<[1], [0], [0], [1], [0, 0, 1, 1], [], []>} : vector<2x16xf32>, vector<16x32xf32>, vector<2x32xf32> -> vector<2x32xf32>
    %cst_105 = arith.constant dense<0.000000e+00> : vector<2x32xf32>
    %242 = tpu.matmul %240, %4, %cst_105 {dimension_numbers = #tpu.dot_dimension_numbers<[1], [0], [0], [1], [0, 0, 1, 1], [], []>} : vector<2x16xf32>, vector<16x32xf32>, vector<2x32xf32> -> vector<2x32xf32>
    %243 = arith.addf %241, %242 : vector<2x32xf32>
    %244 = vector.broadcast %5 : vector<2x1xf32> to vector<2x32xf32>
    %245 = arith.addf %243, %244 : vector<2x32xf32>
    %c0_106 = arith.constant 0 : index
    %c0_107 = arith.constant 0 : index
    %c736 = arith.constant 736 : index
    %246 = vector.load %arg6[%c0_106, %c0_107, %c736] : memref<1x2x1024xf32, #tpu.memory_space<vmem>>, vector<1x2x32xf32>
    %247 = vector.shape_cast %246 : vector<1x2x32xf32> to vector<2x32xf32>
    %248 = vector.shape_cast %245 : vector<2x32xf32> to vector<1x2x32xf32>
    tpu.vector_store %arg6[%c0_106, %c0_107, %c736], %248 {strides = array<i32>} : memref<1x2x1024xf32, #tpu.memory_space<vmem>>, vector<1x2x32xf32>,
    %249 = vector.extract_strided_slice %8 {offsets = [0, 192], sizes = [2, 16], strides = [1, 1]} : vector<8x256xf32> to vector<2x16xf32>
    %250 = vector.extract_strided_slice %8 {offsets = [2, 192], sizes = [2, 16], strides = [1, 1]} : vector<8x256xf32> to vector<2x16xf32>
    %cst_108 = arith.constant dense<0.000000e+00> : vector<2x32xf32>
    %251 = tpu.matmul %249, %2, %cst_108 {dimension_numbers = #tpu.dot_dimension_numbers<[1], [0], [0], [1], [0, 0, 1, 1], [], []>} : vector<2x16xf32>, vector<16x32xf32>, vector<2x32xf32> -> vector<2x32xf32>
    %cst_109 = arith.constant dense<0.000000e+00> : vector<2x32xf32>
    %252 = tpu.matmul %250, %4, %cst_109 {dimension_numbers = #tpu.dot_dimension_numbers<[1], [0], [0], [1], [0, 0, 1, 1], [], []>} : vector<2x16xf32>, vector<16x32xf32>, vector<2x32xf32> -> vector<2x32xf32>
    %253 = arith.addf %251, %252 : vector<2x32xf32>
    %254 = vector.broadcast %5 : vector<2x1xf32> to vector<2x32xf32>
    %255 = arith.addf %253, %254 : vector<2x32xf32>
    %c0_110 = arith.constant 0 : index
    %c0_111 = arith.constant 0 : index
    %c768 = arith.constant 768 : index
    %256 = vector.load %arg6[%c0_110, %c0_111, %c768] : memref<1x2x1024xf32, #tpu.memory_space<vmem>>, vector<1x2x32xf32>
    %257 = vector.shape_cast %256 : vector<1x2x32xf32> to vector<2x32xf32>
    %258 = vector.shape_cast %255 : vector<2x32xf32> to vector<1x2x32xf32>
    tpu.vector_store %arg6[%c0_110, %c0_111, %c768], %258 {strides = array<i32>} : memref<1x2x1024xf32, #tpu.memory_space<vmem>>, vector<1x2x32xf32>,
    %259 = vector.extract_strided_slice %8 {offsets = [4, 192], sizes = [2, 16], strides = [1, 1]} : vector<8x256xf32> to vector<2x16xf32>
    %260 = vector.extract_strided_slice %8 {offsets = [6, 192], sizes = [2, 16], strides = [1, 1]} : vector<8x256xf32> to vector<2x16xf32>
    %cst_112 = arith.constant dense<0.000000e+00> : vector<2x32xf32>
    %261 = tpu.matmul %259, %2, %cst_112 {dimension_numbers = #tpu.dot_dimension_numbers<[1], [0], [0], [1], [0, 0, 1, 1], [], []>} : vector<2x16xf32>, vector<16x32xf32>, vector<2x32xf32> -> vector<2x32xf32>
    %cst_113 = arith.constant dense<0.000000e+00> : vector<2x32xf32>
    %262 = tpu.matmul %260, %4, %cst_113 {dimension_numbers = #tpu.dot_dimension_numbers<[1], [0], [0], [1], [0, 0, 1, 1], [], []>} : vector<2x16xf32>, vector<16x32xf32>, vector<2x32xf32> -> vector<2x32xf32>
    %263 = arith.addf %261, %262 : vector<2x32xf32>
    %264 = vector.broadcast %5 : vector<2x1xf32> to vector<2x32xf32>
    %265 = arith.addf %263, %264 : vector<2x32xf32>
    %c0_114 = arith.constant 0 : index
    %c0_115 = arith.constant 0 : index
    %c800 = arith.constant 800 : index
    %266 = vector.load %arg6[%c0_114, %c0_115, %c800] : memref<1x2x1024xf32, #tpu.memory_space<vmem>>, vector<1x2x32xf32>
    %267 = vector.shape_cast %266 : vector<1x2x32xf32> to vector<2x32xf32>
    %268 = vector.shape_cast %265 : vector<2x32xf32> to vector<1x2x32xf32>
    tpu.vector_store %arg6[%c0_114, %c0_115, %c800], %268 {strides = array<i32>} : memref<1x2x1024xf32, #tpu.memory_space<vmem>>, vector<1x2x32xf32>,
    %269 = vector.extract_strided_slice %8 {offsets = [0, 208], sizes = [2, 16], strides = [1, 1]} : vector<8x256xf32> to vector<2x16xf32>
    %270 = vector.extract_strided_slice %8 {offsets = [2, 208], sizes = [2, 16], strides = [1, 1]} : vector<8x256xf32> to vector<2x16xf32>
    %cst_116 = arith.constant dense<0.000000e+00> : vector<2x32xf32>
    %271 = tpu.matmul %269, %2, %cst_116 {dimension_numbers = #tpu.dot_dimension_numbers<[1], [0], [0], [1], [0, 0, 1, 1], [], []>} : vector<2x16xf32>, vector<16x32xf32>, vector<2x32xf32> -> vector<2x32xf32>
    %cst_117 = arith.constant dense<0.000000e+00> : vector<2x32xf32>
    %272 = tpu.matmul %270, %4, %cst_117 {dimension_numbers = #tpu.dot_dimension_numbers<[1], [0], [0], [1], [0, 0, 1, 1], [], []>} : vector<2x16xf32>, vector<16x32xf32>, vector<2x32xf32> -> vector<2x32xf32>
    %273 = arith.addf %271, %272 : vector<2x32xf32>
    %274 = vector.broadcast %5 : vector<2x1xf32> to vector<2x32xf32>
    %275 = arith.addf %273, %274 : vector<2x32xf32>
    %c0_118 = arith.constant 0 : index
    %c0_119 = arith.constant 0 : index
    %c832 = arith.constant 832 : index
    %276 = vector.load %arg6[%c0_118, %c0_119, %c832] : memref<1x2x1024xf32, #tpu.memory_space<vmem>>, vector<1x2x32xf32>
    %277 = vector.shape_cast %276 : vector<1x2x32xf32> to vector<2x32xf32>
    %278 = vector.shape_cast %275 : vector<2x32xf32> to vector<1x2x32xf32>
    tpu.vector_store %arg6[%c0_118, %c0_119, %c832], %278 {strides = array<i32>} : memref<1x2x1024xf32, #tpu.memory_space<vmem>>, vector<1x2x32xf32>,
    %279 = vector.extract_strided_slice %8 {offsets = [4, 208], sizes = [2, 16], strides = [1, 1]} : vector<8x256xf32> to vector<2x16xf32>
    %280 = vector.extract_strided_slice %8 {offsets = [6, 208], sizes = [2, 16], strides = [1, 1]} : vector<8x256xf32> to vector<2x16xf32>
    %cst_120 = arith.constant dense<0.000000e+00> : vector<2x32xf32>
    %281 = tpu.matmul %279, %2, %cst_120 {dimension_numbers = #tpu.dot_dimension_numbers<[1], [0], [0], [1], [0, 0, 1, 1], [], []>} : vector<2x16xf32>, vector<16x32xf32>, vector<2x32xf32> -> vector<2x32xf32>
    %cst_121 = arith.constant dense<0.000000e+00> : vector<2x32xf32>
    %282 = tpu.matmul %280, %4, %cst_121 {dimension_numbers = #tpu.dot_dimension_numbers<[1], [0], [0], [1], [0, 0, 1, 1], [], []>} : vector<2x16xf32>, vector<16x32xf32>, vector<2x32xf32> -> vector<2x32xf32>
    %283 = arith.addf %281, %282 : vector<2x32xf32>
    %284 = vector.broadcast %5 : vector<2x1xf32> to vector<2x32xf32>
    %285 = arith.addf %283, %284 : vector<2x32xf32>
    %c0_122 = arith.constant 0 : index
    %c0_123 = arith.constant 0 : index
    %c864 = arith.constant 864 : index
    %286 = vector.load %arg6[%c0_122, %c0_123, %c864] : memref<1x2x1024xf32, #tpu.memory_space<vmem>>, vector<1x2x32xf32>
    %287 = vector.shape_cast %286 : vector<1x2x32xf32> to vector<2x32xf32>
    %288 = vector.shape_cast %285 : vector<2x32xf32> to vector<1x2x32xf32>
    tpu.vector_store %arg6[%c0_122, %c0_123, %c864], %288 {strides = array<i32>} : memref<1x2x1024xf32, #tpu.memory_space<vmem>>, vector<1x2x32xf32>,
    %289 = vector.extract_strided_slice %8 {offsets = [0, 224], sizes = [2, 16], strides = [1, 1]} : vector<8x256xf32> to vector<2x16xf32>
    %290 = vector.extract_strided_slice %8 {offsets = [2, 224], sizes = [2, 16], strides = [1, 1]} : vector<8x256xf32> to vector<2x16xf32>
    %cst_124 = arith.constant dense<0.000000e+00> : vector<2x32xf32>
    %291 = tpu.matmul %289, %2, %cst_124 {dimension_numbers = #tpu.dot_dimension_numbers<[1], [0], [0], [1], [0, 0, 1, 1], [], []>} : vector<2x16xf32>, vector<16x32xf32>, vector<2x32xf32> -> vector<2x32xf32>
    %cst_125 = arith.constant dense<0.000000e+00> : vector<2x32xf32>
    %292 = tpu.matmul %290, %4, %cst_125 {dimension_numbers = #tpu.dot_dimension_numbers<[1], [0], [0], [1], [0, 0, 1, 1], [], []>} : vector<2x16xf32>, vector<16x32xf32>, vector<2x32xf32> -> vector<2x32xf32>
    %293 = arith.addf %291, %292 : vector<2x32xf32>
    %294 = vector.broadcast %5 : vector<2x1xf32> to vector<2x32xf32>
    %295 = arith.addf %293, %294 : vector<2x32xf32>
    %c0_126 = arith.constant 0 : index
    %c0_127 = arith.constant 0 : index
    %c896 = arith.constant 896 : index
    %296 = vector.load %arg6[%c0_126, %c0_127, %c896] : memref<1x2x1024xf32, #tpu.memory_space<vmem>>, vector<1x2x32xf32>
    %297 = vector.shape_cast %296 : vector<1x2x32xf32> to vector<2x32xf32>
    %298 = vector.shape_cast %295 : vector<2x32xf32> to vector<1x2x32xf32>
    tpu.vector_store %arg6[%c0_126, %c0_127, %c896], %298 {strides = array<i32>} : memref<1x2x1024xf32, #tpu.memory_space<vmem>>, vector<1x2x32xf32>,
    %299 = vector.extract_strided_slice %8 {offsets = [4, 224], sizes = [2, 16], strides = [1, 1]} : vector<8x256xf32> to vector<2x16xf32>
    %300 = vector.extract_strided_slice %8 {offsets = [6, 224], sizes = [2, 16], strides = [1, 1]} : vector<8x256xf32> to vector<2x16xf32>
    %cst_128 = arith.constant dense<0.000000e+00> : vector<2x32xf32>
    %301 = tpu.matmul %299, %2, %cst_128 {dimension_numbers = #tpu.dot_dimension_numbers<[1], [0], [0], [1], [0, 0, 1, 1], [], []>} : vector<2x16xf32>, vector<16x32xf32>, vector<2x32xf32> -> vector<2x32xf32>
    %cst_129 = arith.constant dense<0.000000e+00> : vector<2x32xf32>
    %302 = tpu.matmul %300, %4, %cst_129 {dimension_numbers = #tpu.dot_dimension_numbers<[1], [0], [0], [1], [0, 0, 1, 1], [], []>} : vector<2x16xf32>, vector<16x32xf32>, vector<2x32xf32> -> vector<2x32xf32>
    %303 = arith.addf %301, %302 : vector<2x32xf32>
    %304 = vector.broadcast %5 : vector<2x1xf32> to vector<2x32xf32>
    %305 = arith.addf %303, %304 : vector<2x32xf32>
    %c0_130 = arith.constant 0 : index
    %c0_131 = arith.constant 0 : index
    %c928 = arith.constant 928 : index
    %306 = vector.load %arg6[%c0_130, %c0_131, %c928] : memref<1x2x1024xf32, #tpu.memory_space<vmem>>, vector<1x2x32xf32>
    %307 = vector.shape_cast %306 : vector<1x2x32xf32> to vector<2x32xf32>
    %308 = vector.shape_cast %305 : vector<2x32xf32> to vector<1x2x32xf32>
    tpu.vector_store %arg6[%c0_130, %c0_131, %c928], %308 {strides = array<i32>} : memref<1x2x1024xf32, #tpu.memory_space<vmem>>, vector<1x2x32xf32>,
    %309 = vector.extract_strided_slice %8 {offsets = [0, 240], sizes = [2, 16], strides = [1, 1]} : vector<8x256xf32> to vector<2x16xf32>
    %310 = vector.extract_strided_slice %8 {offsets = [2, 240], sizes = [2, 16], strides = [1, 1]} : vector<8x256xf32> to vector<2x16xf32>
    %cst_132 = arith.constant dense<0.000000e+00> : vector<2x32xf32>
    %311 = tpu.matmul %309, %2, %cst_132 {dimension_numbers = #tpu.dot_dimension_numbers<[1], [0], [0], [1], [0, 0, 1, 1], [], []>} : vector<2x16xf32>, vector<16x32xf32>, vector<2x32xf32> -> vector<2x32xf32>
    %cst_133 = arith.constant dense<0.000000e+00> : vector<2x32xf32>
    %312 = tpu.matmul %310, %4, %cst_133 {dimension_numbers = #tpu.dot_dimension_numbers<[1], [0], [0], [1], [0, 0, 1, 1], [], []>} : vector<2x16xf32>, vector<16x32xf32>, vector<2x32xf32> -> vector<2x32xf32>
    %313 = arith.addf %311, %312 : vector<2x32xf32>
    %314 = vector.broadcast %5 : vector<2x1xf32> to vector<2x32xf32>
    %315 = arith.addf %313, %314 : vector<2x32xf32>
    %c0_134 = arith.constant 0 : index
    %c0_135 = arith.constant 0 : index
    %c960 = arith.constant 960 : index
    %316 = vector.load %arg6[%c0_134, %c0_135, %c960] : memref<1x2x1024xf32, #tpu.memory_space<vmem>>, vector<1x2x32xf32>
    %317 = vector.shape_cast %316 : vector<1x2x32xf32> to vector<2x32xf32>
    %318 = vector.shape_cast %315 : vector<2x32xf32> to vector<1x2x32xf32>
    tpu.vector_store %arg6[%c0_134, %c0_135, %c960], %318 {strides = array<i32>} : memref<1x2x1024xf32, #tpu.memory_space<vmem>>, vector<1x2x32xf32>,
    %319 = vector.extract_strided_slice %8 {offsets = [4, 240], sizes = [2, 16], strides = [1, 1]} : vector<8x256xf32> to vector<2x16xf32>
    %320 = vector.extract_strided_slice %8 {offsets = [6, 240], sizes = [2, 16], strides = [1, 1]} : vector<8x256xf32> to vector<2x16xf32>
    %cst_136 = arith.constant dense<0.000000e+00> : vector<2x32xf32>
    %321 = tpu.matmul %319, %2, %cst_136 {dimension_numbers = #tpu.dot_dimension_numbers<[1], [0], [0], [1], [0, 0, 1, 1], [], []>} : vector<2x16xf32>, vector<16x32xf32>, vector<2x32xf32> -> vector<2x32xf32>
    %cst_137 = arith.constant dense<0.000000e+00> : vector<2x32xf32>
    %322 = tpu.matmul %320, %4, %cst_137 {dimension_numbers = #tpu.dot_dimension_numbers<[1], [0], [0], [1], [0, 0, 1, 1], [], []>} : vector<2x16xf32>, vector<16x32xf32>, vector<2x32xf32> -> vector<2x32xf32>
    %323 = arith.addf %321, %322 : vector<2x32xf32>
    %324 = vector.broadcast %5 : vector<2x1xf32> to vector<2x32xf32>
    %325 = arith.addf %323, %324 : vector<2x32xf32>
    %c0_138 = arith.constant 0 : index
    %c0_139 = arith.constant 0 : index
    %c992 = arith.constant 992 : index
    %326 = vector.load %arg6[%c0_138, %c0_139, %c992] : memref<1x2x1024xf32, #tpu.memory_space<vmem>>, vector<1x2x32xf32>
    %327 = vector.shape_cast %326 : vector<1x2x32xf32> to vector<2x32xf32>
    %328 = vector.shape_cast %325 : vector<2x32xf32> to vector<1x2x32xf32>
    tpu.vector_store %arg6[%c0_138, %c0_139, %c992], %328 {strides = array<i32>} : memref<1x2x1024xf32, #tpu.memory_space<vmem>>, vector<1x2x32xf32>,
    return
  }
  func.func @transform_0(%arg0: i32, %arg1: i32) -> (i32, i32, i32) {
    %c0_i32 = arith.constant 0 : i32
    %c0_i32_0 = arith.constant 0 : i32
    return %arg0, %c0_i32, %arg1 : i32, i32, i32
  }
  func.func @transform_1(%arg0: i32, %arg1: i32) -> (i32, i32) {
    %c0_i32 = arith.constant 0 : i32
    %c0_i32_0 = arith.constant 0 : i32
    %c0_i32_1 = arith.constant 0 : i32
    return %c0_i32, %c0_i32_0 : i32, i32
  }
  func.func @transform_2(%arg0: i32, %arg1: i32) -> (i32, i32, i32) {
    %c0_i32 = arith.constant 0 : i32
    %c0_i32_0 = arith.constant 0 : i32
    %c0_i32_1 = arith.constant 0 : i32
    %c0_i32_2 = arith.constant 0 : i32
    return %c0_i32, %c0_i32_0, %c0_i32_1 : i32, i32, i32
  }
  func.func @transform_3(%arg0: i32, %arg1: i32) -> (i32, i32) {
    %c0_i32 = arith.constant 0 : i32
    %c0_i32_0 = arith.constant 0 : i32
    %c0_i32_1 = arith.constant 0 : i32
    return %c0_i32, %c0_i32_0 : i32, i32
  }
  func.func @transform_4(%arg0: i32, %arg1: i32) -> (i32, i32, i32) {
    %c0_i32 = arith.constant 0 : i32
    %c0_i32_0 = arith.constant 0 : i32
    return %arg0, %c0_i32, %arg1 : i32, i32, i32
  }
}

</mosaic_0001>

<llo_original>
// kernel: _upsample_impl.1
$region0: #{_upsample_impl.1}
  #allocation0 [shape = 'u32[]', space=smem, size = 0x4, offset = 0x4, fixed_abs, tag = 'smem constant byte address 0x4 - core index']
  #allocation1 [shape = 'u32[144,128]{1,0:T(1,128)}', space=vmem, size = 0x12000, scoped, tag = 'internal scratch']
  %s0 = inlined_call_operand.vmem [shape: f32[2,4,256], index: 0, kind: input, shape index: {}]
  %s1 = inlined_call_operand.vmem [shape: f32[8,4], index: 1, kind: input, shape index: {}]
  %s2 = inlined_call_operand.vmem [shape: f32[2,16,32], index: 2, kind: input, shape index: {}]
  %s3 = inlined_call_operand.vmem [shape: f32[2,1], index: 3, kind: input, shape index: {}]
  %s4 = inlined_call_operand.vmem [shape: f32[2,2,1024], index: 4, kind: output, shape index: {}]
  %s5 = sld [smem:[#allocation0]]
  $region49: #{_upsample_impl.1} parent=0
    _
  %s7 = ssub.s32 1, %s5
  %s8 = scalar_select 0, %s7, %s5
  loop: start=0, step=1, limit=4
  $region2: #{_upsample_impl.1} parent=0 // loop_pre_header
    _
  $region3: #{_upsample_impl.1} parent=0 // loop_header
    %s10 = sphi 0, %s14
    %p11 = scmp.ge.s32.totalorder %s10, 4
    %s17 = sphi 0, %s29
    %s18 = sphi 0, %s25
    %s19 = sphi 0, %s17
    %s20 = sphi 0, %s18
    %s21 = sphi 0, %s19
    %s22 = sphi 0, %s20
    %s34 = sphi 0, %s36
    %s37 = sphi 0, %s34
    %s38 = sphi 0, %s37
    %s54 = sphi 0, %s38
    %s58 = sphi 0, %s58
    %s60 = sphi 0, %s58
    %s61 = sphi 0, %s60
    %s75 = sphi 0, %s61
    %s79 = sphi 0, %s79
    %s81 = sphi 0, %s79
    %s82 = sphi 0, %s81
    %s96 = sphi 0, %s82
    %s100 = sphi 0, %s100
    %s102 = sphi 0, %s100
    %s103 = sphi 0, %s102
    %s117 = sphi 0, %s103
    %s125 = sphi 0, %s127
    %s128 = sphi 0, %s125
    %s129 = sphi 0, %s128
    %s145 = sphi 0, %s129
  $region4: #{_upsample_impl.1} parent=0 // loop_header_branch
    %13 = sbr.rel (%p11) target = $region8
  $region5: #{_upsample_impl.1} parent=0 // loop_body
    %s15 = ssub.s32 %s10, 1
    %s16 = ssub.s32 %s10, 2
    %s23 = sadd.s32 1, %s18
    %p24 = scmp.ge.s32.totalorder %s23, 1
    %s25 = scalar_select %p24, 0, %s23
    %s26 = sadd.s32 1, %s17
    %s27 = scalar_select %p24, %s26, %s17
    %p28 = scmp.ge.s32.totalorder %s27, 2
    %s29 = scalar_select %p28, 0, %s27
    %s30 = ssub.s32 %s17, %s29
    %s31 = ssub.s32 %s18, %s25
    %s32 = sor.u32 %s30, %s31
    %p33 = scmp.eq.s32.totalorder %s32, 0
    %s35 = sadd.s32 %s34, 1
    %s36 = scalar_select %p33, %s34, %s35
    %p39 = pneg %p33
    %p40 = scmp.eq.s32.totalorder %s10, 1
    %p41 = por %p39, %p40
    %p42 = scmp.ne.s32.totalorder %s34, %s37
    %p43 = scmp.eq.s32.totalorder %s10, 0
    %p44 = por %p42, %p43
    %p45 = scmp.ne.s32.totalorder %s34, %s37
    %p46 = scmp.eq.s32.totalorder %s15, 1
    %p47 = por %p45, %p46
    %p48 = scmp.ne.s32.totalorder %s37, %s38
    %p49 = scmp.eq.s32.totalorder %s15, 0
    %p50 = por %p48, %p49
    %p51 = scmp.ne.s32.totalorder %s37, %s38
    %p52 = scmp.eq.s32.totalorder %s16, 1
    %p53 = por %p51, %p52
    %p55 = scmp.ne.s32.totalorder %s38, %s54
    %p56 = scmp.eq.s32.totalorder %s16, 0
    %p57 = por %p55, %p56
    %s59 = sadd.s32 %s58, 1
    %p62 = scmp.eq.s32.totalorder %s10, 1
    %p63 = scmp.ne.s32.totalorder %s58, %s60
    %p64 = scmp.eq.s32.totalorder %s10, 0
    %p65 = por %p63, %p64
    %p66 = scmp.ne.s32.totalorder %s58, %s60
    %p67 = scmp.eq.s32.totalorder %s15, 1
    %p68 = por %p66, %p67
    %p69 = scmp.ne.s32.totalorder %s60, %s61
    %p70 = scmp.eq.s32.totalorder %s15, 0
    %p71 = por %p69, %p70
    %p72 = scmp.ne.s32.totalorder %s60, %s61
    %p73 = scmp.eq.s32.totalorder %s16, 1
    %p74 = por %p72, %p73
    %p76 = scmp.ne.s32.totalorder %s61, %s75
    %p77 = scmp.eq.s32.totalorder %s16, 0
    %p78 = por %p76, %p77
    %s80 = sadd.s32 %s79, 1
    %p83 = scmp.eq.s32.totalorder %s10, 1
    %p84 = scmp.ne.s32.totalorder %s79, %s81
    %p85 = scmp.eq.s32.totalorder %s10, 0
    %p86 = por %p84, %p85
    %p87 = scmp.ne.s32.totalorder %s79, %s81
    %p88 = scmp.eq.s32.totalorder %s15, 1
    %p89 = por %p87, %p88
    %p90 = scmp.ne.s32.totalorder %s81, %s82
    %p91 = scmp.eq.s32.totalorder %s15, 0
    %p92 = por %p90, %p91
    %p93 = scmp.ne.s32.totalorder %s81, %s82
    %p94 = scmp.eq.s32.totalorder %s16, 1
    %p95 = por %p93, %p94
    %p97 = scmp.ne.s32.totalorder %s82, %s96
    %p98 = scmp.eq.s32.totalorder %s16, 0
    %p99 = por %p97, %p98
    %s101 = sadd.s32 %s100, 1
    %p104 = scmp.eq.s32.totalorder %s10, 1
    %p105 = scmp.ne.s32.totalorder %s100, %s102
    %p106 = scmp.eq.s32.totalorder %s10, 0
    %p107 = por %p105, %p106
    %p108 = scmp.ne.s32.totalorder %s100, %s102
    %p109 = scmp.eq.s32.totalorder %s15, 1
    %p110 = por %p108, %p109
    %p111 = scmp.ne.s32.totalorder %s102, %s103
    %p112 = scmp.eq.s32.totalorder %s15, 0
    %p113 = por %p111, %p112
    %p114 = scmp.ne.s32.totalorder %s102, %s103
    %p115 = scmp.eq.s32.totalorder %s16, 1
    %p116 = por %p114, %p115
    %p118 = scmp.ne.s32.totalorder %s103, %s117
    %p119 = scmp.eq.s32.totalorder %s16, 0
    %p120 = por %p118, %p119
    %s121 = ssub.s32 %s17, %s29
    %s122 = ssub.s32 %s18, %s25
    %s123 = sor.u32 %s121, %s122
    %p124 = scmp.eq.s32.totalorder %s123, 0
    %s126 = sadd.s32 %s125, 1
    %s127 = scalar_select %p124, %s125, %s126
    %p130 = pneg %p124
    %p131 = scmp.eq.s32.totalorder %s10, 1
    %p132 = por %p130, %p131
    %p133 = scmp.ne.s32.totalorder %s125, %s128
    %p134 = scmp.eq.s32.totalorder %s10, 0
    %p135 = por %p133, %p134
    %p136 = scmp.ne.s32.totalorder %s125, %s128
    %p137 = scmp.eq.s32.totalorder %s15, 1
    %p138 = por %p136, %p137
    %p139 = scmp.ne.s32.totalorder %s128, %s129
    %p140 = scmp.eq.s32.totalorder %s15, 0
    %p141 = por %p139, %p140
    %p142 = scmp.ne.s32.totalorder %s128, %s129
    %p143 = scmp.eq.s32.totalorder %s16, 1
    %p144 = por %p142, %p143
    %p146 = scmp.ne.s32.totalorder %s129, %s145
    %p147 = scmp.eq.s32.totalorder %s16, 0
    %p148 = por %p146, %p147
    %p149 = scmp.le.s32.totalorder 1, %s10
    %p150 = scmp.lt.s32.totalorder %s10, 3
    %p151 = pnand %p149, %p150
    %p152 = pneg %p151
    // Predicated region
    $region9: #{_upsample_impl.1} parent=5 // pred_check
      _
    $region10: #{_upsample_impl.1} parent=5 // pred_check_branch
      %154 = sbr.rel (%p151) target = $region12
    $region11: #{_upsample_impl.1} parent=5 // pred_region
      %s155 = ssub.s32 %s10, 1
      // Predicated region
      $region13: #{_upsample_impl.1} parent=11 // pred_check
        %p156 = pneg %p71
      $region14: #{_upsample_impl.1} parent=11 // pred_check_branch
        %158 = sbr.rel (%p156) target = $region16
      $region15: #{_upsample_impl.1} parent=11 // pred_region
        _
      $region16: #{_upsample_impl.1} parent=11 // pred_fallthru
        _
      // Predicated region
      $region17: #{_upsample_impl.1} parent=11 // pred_check
        %p159 = pneg %p92
      $region18: #{_upsample_impl.1} parent=11 // pred_check_branch
        %161 = sbr.rel (%p159) target = $region20
      $region19: #{_upsample_impl.1} parent=11 // pred_region
        _
      $region20: #{_upsample_impl.1} parent=11 // pred_fallthru
        _
      // Predicated region
      $region21: #{_upsample_impl.1} parent=11 // pred_check
        %p162 = pneg %p113
      $region22: #{_upsample_impl.1} parent=11 // pred_check_branch
        %164 = sbr.rel (%p162) target = $region24
      $region23: #{_upsample_impl.1} parent=11 // pred_region
        _
      $region24: #{_upsample_impl.1} parent=11 // pred_fallthru
        _
    $region12: #{_upsample_impl.1} parent=5 // pred_fallthru
      _
    %p165 = scmp.lt.s32.totalorder %s10, 2
    // Predicated region
    $region25: #{_upsample_impl.1} parent=5 // pred_check
      %p166 = pneg %p165
    $region26: #{_upsample_impl.1} parent=5 // pred_check_branch
      %168 = sbr.rel (%p166) target = $region28
    $region27: #{_upsample_impl.1} parent=5 // pred_region
      // Predicated region
      $region29: #{_upsample_impl.1} parent=27 // pred_check
        %p169 = pneg %p44
      $region30: #{_upsample_impl.1} parent=27 // pred_check_branch
        %171 = sbr.rel (%p169) target = $region32
      $region31: #{_upsample_impl.1} parent=27 // pred_region
        %s172 = smul.u32 2, %s18
        %p173 = scmp.lt.s32.totalorder %s17, 1
        %s174 = scalar_select %p173, %s17, 1
        %p175 = scmp.lt.s32.totalorder %s172, 1
        %s176 = scalar_select %p175, %s172, 1
        %s177 = smul.addr %s174, 2
        %s178 = sadd.s32 %s176, %s177
        %s179 = smul.addr %s178, 4
        %s180 = scalar_lea.vmem %s0, %s179
        %s181 = smul.u32 2, %s18
      $region32: #{_upsample_impl.1} parent=27 // pred_fallthru
        _
    $region28: #{_upsample_impl.1} parent=5 // pred_fallthru
      _
    %p182 = scmp.le.s32.totalorder 1, %s10
    %p183 = scmp.lt.s32.totalorder %s10, 3
    %p184 = pnand %p182, %p183
    %p185 = pneg %p184
    // Predicated region
    $region33: #{_upsample_impl.1} parent=5 // pred_check
      _
    $region34: #{_upsample_impl.1} parent=5 // pred_check_branch
      %187 = sbr.rel (%p184) target = $region36
    $region35: #{_upsample_impl.1} parent=5 // pred_region
      %s188 = ssub.s32 %s10, 1
      %s189 = smul.u32 2, %s20
      %p190 = scmp.lt.s32.totalorder %s19, 1
      %s191 = scalar_select %p190, %s19, 1
      %p192 = scmp.lt.s32.totalorder %s189, 1
      %s193 = scalar_select %p192, %s189, 1
      %s194 = smul.addr %s191, 2
      %s195 = sadd.s32 %s193, %s194
      %s196 = smul.addr %s195, 4
      %s197 = scalar_lea.vmem %s0, %s196
      %p198 = pneg %p50
      %p199 = pneg %p47
      %p200 = pneg %p71
      %p201 = pneg %p68
      %p202 = pneg %p92
      %p203 = pneg %p89
      %p204 = pneg %p113
      %p205 = pneg %p110
      %p206 = pneg %p141
      %p207 = pneg %p138
      %s208 = smul.u32 8, %s20
      %p209 = scmp.lt.s32.totalorder %s19, 1
      %s210 = scalar_select %p209, %s19, 1
      %p211 = scmp.lt.s32.totalorder %s208, 7
      %s212 = scalar_select %p211, %s208, 7
      %s213 = smul.addr %s210, 8
      %s214 = sadd.s32 %s212, %s213
      %s215 = smul.addr %s214, 2
      %s216 = scalar_lea.vmem %s4, %s215
      %s217 = smul.u32 2, %s20
      %p218 = scmp.lt.s32.totalorder %s19, 1
      %s219 = scalar_select %p218, %s19, 1
      %p220 = scmp.lt.s32.totalorder %s217, 1
      %s221 = scalar_select %p220, %s217, 1
      %s222 = smul.addr %s219, 2
      %s223 = sadd.s32 %s221, %s222
      %s224 = smul.addr %s223, 4
      %s225 = scalar_lea.vmem %s0, %s224
      %s226 = smul.u32 2, %s20
      %s227 = smul.u32 8, %s20
      %p228 = scmp.lt.s32.totalorder %s19, 1
      %s229 = scalar_select %p228, %s19, 1
      %p230 = scmp.lt.s32.totalorder %s227, 7
      %s231 = scalar_select %p230, %s227, 7
      %s232 = smul.addr %s229, 8
      %s233 = sadd.s32 %s231, %s232
      %s234 = smul.addr %s233, 2
      %s235 = scalar_lea.vmem %s4, %s234
      %s236 = smul.u32 8, %s20
      %v237 = vld [vmem:[%s1] sm:$0xff]
      %v238 = vld [vmem:[%s2] sm:$0xff]
      %v239 = vld [vmem:[%s2 + $0x8] sm:$0xff]
      %s240 = scalar_lea.vmem %s2, 16
      %v241 = vld [vmem:[%s240] sm:$0xff]
      %v242 = vld [vmem:[%s240 + $0x8] sm:$0xff]
      %v243 = vld [vmem:[%s3] sm:$0x3]
      %v244 = vld [vmem:[%s225] sm:$0xff]
      %v246 = vcombine.high %v244, %v244
      %vm247 = vcmask 31744
      %v249 = vsel %vm247, %v237, 0
      %vm251 = vcmask 1043456
      %v252 = vsel %vm251, %v244, 0
      %v254 = vsel %vm251, %v246, 0
      %256 = vmatprep.subr.mxu0 %v254
      %257 = vmatpush1.msra.mxu0 %v252
      %258 = vmatprep.subr.mxu0 0.0
      %259 = vmatpush1.msra.mxu0 0.0
      %260 = vmatprep.subr.mxu0 0.0
      %261 = vmatpush1.msra.mxu0 0.0
      %262 = vmatprep.subr.mxu0 0.0
      %263 = vmatpush1.msra.mxu0 0.0
      %264 = vmatprep.subr.mxu0 0.0
      %265 = vmatpush1.msra.mxu0 0.0
      %266 = vmatprep.subr.mxu0 0.0
      %267 = vmatpush1.msra.mxu0 0.0
      %268 = vmatprep.subr.mxu0 0.0
      %269 = vmatpush1.msra.mxu0 0.0
      %270 = vmatprep.subr.mxu0 0.0
      %271 = vmatpush1.msra.mxu0 0.0
      %272 = vmatprep.subr.mxu0 0.0
      %273 = vmatpush1.msra.mxu0 0.0
      %274 = vmatprep.subr.mxu0 0.0
      %275 = vmatpush1.msra.mxu0 0.0
      %276 = vmatprep.subr.mxu0 0.0
      %277 = vmatpush1.msra.mxu0 0.0
      %278 = vmatprep.subr.mxu0 0.0
      %279 = vmatpush1.msra.mxu0 0.0
      %280 = vmatprep.subr.mxu0 0.0
      %281 = vmatpush1.msra.mxu0 0.0
      %282 = vmatprep.subr.mxu0 0.0
      %283 = vmatpush1.msra.mxu0 0.0
      %284 = vmatprep.subr.mxu0 0.0
      %285 = vmatpush1.msra.mxu0 0.0
      %286 = vmatprep.subr.mxu0 0.0
      %287 = vmatpush1.msra.mxu0 0.0
      %288 = vmatprep.subr.mxu0 0.0
      %289 = vmatpush1.msra.mxu0 0.0
      %290 = vmatprep.subr.mxu0 0.0
      %291 = vmatpush1.msra.mxu0 0.0
      %292 = vmatprep.subr.mxu0 0.0
      %293 = vmatpush1.msra.mxu0 0.0
      %294 = vmatprep.subr.mxu0 0.0
      %295 = vmatpush1.msra.mxu0 0.0
      %296 = vmatprep.subr.mxu0 0.0
      %297 = vmatpush1.msra.mxu0 0.0
      %298 = vmatprep.subr.mxu0 0.0
      %299 = vmatpush1.msra.mxu0 0.0
      %300 = vmatprep.subr.mxu0 0.0
      %301 = vmatpush1.msra.mxu0 0.0
      %302 = vmatprep.subr.mxu0 0.0
      %303 = vmatpush1.msra.mxu0 0.0
      %304 = vmatprep.subr.mxu0 0.0
      %305 = vmatpush1.msra.mxu0 0.0
      %306 = vmatprep.subr.mxu0 0.0
      %307 = vmatpush1.msra.mxu0 0.0
      %308 = vmatprep.subr.mxu0 0.0
      %309 = vmatpush1.msra.mxu0 0.0
      %310 = vmatprep.subr.mxu0 0.0
      %311 = vmatpush1.msra.mxu0 0.0
      %312 = vmatprep.subr.mxu0 0.0
      %313 = vmatpush1.msra.mxu0 0.0
      %314 = vmatprep.subr.mxu0 0.0
      %315 = vmatpush1.msra.mxu0 0.0
      %316 = vmatprep.subr.mxu0 0.0
      %317 = vmatpush1.msra.mxu0 0.0
      %318 = vmatprep.subr.mxu0 0.0
      %319 = vmatpush1.msra.mxu0 0.0
      %320 = vmatprep.mubr.f32.mxu0 0.0
      %321 = vmatmul.mubr.f32.gmra.mrb[0].mxu0 %v249
      %v322 = vpop.f32.mrb[0].mxu0
      %v323 = vadd.f32 0.0, %v322
      %v324 = vpop.f32.mrb[0].mxu0
      %v325 = vadd.f32 0.0, %v324
      %326 = vdwg.mxu0
      %v328 = vrot.slane %v323, 2
      %vm329 = vcmask 130048
      %v330 = vsel %vm329, %v328, 0
      %332 = vmatprep.subr.mxu0 0.0
      %333 = vmatpush1.msra.mxu0 %v241
      %334 = vmatprep.subr.mxu0 0.0
      %335 = vmatpush1.msra.mxu0 %v242
      %336 = vmatprep.subr.mxu0 0.0
      %337 = vmatpush1.msra.mxu0 0.0
      %338 = vmatprep.subr.mxu0 0.0
      %339 = vmatpush1.msra.mxu0 0.0
      %340 = vmatprep.subr.mxu0 0.0
      %341 = vmatpush1.msra.mxu0 0.0
      %342 = vmatprep.subr.mxu0 0.0
      %343 = vmatpush1.msra.mxu0 0.0
      %344 = vmatprep.subr.mxu0 0.0
      %345 = vmatpush1.msra.mxu0 0.0
      %346 = vmatprep.subr.mxu0 0.0
      %347 = vmatpush1.msra.mxu0 0.0
      %348 = vmatprep.subr.mxu0 0.0
      %349 = vmatpush1.msra.mxu0 0.0
      %350 = vmatprep.subr.mxu0 0.0
      %351 = vmatpush1.msra.mxu0 0.0
      %352 = vmatprep.subr.mxu0 0.0
      %353 = vmatpush1.msra.mxu0 0.0
      %354 = vmatprep.subr.mxu0 0.0
      %355 = vmatpush1.msra.mxu0 0.0
      %356 = vmatprep.subr.mxu0 0.0
      %357 = vmatpush1.msra.mxu0 0.0
      %358 = vmatprep.subr.mxu0 0.0
      %359 = vmatpush1.msra.mxu0 0.0
      %360 = vmatprep.subr.mxu0 0.0
      %361 = vmatpush1.msra.mxu0 0.0
      %362 = vmatprep.subr.mxu0 0.0
      %363 = vmatpush1.msra.mxu0 0.0
      %364 = vmatprep.subr.mxu0 0.0
      %365 = vmatpush1.msra.mxu0 0.0
      %366 = vmatprep.subr.mxu0 0.0
      %367 = vmatpush1.msra.mxu0 0.0
      %368 = vmatprep.subr.mxu0 0.0
      %369 = vmatpush1.msra.mxu0 0.0
      %370 = vmatprep.subr.mxu0 0.0
      %371 = vmatpush1.msra.mxu0 0.0
      %372 = vmatprep.subr.mxu0 0.0
      %373 = vmatpush1.msra.mxu0 0.0
      %374 = vmatprep.subr.mxu0 0.0
      %375 = vmatpush1.msra.mxu0 0.0
      %376 = vmatprep.subr.mxu0 0.0
      %377 = vmatpush1.msra.mxu0 0.0
      %378 = vmatprep.subr.mxu0 0.0
      %379 = vmatpush1.msra.mxu0 0.0
      %380 = vmatprep.subr.mxu0 0.0
      %381 = vmatpush1.msra.mxu0 0.0
      %382 = vmatprep.subr.mxu0 0.0
      %383 = vmatpush1.msra.mxu0 0.0
      %384 = vmatprep.subr.mxu0 0.0
      %385 = vmatpush1.msra.mxu0 0.0
      %386 = vmatprep.subr.mxu0 0.0
      %387 = vmatpush1.msra.mxu0 0.0
      %388 = vmatprep.subr.mxu0 0.0
      %389 = vmatpush1.msra.mxu0 0.0
      %390 = vmatprep.subr.mxu0 0.0
      %391 = vmatpush1.msra.mxu0 0.0
      %392 = vmatprep.subr.mxu0 0.0
      %393 = vmatpush1.msra.mxu0 0.0
      %394 = vmatprep.subr.mxu0 0.0
      %395 = vmatpush1.msra.mxu0 0.0
      %396 = vmatprep.mubr.f32.mxu0 0.0
      %397 = vmatmul.mubr.f32.gmra.mrb[0].mxu0 %v330
      %v398 = vpop.f32.mrb[0].mxu0
      %v399 = vadd.f32 0.0, %v398
      %v400 = vpop.f32.mrb[0].mxu0
      %401 = vdwg.mxu0
      %v402 = vsel %vm329, %v323, 0
      %404 = vmatprep.subr.mxu0 0.0
      %405 = vmatpush1.msra.mxu0 %v238
      %406 = vmatprep.subr.mxu0 0.0
      %407 = vmatpush1.msra.mxu0 %v239
      %408 = vmatprep.subr.mxu0 0.0
      %409 = vmatpush1.msra.mxu0 0.0
      %410 = vmatprep.subr.mxu0 0.0
      %411 = vmatpush1.msra.mxu0 0.0
      %412 = vmatprep.subr.mxu0 0.0
      %413 = vmatpush1.msra.mxu0 0.0
      %414 = vmatprep.subr.mxu0 0.0
      %415 = vmatpush1.msra.mxu0 0.0
      %416 = vmatprep.subr.mxu0 0.0
      %417 = vmatpush1.msra.mxu0 0.0
      %418 = vmatprep.subr.mxu0 0.0
      %419 = vmatpush1.msra.mxu0 0.0
      %420 = vmatprep.subr.mxu0 0.0
      %421 = vmatpush1.msra.mxu0 0.0
      %422 = vmatprep.subr.mxu0 0.0
      %423 = vmatpush1.msra.mxu0 0.0
      %424 = vmatprep.subr.mxu0 0.0
      %425 = vmatpush1.msra.mxu0 0.0
      %426 = vmatprep.subr.mxu0 0.0
      %427 = vmatpush1.msra.mxu0 0.0
      %428 = vmatprep.subr.mxu0 0.0
      %429 = vmatpush1.msra.mxu0 0.0
      %430 = vmatprep.subr.mxu0 0.0
      %431 = vmatpush1.msra.mxu0 0.0
      %432 = vmatprep.subr.mxu0 0.0
      %433 = vmatpush1.msra.mxu0 0.0
      %434 = vmatprep.subr.mxu0 0.0
      %435 = vmatpush1.msra.mxu0 0.0
      %436 = vmatprep.subr.mxu0 0.0
      %437 = vmatpush1.msra.mxu0 0.0
      %438 = vmatprep.subr.mxu0 0.0
      %439 = vmatpush1.msra.mxu0 0.0
      %440 = vmatprep.subr.mxu0 0.0
      %441 = vmatpush1.msra.mxu0 0.0
      %442 = vmatprep.subr.mxu0 0.0
      %443 = vmatpush1.msra.mxu0 0.0
      %444 = vmatprep.subr.mxu0 0.0
      %445 = vmatpush1.msra.mxu0 0.0
      %446 = vmatprep.subr.mxu0 0.0
      %447 = vmatpush1.msra.mxu0 0.0
      %448 = vmatprep.subr.mxu0 0.0
      %449 = vmatpush1.msra.mxu0 0.0
      %450 = vmatprep.subr.mxu0 0.0
      %451 = vmatpush1.msra.mxu0 0.0
      %452 = vmatprep.subr.mxu0 0.0
      %453 = vmatpush1.msra.mxu0 0.0
      %454 = vmatprep.subr.mxu0 0.0
      %455 = vmatpush1.msra.mxu0 0.0
      %456 = vmatprep.subr.mxu0 0.0
      %457 = vmatpush1.msra.mxu0 0.0
      %458 = vmatprep.subr.mxu0 0.0
      %459 = vmatpush1.msra.mxu0 0.0
      %460 = vmatprep.subr.mxu0 0.0
      %461 = vmatpush1.msra.mxu0 0.0
      %462 = vmatprep.subr.mxu0 0.0
      %463 = vmatpush1.msra.mxu0 0.0
      %464 = vmatprep.subr.mxu0 0.0
      %465 = vmatpush1.msra.mxu0 0.0
      %466 = vmatprep.subr.mxu0 0.0
      %467 = vmatpush1.msra.mxu0 0.0
      %468 = vmatprep.mubr.f32.mxu0 0.0
      %469 = vmatmul.mubr.f32.gmra.mrb[0].mxu0 %v402
      %v470 = vpop.f32.mrb[0].mxu0
      %v471 = vadd.f32 %v399, %v470
      %v472 = vpop.f32.mrb[0].mxu0
      %473 = vdwg.mxu0
      %475 = vset.pattern.permute.xlu0 0
      %476 = vperm.xlu0 %475, %v243
      %v477 = vpop.permute.xlu0 %476
      %v479 = vadd.f32 %v471, %v477
      %vm480 = vcmask 254976
      %481 = vst.msk [vmem:[%s235] sm:$0x3] %vm480, %v479
      %v482 = vrot.slane %v323, 6
      %v483 = vsel %vm329, %v482, 0
      %485 = vmatprep.subr.mxu0 0.0
      %486 = vmatpush1.msra.mxu0 %v241
      %487 = vmatprep.subr.mxu0 0.0
      %488 = vmatpush1.msra.mxu0 %v242
      %489 = vmatprep.subr.mxu0 0.0
      %490 = vmatpush1.msra.mxu0 0.0
      %491 = vmatprep.subr.mxu0 0.0
      %492 = vmatpush1.msra.mxu0 0.0
      %493 = vmatprep.subr.mxu0 0.0
      %494 = vmatpush1.msra.mxu0 0.0
      %495 = vmatprep.subr.mxu0 0.0
      %496 = vmatpush1.msra.mxu0 0.0
      %497 = vmatprep.subr.mxu0 0.0
      %498 = vmatpush1.msra.mxu0 0.0
      %499 = vmatprep.subr.mxu0 0.0
      %500 = vmatpush1.msra.mxu0 0.0
      %501 = vmatprep.subr.mxu0 0.0
      %502 = vmatpush1.msra.mxu0 0.0
      %503 = vmatprep.subr.mxu0 0.0
      %504 = vmatpush1.msra.mxu0 0.0
      %505 = vmatprep.subr.mxu0 0.0
      %506 = vmatpush1.msra.mxu0 0.0
      %507 = vmatprep.subr.mxu0 0.0
      %508 = vmatpush1.msra.mxu0 0.0
      %509 = vmatprep.subr.mxu0 0.0
      %510 = vmatpush1.msra.mxu0 0.0
      %511 = vmatprep.subr.mxu0 0.0
      %512 = vmatpush1.msra.mxu0 0.0
      %513 = vmatprep.subr.mxu0 0.0
      %514 = vmatpush1.msra.mxu0 0.0
      %515 = vmatprep.subr.mxu0 0.0
      %516 = vmatpush1.msra.mxu0 0.0
      %517 = vmatprep.subr.mxu0 0.0
      %518 = vmatpush1.msra.mxu0 0.0
      %519 = vmatprep.subr.mxu0 0.0
      %520 = vmatpush1.msra.mxu0 0.0
      %521 = vmatprep.subr.mxu0 0.0
      %522 = vmatpush1.msra.mxu0 0.0
      %523 = vmatprep.subr.mxu0 0.0
      %524 = vmatpush1.msra.mxu0 0.0
      %525 = vmatprep.subr.mxu0 0.0
      %526 = vmatpush1.msra.mxu0 0.0
      %527 = vmatprep.subr.mxu0 0.0
      %528 = vmatpush1.msra.mxu0 0.0
      %529 = vmatprep.subr.mxu0 0.0
      %530 = vmatpush1.msra.mxu0 0.0
      %531 = vmatprep.subr.mxu0 0.0
      %532 = vmatpush1.msra.mxu0 0.0
      %533 = vmatprep.subr.mxu0 0.0
      %534 = vmatpush1.msra.mxu0 0.0
      %535 = vmatprep.subr.mxu0 0.0
      %536 = vmatpush1.msra.mxu0 0.0
      %537 = vmatprep.subr.mxu0 0.0
      %538 = vmatpush1.msra.mxu0 0.0
      %539 = vmatprep.subr.mxu0 0.0
      %540 = vmatpush1.msra.mxu0 0.0
      %541 = vmatprep.subr.mxu0 0.0
      %542 = vmatpush1.msra.mxu0 0.0
      %543 = vmatprep.subr.mxu0 0.0
      %544 = vmatpush1.msra.mxu0 0.0
      %545 = vmatprep.subr.mxu0 0.0
      %546 = vmatpush1.msra.mxu0 0.0
      %547 = vmatprep.subr.mxu0 0.0
      %548 = vmatpush1.msra.mxu0 0.0
      %549 = vmatprep.mubr.f32.mxu0 0.0
      %550 = vmatmul.mubr.f32.gmra.mrb[0].mxu0 %v483
      %v551 = vpop.f32.mrb[0].mxu0
      %v552 = vadd.f32 0.0, %v551
      %v553 = vpop.f32.mrb[0].mxu0
      %554 = vdwg.mxu0
      %v555 = vrot.slane %v323, 4
      %v556 = vsel %vm329, %v555, 0
      %558 = vmatprep.subr.mxu0 0.0
      %559 = vmatpush1.msra.mxu0 %v238
      %560 = vmatprep.subr.mxu0 0.0
      %561 = vmatpush1.msra.mxu0 %v239
      %562 = vmatprep.subr.mxu0 0.0
      %563 = vmatpush1.msra.mxu0 0.0
      %564 = vmatprep.subr.mxu0 0.0
      %565 = vmatpush1.msra.mxu0 0.0
      %566 = vmatprep.subr.mxu0 0.0
      %567 = vmatpush1.msra.mxu0 0.0
      %568 = vmatprep.subr.mxu0 0.0
      %569 = vmatpush1.msra.mxu0 0.0
      %570 = vmatprep.subr.mxu0 0.0
      %571 = vmatpush1.msra.mxu0 0.0
      %572 = vmatprep.subr.mxu0 0.0
      %573 = vmatpush1.msra.mxu0 0.0
      %574 = vmatprep.subr.mxu0 0.0
      %575 = vmatpush1.msra.mxu0 0.0
      %576 = vmatprep.subr.mxu0 0.0
      %577 = vmatpush1.msra.mxu0 0.0
      %578 = vmatprep.subr.mxu0 0.0
      %579 = vmatpush1.msra.mxu0 0.0
      %580 = vmatprep.subr.mxu0 0.0
      %581 = vmatpush1.msra.mxu0 0.0
      %582 = vmatprep.subr.mxu0 0.0
      %583 = vmatpush1.msra.mxu0 0.0
      %584 = vmatprep.subr.mxu0 0.0
      %585 = vmatpush1.msra.mxu0 0.0
      %586 = vmatprep.subr.mxu0 0.0
      %587 = vmatpush1.msra.mxu0 0.0
      %588 = vmatprep.subr.mxu0 0.0
      %589 = vmatpush1.msra.mxu0 0.0
      %590 = vmatprep.subr.mxu0 0.0
      %591 = vmatpush1.msra.mxu0 0.0
      %592 = vmatprep.subr.mxu0 0.0
      %593 = vmatpush1.msra.mxu0 0.0
      %594 = vmatprep.subr.mxu0 0.0
      %595 = vmatpush1.msra.mxu0 0.0
      %596 = vmatprep.subr.mxu0 0.0
      %597 = vmatpush1.msra.mxu0 0.0
      %598 = vmatprep.subr.mxu0 0.0
      %599 = vmatpush1.msra.mxu0 0.0
      %600 = vmatprep.subr.mxu0 0.0
      %601 = vmatpush1.msra.mxu0 0.0
      %602 = vmatprep.subr.mxu0 0.0
      %603 = vmatpush1.msra.mxu0 0.0
      %604 = vmatprep.subr.mxu0 0.0
      %605 = vmatpush1.msra.mxu0 0.0
      %606 = vmatprep.subr.mxu0 0.0
      %607 = vmatpush1.msra.mxu0 0.0
      %608 = vmatprep.subr.mxu0 0.0
      %609 = vmatpush1.msra.mxu0 0.0
      %610 = vmatprep.subr.mxu0 0.0
      %611 = vmatpush1.msra.mxu0 0.0
      %612 = vmatprep.subr.mxu0 0.0
      %613 = vmatpush1.msra.mxu0 0.0
      %614 = vmatprep.subr.mxu0 0.0
      %615 = vmatpush1.msra.mxu0 0.0
      %616 = vmatprep.subr.mxu0 0.0
      %617 = vmatpush1.msra.mxu0 0.0
      %618 = vmatprep.subr.mxu0 0.0
      %619 = vmatpush1.msra.mxu0 0.0
      %620 = vmatprep.subr.mxu0 0.0
      %621 = vmatpush1.msra.mxu0 0.0
      %622 = vmatprep.mubr.f32.mxu0 0.0
      %623 = vmatmul.mubr.f32.gmra.mrb[0].mxu0 %v556
      %v624 = vpop.f32.mrb[0].mxu0
      %v625 = vadd.f32 %v552, %v624
      %v626 = vpop.f32.mrb[0].mxu0
      %627 = vdwg.mxu0
      %v628 = vadd.f32 %v625, %v477
      %v631 = vunpack.c.l.s4 1983009808
      %v632 = vunpack.c.0.s8 %v631
      %v633 = vlaneseq
      %v634 = vshrl.u32 %v633, 7
      %v635 = vsub.s32 %v632, %v634
      %v636 = vrot.slane %v628, %v635
      %637 = vrot.lane.b32.xlu0 %v636, 32
      %v638 = vpop.permute.xlu0 %637
      %vm640 = vcmask 517376
      %641 = vst.msk [vmem:[%s235] sm:$0x3] %vm640, %v638
      %642 = vrot.lane.b32.xlu0 %v328, 112
      %v643 = vpop.permute.xlu0 %642
      %v644 = vsel %vm329, %v643, 0
      %646 = vmatprep.subr.mxu0 0.0
      %647 = vmatpush1.msra.mxu0 %v241
      %648 = vmatprep.subr.mxu0 0.0
      %649 = vmatpush1.msra.mxu0 %v242
      %650 = vmatprep.subr.mxu0 0.0
      %651 = vmatpush1.msra.mxu0 0.0
      %652 = vmatprep.subr.mxu0 0.0
      %653 = vmatpush1.msra.mxu0 0.0
      %654 = vmatprep.subr.mxu0 0.0
      %655 = vmatpush1.msra.mxu0 0.0
      %656 = vmatprep.subr.mxu0 0.0
      %657 = vmatpush1.msra.mxu0 0.0
      %658 = vmatprep.subr.mxu0 0.0
      %659 = vmatpush1.msra.mxu0 0.0
      %660 = vmatprep.subr.mxu0 0.0
      %661 = vmatpush1.msra.mxu0 0.0
      %662 = vmatprep.subr.mxu0 0.0
      %663 = vmatpush1.msra.mxu0 0.0
      %664 = vmatprep.subr.mxu0 0.0
      %665 = vmatpush1.msra.mxu0 0.0
      %666 = vmatprep.subr.mxu0 0.0
      %667 = vmatpush1.msra.mxu0 0.0
      %668 = vmatprep.subr.mxu0 0.0
      %669 = vmatpush1.msra.mxu0 0.0
      %670 = vmatprep.subr.mxu0 0.0
      %671 = vmatpush1.msra.mxu0 0.0
      %672 = vmatprep.subr.mxu0 0.0
      %673 = vmatpush1.msra.mxu0 0.0
      %674 = vmatprep.subr.mxu0 0.0
      %675 = vmatpush1.msra.mxu0 0.0
      %676 = vmatprep.subr.mxu0 0.0
      %677 = vmatpush1.msra.mxu0 0.0
      %678 = vmatprep.subr.mxu0 0.0
      %679 = vmatpush1.msra.mxu0 0.0
      %680 = vmatprep.subr.mxu0 0.0
      %681 = vmatpush1.msra.mxu0 0.0
      %682 = vmatprep.subr.mxu0 0.0
      %683 = vmatpush1.msra.mxu0 0.0
      %684 = vmatprep.subr.mxu0 0.0
      %685 = vmatpush1.msra.mxu0 0.0
      %686 = vmatprep.subr.mxu0 0.0
      %687 = vmatpush1.msra.mxu0 0.0
      %688 = vmatprep.subr.mxu0 0.0
      %689 = vmatpush1.msra.mxu0 0.0
      %690 = vmatprep.subr.mxu0 0.0
      %691 = vmatpush1.msra.mxu0 0.0
      %692 = vmatprep.subr.mxu0 0.0
      %693 = vmatpush1.msra.mxu0 0.0
      %694 = vmatprep.subr.mxu0 0.0
      %695 = vmatpush1.msra.mxu0 0.0
      %696 = vmatprep.subr.mxu0 0.0
      %697 = vmatpush1.msra.mxu0 0.0
      %698 = vmatprep.subr.mxu0 0.0
      %699 = vmatpush1.msra.mxu0 0.0
      %700 = vmatprep.subr.mxu0 0.0
      %701 = vmatpush1.msra.mxu0 0.0
      %702 = vmatprep.subr.mxu0 0.0
      %703 = vmatpush1.msra.mxu0 0.0
      %704 = vmatprep.subr.mxu0 0.0
      %705 = vmatpush1.msra.mxu0 0.0
      %706 = vmatprep.subr.mxu0 0.0
      %707 = vmatpush1.msra.mxu0 0.0
      %708 = vmatprep.subr.mxu0 0.0
      %709 = vmatpush1.msra.mxu0 0.0
      %710 = vmatprep.mubr.f32.mxu0 0.0
      %711 = vmatmul.mubr.f32.gmra.mrb[0].mxu0 %v644
      %v712 = vpop.f32.mrb[0].mxu0
      %v713 = vadd.f32 0.0, %v712
      %v714 = vpop.f32.mrb[0].mxu0
      %715 = vdwg.mxu0
      %716 = vrot.lane.b32.xlu0 %v323, 112
      %v717 = vpop.permute.xlu0 %716
      %v718 = vsel %vm329, %v717, 0
      %720 = vmatprep.subr.mxu0 0.0
      %721 = vmatpush1.msra.mxu0 %v238
      %722 = vmatprep.subr.mxu0 0.0
      %723 = vmatpush1.msra.mxu0 %v239
      %724 = vmatprep.subr.mxu0 0.0
      %725 = vmatpush1.msra.mxu0 0.0
      %726 = vmatprep.subr.mxu0 0.0
      %727 = vmatpush1.msra.mxu0 0.0
      %728 = vmatprep.subr.mxu0 0.0
      %729 = vmatpush1.msra.mxu0 0.0
      %730 = vmatprep.subr.mxu0 0.0
      %731 = vmatpush1.msra.mxu0 0.0
      %732 = vmatprep.subr.mxu0 0.0
      %733 = vmatpush1.msra.mxu0 0.0
      %734 = vmatprep.subr.mxu0 0.0
      %735 = vmatpush1.msra.mxu0 0.0
      %736 = vmatprep.subr.mxu0 0.0
      %737 = vmatpush1.msra.mxu0 0.0
      %738 = vmatprep.subr.mxu0 0.0
      %739 = vmatpush1.msra.mxu0 0.0
      %740 = vmatprep.subr.mxu0 0.0
      %741 = vmatpush1.msra.mxu0 0.0
      %742 = vmatprep.subr.mxu0 0.0
      %743 = vmatpush1.msra.mxu0 0.0
      %744 = vmatprep.subr.mxu0 0.0
      %745 = vmatpush1.msra.mxu0 0.0
      %746 = vmatprep.subr.mxu0 0.0
      %747 = vmatpush1.msra.mxu0 0.0
      %748 = vmatprep.subr.mxu0 0.0
      %749 = vmatpush1.msra.mxu0 0.0
      %750 = vmatprep.subr.mxu0 0.0
      %751 = vmatpush1.msra.mxu0 0.0
      %752 = vmatprep.subr.mxu0 0.0
      %753 = vmatpush1.msra.mxu0 0.0
      %754 = vmatprep.subr.mxu0 0.0
      %755 = vmatpush1.msra.mxu0 0.0
      %756 = vmatprep.subr.mxu0 0.0
      %757 = vmatpush1.msra.mxu0 0.0
      %758 = vmatprep.subr.mxu0 0.0
      %759 = vmatpush1.msra.mxu0 0.0
      %760 = vmatprep.subr.mxu0 0.0
      %761 = vmatpush1.msra.mxu0 0.0
      %762 = vmatprep.subr.mxu0 0.0
      %763 = vmatpush1.msra.mxu0 0.0
      %764 = vmatprep.subr.mxu0 0.0
      %765 = vmatpush1.msra.mxu0 0.0
      %766 = vmatprep.subr.mxu0 0.0
      %767 = vmatpush1.msra.mxu0 0.0
      %768 = vmatprep.subr.mxu0 0.0
      %769 = vmatpush1.msra.mxu0 0.0
      %770 = vmatprep.subr.mxu0 0.0
      %771 = vmatpush1.msra.mxu0 0.0
      %772 = vmatprep.subr.mxu0 0.0
      %773 = vmatpush1.msra.mxu0 0.0
      %774 = vmatprep.subr.mxu0 0.0
      %775 = vmatpush1.msra.mxu0 0.0
      %776 = vmatprep.subr.mxu0 0.0
      %777 = vmatpush1.msra.mxu0 0.0
      %778 = vmatprep.subr.mxu0 0.0
      %779 = vmatpush1.msra.mxu0 0.0
      %780 = vmatprep.subr.mxu0 0.0
      %781 = vmatpush1.msra.mxu0 0.0
      %782 = vmatprep.subr.mxu0 0.0
      %783 = vmatpush1.msra.mxu0 0.0
      %784 = vmatprep.mubr.f32.mxu0 0.0
      %785 = vmatmul.mubr.f32.gmra.mrb[0].mxu0 %v718
      %v786 = vpop.f32.mrb[0].mxu0
      %v787 = vadd.f32 %v713, %v786
      %v788 = vpop.f32.mrb[0].mxu0
      %789 = vdwg.mxu0
      %v790 = vadd.f32 %v787, %v477
      %v793 = vunpack.c.l.s4 1983009808
      %v794 = vunpack.c.0.s8 %v793
      %v795 = vlaneseq
      %v796 = vshrl.u32 %v795, 7
      %v797 = vsub.s32 %v794, %v796
      %v798 = vrot.slane %v790, %v797
      %799 = vrot.lane.b32.xlu0 %v798, 64
      %v800 = vpop.permute.xlu0 %799
      %vm802 = vcmask 779776
      %803 = vst.msk [vmem:[%s235] sm:$0x3] %vm802, %v800
      %804 = vrot.lane.b32.xlu0 %v482, 112
      %v805 = vpop.permute.xlu0 %804
      %v806 = vsel %vm329, %v805, 0
      %808 = vmatprep.subr.mxu0 0.0
      %809 = vmatpush1.msra.mxu0 %v241
      %810 = vmatprep.subr.mxu0 0.0
      %811 = vmatpush1.msra.mxu0 %v242
      %812 = vmatprep.subr.mxu0 0.0
      %813 = vmatpush1.msra.mxu0 0.0
      %814 = vmatprep.subr.mxu0 0.0
      %815 = vmatpush1.msra.mxu0 0.0
      %816 = vmatprep.subr.mxu0 0.0
      %817 = vmatpush1.msra.mxu0 0.0
      %818 = vmatprep.subr.mxu0 0.0
      %819 = vmatpush1.msra.mxu0 0.0
      %820 = vmatprep.subr.mxu0 0.0
      %821 = vmatpush1.msra.mxu0 0.0
      %822 = vmatprep.subr.mxu0 0.0
      %823 = vmatpush1.msra.mxu0 0.0
      %824 = vmatprep.subr.mxu0 0.0
      %825 = vmatpush1.msra.mxu0 0.0
      %826 = vmatprep.subr.mxu0 0.0
      %827 = vmatpush1.msra.mxu0 0.0
      %828 = vmatprep.subr.mxu0 0.0
      %829 = vmatpush1.msra.mxu0 0.0
      %830 = vmatprep.subr.mxu0 0.0
      %831 = vmatpush1.msra.mxu0 0.0
      %832 = vmatprep.subr.mxu0 0.0
      %833 = vmatpush1.msra.mxu0 0.0
      %834 = vmatprep.subr.mxu0 0.0
      %835 = vmatpush1.msra.mxu0 0.0
      %836 = vmatprep.subr.mxu0 0.0
      %837 = vmatpush1.msra.mxu0 0.0
      %838 = vmatprep.subr.mxu0 0.0
      %839 = vmatpush1.msra.mxu0 0.0
      %840 = vmatprep.subr.mxu0 0.0
      %841 = vmatpush1.msra.mxu0 0.0
      %842 = vmatprep.subr.mxu0 0.0
      %843 = vmatpush1.msra.mxu0 0.0
      %844 = vmatprep.subr.mxu0 0.0
      %845 = vmatpush1.msra.mxu0 0.0
      %846 = vmatprep.subr.mxu0 0.0
      %847 = vmatpush1.msra.mxu0 0.0
      %848 = vmatprep.subr.mxu0 0.0
      %849 = vmatpush1.msra.mxu0 0.0
      %850 = vmatprep.subr.mxu0 0.0
      %851 = vmatpush1.msra.mxu0 0.0
      %852 = vmatprep.subr.mxu0 0.0
      %853 = vmatpush1.msra.mxu0 0.0
      %854 = vmatprep.subr.mxu0 0.0
      %855 = vmatpush1.msra.mxu0 0.0
      %856 = vmatprep.subr.mxu0 0.0
      %857 = vmatpush1.msra.mxu0 0.0
      %858 = vmatprep.subr.mxu0 0.0
      %859 = vmatpush1.msra.mxu0 0.0
      %860 = vmatprep.subr.mxu0 0.0
      %861 = vmatpush1.msra.mxu0 0.0
      %862 = vmatprep.subr.mxu0 0.0
      %863 = vmatpush1.msra.mxu0 0.0
      %864 = vmatprep.subr.mxu0 0.0
      %865 = vmatpush1.msra.mxu0 0.0
      %866 = vmatprep.subr.mxu0 0.0
      %867 = vmatpush1.msra.mxu0 0.0
      %868 = vmatprep.subr.mxu0 0.0
      %869 = vmatpush1.msra.mxu0 0.0
      %870 = vmatprep.subr.mxu0 0.0
      %871 = vmatpush1.msra.mxu0 0.0
      %872 = vmatprep.mubr.f32.mxu0 0.0
      %873 = vmatmul.mubr.f32.gmra.mrb[0].mxu0 %v806
      %v874 = vpop.f32.mrb[0].mxu0
      %v875 = vadd.f32 0.0, %v874
      %v876 = vpop.f32.mrb[0].mxu0
      %877 = vdwg.mxu0
      %878 = vrot.lane.b32.xlu0 %v555, 112
      %v879 = vpop.permute.xlu0 %878
      %v880 = vsel %vm329, %v879, 0
      %882 = vmatprep.subr.mxu0 0.0
      %883 = vmatpush1.msra.mxu0 %v238
      %884 = vmatprep.subr.mxu0 0.0
      %885 = vmatpush1.msra.mxu0 %v239
      %886 = vmatprep.subr.mxu0 0.0
      %887 = vmatpush1.msra.mxu0 0.0
      %888 = vmatprep.subr.mxu0 0.0
      %889 = vmatpush1.msra.mxu0 0.0
      %890 = vmatprep.subr.mxu0 0.0
      %891 = vmatpush1.msra.mxu0 0.0
      %892 = vmatprep.subr.mxu0 0.0
      %893 = vmatpush1.msra.mxu0 0.0
      %894 = vmatprep.subr.mxu0 0.0
      %895 = vmatpush1.msra.mxu0 0.0
      %896 = vmatprep.subr.mxu0 0.0
      %897 = vmatpush1.msra.mxu0 0.0
      %898 = vmatprep.subr.mxu0 0.0
      %899 = vmatpush1.msra.mxu0 0.0
      %900 = vmatprep.subr.mxu0 0.0
      %901 = vmatpush1.msra.mxu0 0.0
      %902 = vmatprep.subr.mxu0 0.0
      %903 = vmatpush1.msra.mxu0 0.0
      %904 = vmatprep.subr.mxu0 0.0
      %905 = vmatpush1.msra.mxu0 0.0
      %906 = vmatprep.subr.mxu0 0.0
      %907 = vmatpush1.msra.mxu0 0.0
      %908 = vmatprep.subr.mxu0 0.0
      %909 = vmatpush1.msra.mxu0 0.0
      %910 = vmatprep.subr.mxu0 0.0
      %911 = vmatpush1.msra.mxu0 0.0
      %912 = vmatprep.subr.mxu0 0.0
      %913 = vmatpush1.msra.mxu0 0.0
      %914 = vmatprep.subr.mxu0 0.0
      %915 = vmatpush1.msra.mxu0 0.0
      %916 = vmatprep.subr.mxu0 0.0
      %917 = vmatpush1.msra.mxu0 0.0
      %918 = vmatprep.subr.mxu0 0.0
      %919 = vmatpush1.msra.mxu0 0.0
      %920 = vmatprep.subr.mxu0 0.0
      %921 = vmatpush1.msra.mxu0 0.0
      %922 = vmatprep.subr.mxu0 0.0
      %923 = vmatpush1.msra.mxu0 0.0
      %924 = vmatprep.subr.mxu0 0.0
      %925 = vmatpush1.msra.mxu0 0.0
      %926 = vmatprep.subr.mxu0 0.0
      %927 = vmatpush1.msra.mxu0 0.0
      %928 = vmatprep.subr.mxu0 0.0
      %929 = vmatpush1.msra.mxu0 0.0
      %930 = vmatprep.subr.mxu0 0.0
      %931 = vmatpush1.msra.mxu0 0.0
      %932 = vmatprep.subr.mxu0 0.0
      %933 = vmatpush1.msra.mxu0 0.0
      %934 = vmatprep.subr.mxu0 0.0
      %935 = vmatpush1.msra.mxu0 0.0
      %936 = vmatprep.subr.mxu0 0.0
      %937 = vmatpush1.msra.mxu0 0.0
      %938 = vmatprep.subr.mxu0 0.0
      %939 = vmatpush1.msra.mxu0 0.0
      %940 = vmatprep.subr.mxu0 0.0
      %941 = vmatpush1.msra.mxu0 0.0
      %942 = vmatprep.subr.mxu0 0.0
      %943 = vmatpush1.msra.mxu0 0.0
      %944 = vmatprep.subr.mxu0 0.0
      %945 = vmatpush1.msra.mxu0 0.0
      %946 = vmatprep.mubr.f32.mxu0 0.0
      %947 = vmatmul.mubr.f32.gmra.mrb[0].mxu0 %v880
      %v948 = vpop.f32.mrb[0].mxu0
      %v949 = vadd.f32 %v875, %v948
      %v950 = vpop.f32.mrb[0].mxu0
      %951 = vdwg.mxu0
      %v952 = vadd.f32 %v949, %v477
      %v955 = vunpack.c.l.s4 1983009808
      %v956 = vunpack.c.0.s8 %v955
      %v957 = vlaneseq
      %v958 = vshrl.u32 %v957, 7
      %v959 = vsub.s32 %v956, %v958
      %v960 = vrot.slane %v952, %v959
      %961 = vrot.lane.b32.xlu0 %v960, 96
      %v962 = vpop.permute.xlu0 %961
      %vm964 = vcmask 1042176
      %965 = vst.msk [vmem:[%s235] sm:$0x3] %vm964, %v962
      %966 = vrot.lane.b32.xlu0 %v328, 96
      %v967 = vpop.permute.xlu0 %966
      %v968 = vsel %vm329, %v967, 0
      %970 = vmatprep.subr.mxu0 0.0
      %971 = vmatpush1.msra.mxu0 %v241
      %972 = vmatprep.subr.mxu0 0.0
      %973 = vmatpush1.msra.mxu0 %v242
      %974 = vmatprep.subr.mxu0 0.0
      %975 = vmatpush1.msra.mxu0 0.0
      %976 = vmatprep.subr.mxu0 0.0
      %977 = vmatpush1.msra.mxu0 0.0
      %978 = vmatprep.subr.mxu0 0.0
      %979 = vmatpush1.msra.mxu0 0.0
      %980 = vmatprep.subr.mxu0 0.0
      %981 = vmatpush1.msra.mxu0 0.0
      %982 = vmatprep.subr.mxu0 0.0
      %983 = vmatpush1.msra.mxu0 0.0
      %984 = vmatprep.subr.mxu0 0.0
      %985 = vmatpush1.msra.mxu0 0.0
      %986 = vmatprep.subr.mxu0 0.0
      %987 = vmatpush1.msra.mxu0 0.0
      %988 = vmatprep.subr.mxu0 0.0
      %989 = vmatpush1.msra.mxu0 0.0
      %990 = vmatprep.subr.mxu0 0.0
      %991 = vmatpush1.msra.mxu0 0.0
      %992 = vmatprep.subr.mxu0 0.0
      %993 = vmatpush1.msra.mxu0 0.0
      %994 = vmatprep.subr.mxu0 0.0
      %995 = vmatpush1.msra.mxu0 0.0
      %996 = vmatprep.subr.mxu0 0.0
      %997 = vmatpush1.msra.mxu0 0.0
      %998 = vmatprep.subr.mxu0 0.0
      %999 = vmatpush1.msra.mxu0 0.0
      %1000 = vmatprep.subr.mxu0 0.0
      %1001 = vmatpush1.msra.mxu0 0.0
      %1002 = vmatprep.subr.mxu0 0.0
      %1003 = vmatpush1.msra.mxu0 0.0
      %1004 = vmatprep.subr.mxu0 0.0
      %1005 = vmatpush1.msra.mxu0 0.0
      %1006 = vmatprep.subr.mxu0 0.0
      %1007 = vmatpush1.msra.mxu0 0.0
      %1008 = vmatprep.subr.mxu0 0.0
      %1009 = vmatpush1.msra.mxu0 0.0
      %1010 = vmatprep.subr.mxu0 0.0
      %1011 = vmatpush1.msra.mxu0 0.0
      %1012 = vmatprep.subr.mxu0 0.0
      %1013 = vmatpush1.msra.mxu0 0.0
      %1014 = vmatprep.subr.mxu0 0.0
      %1015 = vmatpush1.msra.mxu0 0.0
      %1016 = vmatprep.subr.mxu0 0.0
      %1017 = vmatpush1.msra.mxu0 0.0
      %1018 = vmatprep.subr.mxu0 0.0
      %1019 = vmatpush1.msra.mxu0 0.0
      %1020 = vmatprep.subr.mxu0 0.0
      %1021 = vmatpush1.msra.mxu0 0.0
      %1022 = vmatprep.subr.mxu0 0.0
      %1023 = vmatpush1.msra.mxu0 0.0
      %1024 = vmatprep.subr.mxu0 0.0
      %1025 = vmatpush1.msra.mxu0 0.0
      %1026 = vmatprep.subr.mxu0 0.0
      %1027 = vmatpush1.msra.mxu0 0.0
      %1028 = vmatprep.subr.mxu0 0.0
      %1029 = vmatpush1.msra.mxu0 0.0
      %1030 = vmatprep.subr.mxu0 0.0
      %1031 = vmatpush1.msra.mxu0 0.0
      %1032 = vmatprep.subr.mxu0 0.0
      %1033 = vmatpush1.msra.mxu0 0.0
      %1034 = vmatprep.mubr.f32.mxu0 0.0
      %1035 = vmatmul.mubr.f32.gmra.mrb[0].mxu0 %v968
      %v1036 = vpop.f32.mrb[0].mxu0
      %v1037 = vadd.f32 0.0, %v1036
      %v1038 = vpop.f32.mrb[0].mxu0
      %1039 = vdwg.mxu0
      %1040 = vrot.lane.b32.xlu0 %v323, 96
      %v1041 = vpop.permute.xlu0 %1040
      %v1042 = vsel %vm329, %v1041, 0
      %1044 = vmatprep.subr.mxu0 0.0
      %1045 = vmatpush1.msra.mxu0 %v238
      %1046 = vmatprep.subr.mxu0 0.0
      %1047 = vmatpush1.msra.mxu0 %v239
      %1048 = vmatprep.subr.mxu0 0.0
      %1049 = vmatpush1.msra.mxu0 0.0
      %1050 = vmatprep.subr.mxu0 0.0
      %1051 = vmatpush1.msra.mxu0 0.0
      %1052 = vmatprep.subr.mxu0 0.0
      %1053 = vmatpush1.msra.mxu0 0.0
      %1054 = vmatprep.subr.mxu0 0.0
      %1055 = vmatpush1.msra.mxu0 0.0
      %1056 = vmatprep.subr.mxu0 0.0
      %1057 = vmatpush1.msra.mxu0 0.0
      %1058 = vmatprep.subr.mxu0 0.0
      %1059 = vmatpush1.msra.mxu0 0.0
      %1060 = vmatprep.subr.mxu0 0.0
      %1061 = vmatpush1.msra.mxu0 0.0
      %1062 = vmatprep.subr.mxu0 0.0
      %1063 = vmatpush1.msra.mxu0 0.0
      %1064 = vmatprep.subr.mxu0 0.0
      %1065 = vmatpush1.msra.mxu0 0.0
      %1066 = vmatprep.subr.mxu0 0.0
      %1067 = vmatpush1.msra.mxu0 0.0
      %1068 = vmatprep.subr.mxu0 0.0
      %1069 = vmatpush1.msra.mxu0 0.0
      %1070 = vmatprep.subr.mxu0 0.0
      %1071 = vmatpush1.msra.mxu0 0.0
      %1072 = vmatprep.subr.mxu0 0.0
      %1073 = vmatpush1.msra.mxu0 0.0
      %1074 = vmatprep.subr.mxu0 0.0
      %1075 = vmatpush1.msra.mxu0 0.0
      %1076 = vmatprep.subr.mxu0 0.0
      %1077 = vmatpush1.msra.mxu0 0.0
      %1078 = vmatprep.subr.mxu0 0.0
      %1079 = vmatpush1.msra.mxu0 0.0
      %1080 = vmatprep.subr.mxu0 0.0
      %1081 = vmatpush1.msra.mxu0 0.0
      %1082 = vmatprep.subr.mxu0 0.0
      %1083 = vmatpush1.msra.mxu0 0.0
      %1084 = vmatprep.subr.mxu0 0.0
      %1085 = vmatpush1.msra.mxu0 0.0
      %1086 = vmatprep.subr.mxu0 0.0
      %1087 = vmatpush1.msra.mxu0 0.0
      %1088 = vmatprep.subr.mxu0 0.0
      %1089 = vmatpush1.msra.mxu0 0.0
      %1090 = vmatprep.subr.mxu0 0.0
      %1091 = vmatpush1.msra.mxu0 0.0
      %1092 = vmatprep.subr.mxu0 0.0
      %1093 = vmatpush1.msra.mxu0 0.0
      %1094 = vmatprep.subr.mxu0 0.0
      %1095 = vmatpush1.msra.mxu0 0.0
      %1096 = vmatprep.subr.mxu0 0.0
      %1097 = vmatpush1.msra.mxu0 0.0
      %1098 = vmatprep.subr.mxu0 0.0
      %1099 = vmatpush1.msra.mxu0 0.0
      %1100 = vmatprep.subr.mxu0 0.0
      %1101 = vmatpush1.msra.mxu0 0.0
      %1102 = vmatprep.subr.mxu0 0.0
      %1103 = vmatpush1.msra.mxu0 0.0
      %1104 = vmatprep.subr.mxu0 0.0
      %1105 = vmatpush1.msra.mxu0 0.0
      %1106 = vmatprep.subr.mxu0 0.0
      %1107 = vmatpush1.msra.mxu0 0.0
      %1108 = vmatprep.mubr.f32.mxu0 0.0
      %1109 = vmatmul.mubr.f32.gmra.mrb[0].mxu0 %v1042
      %v1110 = vpop.f32.mrb[0].mxu0
      %v1111 = vadd.f32 %v1037, %v1110
      %v1112 = vpop.f32.mrb[0].mxu0
      %1113 = vdwg.mxu0
      %v1114 = vadd.f32 %v1111, %v477
      %1115 = vst.msk [vmem:[%s235 + $0x2] sm:$0x3] %vm480, %v1114
      %1116 = vrot.lane.b32.xlu0 %v482, 96
      %v1117 = vpop.permute.xlu0 %1116
      %v1118 = vsel %vm329, %v1117, 0
      %1120 = vmatprep.subr.mxu0 0.0
      %1121 = vmatpush1.msra.mxu0 %v241
      %1122 = vmatprep.subr.mxu0 0.0
      %1123 = vmatpush1.msra.mxu0 %v242
      %1124 = vmatprep.subr.mxu0 0.0
      %1125 = vmatpush1.msra.mxu0 0.0
      %1126 = vmatprep.subr.mxu0 0.0
      %1127 = vmatpush1.msra.mxu0 0.0
      %1128 = vmatprep.subr.mxu0 0.0
      %1129 = vmatpush1.msra.mxu0 0.0
      %1130 = vmatprep.subr.mxu0 0.0
      %1131 = vmatpush1.msra.mxu0 0.0
      %1132 = vmatprep.subr.mxu0 0.0
      %1133 = vmatpush1.msra.mxu0 0.0
      %1134 = vmatprep.subr.mxu0 0.0
      %1135 = vmatpush1.msra.mxu0 0.0
      %1136 = vmatprep.subr.mxu0 0.0
      %1137 = vmatpush1.msra.mxu0 0.0
      %1138 = vmatprep.subr.mxu0 0.0
      %1139 = vmatpush1.msra.mxu0 0.0
      %1140 = vmatprep.subr.mxu0 0.0
      %1141 = vmatpush1.msra.mxu0 0.0
      %1142 = vmatprep.subr.mxu0 0.0
      %1143 = vmatpush1.msra.mxu0 0.0
      %1144 = vmatprep.subr.mxu0 0.0
      %1145 = vmatpush1.msra.mxu0 0.0
      %1146 = vmatprep.subr.mxu0 0.0
      %1147 = vmatpush1.msra.mxu0 0.0
      %1148 = vmatprep.subr.mxu0 0.0
      %1149 = vmatpush1.msra.mxu0 0.0
      %1150 = vmatprep.subr.mxu0 0.0
      %1151 = vmatpush1.msra.mxu0 0.0
      %1152 = vmatprep.subr.mxu0 0.0
      %1153 = vmatpush1.msra.mxu0 0.0
      %1154 = vmatprep.subr.mxu0 0.0
      %1155 = vmatpush1.msra.mxu0 0.0
      %1156 = vmatprep.subr.mxu0 0.0
      %1157 = vmatpush1.msra.mxu0 0.0
      %1158 = vmatprep.subr.mxu0 0.0
      %1159 = vmatpush1.msra.mxu0 0.0
      %1160 = vmatprep.subr.mxu0 0.0
      %1161 = vmatpush1.msra.mxu0 0.0
      %1162 = vmatprep.subr.mxu0 0.0
      %1163 = vmatpush1.msra.mxu0 0.0
      %1164 = vmatprep.subr.mxu0 0.0
      %1165 = vmatpush1.msra.mxu0 0.0
      %1166 = vmatprep.subr.mxu0 0.0
      %1167 = vmatpush1.msra.mxu0 0.0
      %1168 = vmatprep.subr.mxu0 0.0
      %1169 = vmatpush1.msra.mxu0 0.0
      %1170 = vmatprep.subr.mxu0 0.0
      %1171 = vmatpush1.msra.mxu0 0.0
      %1172 = vmatprep.subr.mxu0 0.0
      %1173 = vmatpush1.msra.mxu0 0.0
      %1174 = vmatprep.subr.mxu0 0.0
      %1175 = vmatpush1.msra.mxu0 0.0
      %1176 = vmatprep.subr.mxu0 0.0
      %1177 = vmatpush1.msra.mxu0 0.0
      %1178 = vmatprep.subr.mxu0 0.0
      %1179 = vmatpush1.msra.mxu0 0.0
      %1180 = vmatprep.subr.mxu0 0.0
      %1181 = vmatpush1.msra.mxu0 0.0
      %1182 = vmatprep.subr.mxu0 0.0
      %1183 = vmatpush1.msra.mxu0 0.0
      %1184 = vmatprep.mubr.f32.mxu0 0.0
      %1185 = vmatmul.mubr.f32.gmra.mrb[0].mxu0 %v1118
      %v1186 = vpop.f32.mrb[0].mxu0
      %v1187 = vadd.f32 0.0, %v1186
      %v1188 = vpop.f32.mrb[0].mxu0
      %1189 = vdwg.mxu0
      %1190 = vrot.lane.b32.xlu0 %v555, 96
      %v1191 = vpop.permute.xlu0 %1190
      %v1192 = vsel %vm329, %v1191, 0
      %1194 = vmatprep.subr.mxu0 0.0
      %1195 = vmatpush1.msra.mxu0 %v238
      %1196 = vmatprep.subr.mxu0 0.0
      %1197 = vmatpush1.msra.mxu0 %v239
      %1198 = vmatprep.subr.mxu0 0.0
      %1199 = vmatpush1.msra.mxu0 0.0
      %1200 = vmatprep.subr.mxu0 0.0
      %1201 = vmatpush1.msra.mxu0 0.0
      %1202 = vmatprep.subr.mxu0 0.0
      %1203 = vmatpush1.msra.mxu0 0.0
      %1204 = vmatprep.subr.mxu0 0.0
      %1205 = vmatpush1.msra.mxu0 0.0
      %1206 = vmatprep.subr.mxu0 0.0
      %1207 = vmatpush1.msra.mxu0 0.0
      %1208 = vmatprep.subr.mxu0 0.0
      %1209 = vmatpush1.msra.mxu0 0.0
      %1210 = vmatprep.subr.mxu0 0.0
      %1211 = vmatpush1.msra.mxu0 0.0
      %1212 = vmatprep.subr.mxu0 0.0
      %1213 = vmatpush1.msra.mxu0 0.0
      %1214 = vmatprep.subr.mxu0 0.0
      %1215 = vmatpush1.msra.mxu0 0.0
      %1216 = vmatprep.subr.mxu0 0.0
      %1217 = vmatpush1.msra.mxu0 0.0
      %1218 = vmatprep.subr.mxu0 0.0
      %1219 = vmatpush1.msra.mxu0 0.0
      %1220 = vmatprep.subr.mxu0 0.0
      %1221 = vmatpush1.msra.mxu0 0.0
      %1222 = vmatprep.subr.mxu0 0.0
      %1223 = vmatpush1.msra.mxu0 0.0
      %1224 = vmatprep.subr.mxu0 0.0
      %1225 = vmatpush1.msra.mxu0 0.0
      %1226 = vmatprep.subr.mxu0 0.0
      %1227 = vmatpush1.msra.mxu0 0.0
      %1228 = vmatprep.subr.mxu0 0.0
      %1229 = vmatpush1.msra.mxu0 0.0
      %1230 = vmatprep.subr.mxu0 0.0
      %1231 = vmatpush1.msra.mxu0 0.0
      %1232 = vmatprep.subr.mxu0 0.0
      %1233 = vmatpush1.msra.mxu0 0.0
      %1234 = vmatprep.subr.mxu0 0.0
      %1235 = vmatpush1.msra.mxu0 0.0
      %1236 = vmatprep.subr.mxu0 0.0
      %1237 = vmatpush1.msra.mxu0 0.0
      %1238 = vmatprep.subr.mxu0 0.0
      %1239 = vmatpush1.msra.mxu0 0.0
      %1240 = vmatprep.subr.mxu0 0.0
      %1241 = vmatpush1.msra.mxu0 0.0
      %1242 = vmatprep.subr.mxu0 0.0
      %1243 = vmatpush1.msra.mxu0 0.0
      %1244 = vmatprep.subr.mxu0 0.0
      %1245 = vmatpush1.msra.mxu0 0.0
      %1246 = vmatprep.subr.mxu0 0.0
      %1247 = vmatpush1.msra.mxu0 0.0
      %1248 = vmatprep.subr.mxu0 0.0
      %1249 = vmatpush1.msra.mxu0 0.0
      %1250 = vmatprep.subr.mxu0 0.0
      %1251 = vmatpush1.msra.mxu0 0.0
      %1252 = vmatprep.subr.mxu0 0.0
      %1253 = vmatpush1.msra.mxu0 0.0
      %1254 = vmatprep.subr.mxu0 0.0
      %1255 = vmatpush1.msra.mxu0 0.0
      %1256 = vmatprep.subr.mxu0 0.0
      %1257 = vmatpush1.msra.mxu0 0.0
      %1258 = vmatprep.mubr.f32.mxu0 0.0
      %1259 = vmatmul.mubr.f32.gmra.mrb[0].mxu0 %v1192
      %v1260 = vpop.f32.mrb[0].mxu0
      %v1261 = vadd.f32 %v1187, %v1260
      %v1262 = vpop.f32.mrb[0].mxu0
      %1263 = vdwg.mxu0
      %v1264 = vadd.f32 %v1261, %v477
      %v1267 = vunpack.c.l.s4 1983009808
      %v1268 = vunpack.c.0.s8 %v1267
      %v1269 = vlaneseq
      %v1270 = vshrl.u32 %v1269, 7
      %v1271 = vsub.s32 %v1268, %v1270
      %v1272 = vrot.slane %v1264, %v1271
      %1273 = vrot.lane.b32.xlu0 %v1272, 32
      %v1274 = vpop.permute.xlu0 %1273
      %1276 = vst.msk [vmem:[%s235 + $0x2] sm:$0x3] %vm640, %v1274
      %1277 = vrot.lane.b32.xlu0 %v328, 80
      %v1278 = vpop.permute.xlu0 %1277
      %v1279 = vsel %vm329, %v1278, 0
      %1281 = vmatprep.subr.mxu0 0.0
      %1282 = vmatpush1.msra.mxu0 %v241
      %1283 = vmatprep.subr.mxu0 0.0
      %1284 = vmatpush1.msra.mxu0 %v242
      %1285 = vmatprep.subr.mxu0 0.0
      %1286 = vmatpush1.msra.mxu0 0.0
      %1287 = vmatprep.subr.mxu0 0.0
      %1288 = vmatpush1.msra.mxu0 0.0
      %1289 = vmatprep.subr.mxu0 0.0
      %1290 = vmatpush1.msra.mxu0 0.0
      %1291 = vmatprep.subr.mxu0 0.0
      %1292 = vmatpush1.msra.mxu0 0.0
      %1293 = vmatprep.subr.mxu0 0.0
      %1294 = vmatpush1.msra.mxu0 0.0
      %1295 = vmatprep.subr.mxu0 0.0
      %1296 = vmatpush1.msra.mxu0 0.0
      %1297 = vmatprep.subr.mxu0 0.0
      %1298 = vmatpush1.msra.mxu0 0.0
      %1299 = vmatprep.subr.mxu0 0.0
      %1300 = vmatpush1.msra.mxu0 0.0
      %1301 = vmatprep.subr.mxu0 0.0
      %1302 = vmatpush1.msra.mxu0 0.0
      %1303 = vmatprep.subr.mxu0 0.0
      %1304 = vmatpush1.msra.mxu0 0.0
      %1305 = vmatprep.subr.mxu0 0.0
      %1306 = vmatpush1.msra.mxu0 0.0
      %1307 = vmatprep.subr.mxu0 0.0
      %1308 = vmatpush1.msra.mxu0 0.0
      %1309 = vmatprep.subr.mxu0 0.0
      %1310 = vmatpush1.msra.mxu0 0.0
      %1311 = vmatprep.subr.mxu0 0.0
      %1312 = vmatpush1.msra.mxu0 0.0
      %1313 = vmatprep.subr.mxu0 0.0
      %1314 = vmatpush1.msra.mxu0 0.0
      %1315 = vmatprep.subr.mxu0 0.0
      %1316 = vmatpush1.msra.mxu0 0.0
      %1317 = vmatprep.subr.mxu0 0.0
      %1318 = vmatpush1.msra.mxu0 0.0
      %1319 = vmatprep.subr.mxu0 0.0
      %1320 = vmatpush1.msra.mxu0 0.0
      %1321 = vmatprep.subr.mxu0 0.0
      %1322 = vmatpush1.msra.mxu0 0.0
      %1323 = vmatprep.subr.mxu0 0.0
      %1324 = vmatpush1.msra.mxu0 0.0
      %1325 = vmatprep.subr.mxu0 0.0
      %1326 = vmatpush1.msra.mxu0 0.0
      %1327 = vmatprep.subr.mxu0 0.0
      %1328 = vmatpush1.msra.mxu0 0.0
      %1329 = vmatprep.subr.mxu0 0.0
      %1330 = vmatpush1.msra.mxu0 0.0
      %1331 = vmatprep.subr.mxu0 0.0
      %1332 = vmatpush1.msra.mxu0 0.0
      %1333 = vmatprep.subr.mxu0 0.0
      %1334 = vmatpush1.msra.mxu0 0.0
      %1335 = vmatprep.subr.mxu0 0.0
      %1336 = vmatpush1.msra.mxu0 0.0
      %1337 = vmatprep.subr.mxu0 0.0
      %1338 = vmatpush1.msra.mxu0 0.0
      %1339 = vmatprep.subr.mxu0 0.0
      %1340 = vmatpush1.msra.mxu0 0.0
      %1341 = vmatprep.subr.mxu0 0.0
      %1342 = vmatpush1.msra.mxu0 0.0
      %1343 = vmatprep.subr.mxu0 0.0
      %1344 = vmatpush1.msra.mxu0 0.0
      %1345 = vmatprep.mubr.f32.mxu0 0.0
      %1346 = vmatmul.mubr.f32.gmra.mrb[0].mxu0 %v1279
      %v1347 = vpop.f32.mrb[0].mxu0
      %v1348 = vadd.f32 0.0, %v1347
      %v1349 = vpop.f32.mrb[0].mxu0
      %1350 = vdwg.mxu0
      %1351 = vrot.lane.b32.xlu0 %v323, 80
      %v1352 = vpop.permute.xlu0 %1351
      %v1353 = vsel %vm329, %v1352, 0
      %1355 = vmatprep.subr.mxu0 0.0
      %1356 = vmatpush1.msra.mxu0 %v238
      %1357 = vmatprep.subr.mxu0 0.0
      %1358 = vmatpush1.msra.mxu0 %v239
      %1359 = vmatprep.subr.mxu0 0.0
      %1360 = vmatpush1.msra.mxu0 0.0
      %1361 = vmatprep.subr.mxu0 0.0
      %1362 = vmatpush1.msra.mxu0 0.0
      %1363 = vmatprep.subr.mxu0 0.0
      %1364 = vmatpush1.msra.mxu0 0.0
      %1365 = vmatprep.subr.mxu0 0.0
      %1366 = vmatpush1.msra.mxu0 0.0
      %1367 = vmatprep.subr.mxu0 0.0
      %1368 = vmatpush1.msra.mxu0 0.0
      %1369 = vmatprep.subr.mxu0 0.0
      %1370 = vmatpush1.msra.mxu0 0.0
      %1371 = vmatprep.subr.mxu0 0.0
      %1372 = vmatpush1.msra.mxu0 0.0
      %1373 = vmatprep.subr.mxu0 0.0
      %1374 = vmatpush1.msra.mxu0 0.0
      %1375 = vmatprep.subr.mxu0 0.0
      %1376 = vmatpush1.msra.mxu0 0.0
      %1377 = vmatprep.subr.mxu0 0.0
      %1378 = vmatpush1.msra.mxu0 0.0
      %1379 = vmatprep.subr.mxu0 0.0
      %1380 = vmatpush1.msra.mxu0 0.0
      %1381 = vmatprep.subr.mxu0 0.0
      %1382 = vmatpush1.msra.mxu0 0.0
      %1383 = vmatprep.subr.mxu0 0.0
      %1384 = vmatpush1.msra.mxu0 0.0
      %1385 = vmatprep.subr.mxu0 0.0
      %1386 = vmatpush1.msra.mxu0 0.0
      %1387 = vmatprep.subr.mxu0 0.0
      %1388 = vmatpush1.msra.mxu0 0.0
      %1389 = vmatprep.subr.mxu0 0.0
      %1390 = vmatpush1.msra.mxu0 0.0
      %1391 = vmatprep.subr.mxu0 0.0
      %1392 = vmatpush1.msra.mxu0 0.0
      %1393 = vmatprep.subr.mxu0 0.0
      %1394 = vmatpush1.msra.mxu0 0.0
      %1395 = vmatprep.subr.mxu0 0.0
      %1396 = vmatpush1.msra.mxu0 0.0
      %1397 = vmatprep.subr.mxu0 0.0
      %1398 = vmatpush1.msra.mxu0 0.0
      %1399 = vmatprep.subr.mxu0 0.0
      %1400 = vmatpush1.msra.mxu0 0.0
      %1401 = vmatprep.subr.mxu0 0.0
      %1402 = vmatpush1.msra.mxu0 0.0
      %1403 = vmatprep.subr.mxu0 0.0
      %1404 = vmatpush1.msra.mxu0 0.0
      %1405 = vmatprep.subr.mxu0 0.0
      %1406 = vmatpush1.msra.mxu0 0.0
      %1407 = vmatprep.subr.mxu0 0.0
      %1408 = vmatpush1.msra.mxu0 0.0
      %1409 = vmatprep.subr.mxu0 0.0
      %1410 = vmatpush1.msra.mxu0 0.0
      %1411 = vmatprep.subr.mxu0 0.0
      %1412 = vmatpush1.msra.mxu0 0.0
      %1413 = vmatprep.subr.mxu0 0.0
      %1414 = vmatpush1.msra.mxu0 0.0
      %1415 = vmatprep.subr.mxu0 0.0
      %1416 = vmatpush1.msra.mxu0 0.0
      %1417 = vmatprep.subr.mxu0 0.0
      %1418 = vmatpush1.msra.mxu0 0.0
      %1419 = vmatprep.mubr.f32.mxu0 0.0
      %1420 = vmatmul.mubr.f32.gmra.mrb[0].mxu0 %v1353
      %v1421 = vpop.f32.mrb[0].mxu0
      %v1422 = vadd.f32 %v1348, %v1421
      %v1423 = vpop.f32.mrb[0].mxu0
      %1424 = vdwg.mxu0
      %v1425 = vadd.f32 %v1422, %v477
      %v1428 = vunpack.c.l.s4 1983009808
      %v1429 = vunpack.c.0.s8 %v1428
      %v1430 = vlaneseq
      %v1431 = vshrl.u32 %v1430, 7
      %v1432 = vsub.s32 %v1429, %v1431
      %v1433 = vrot.slane %v1425, %v1432
      %1434 = vrot.lane.b32.xlu0 %v1433, 64
      %v1435 = vpop.permute.xlu0 %1434
      %1437 = vst.msk [vmem:[%s235 + $0x2] sm:$0x3] %vm802, %v1435
      %1438 = vrot.lane.b32.xlu0 %v482, 80
      %v1439 = vpop.permute.xlu0 %1438
      %v1440 = vsel %vm329, %v1439, 0
      %1442 = vmatprep.subr.mxu0 0.0
      %1443 = vmatpush1.msra.mxu0 %v241
      %1444 = vmatprep.subr.mxu0 0.0
      %1445 = vmatpush1.msra.mxu0 %v242
      %1446 = vmatprep.subr.mxu0 0.0
      %1447 = vmatpush1.msra.mxu0 0.0
      %1448 = vmatprep.subr.mxu0 0.0
      %1449 = vmatpush1.msra.mxu0 0.0
      %1450 = vmatprep.subr.mxu0 0.0
      %1451 = vmatpush1.msra.mxu0 0.0
      %1452 = vmatprep.subr.mxu0 0.0
      %1453 = vmatpush1.msra.mxu0 0.0
      %1454 = vmatprep.subr.mxu0 0.0
      %1455 = vmatpush1.msra.mxu0 0.0
      %1456 = vmatprep.subr.mxu0 0.0
      %1457 = vmatpush1.msra.mxu0 0.0
      %1458 = vmatprep.subr.mxu0 0.0
      %1459 = vmatpush1.msra.mxu0 0.0
      %1460 = vmatprep.subr.mxu0 0.0
      %1461 = vmatpush1.msra.mxu0 0.0
      %1462 = vmatprep.subr.mxu0 0.0
      %1463 = vmatpush1.msra.mxu0 0.0
      %1464 = vmatprep.subr.mxu0 0.0
      %1465 = vmatpush1.msra.mxu0 0.0
      %1466 = vmatprep.subr.mxu0 0.0
      %1467 = vmatpush1.msra.mxu0 0.0
      %1468 = vmatprep.subr.mxu0 0.0
      %1469 = vmatpush1.msra.mxu0 0.0
      %1470 = vmatprep.subr.mxu0 0.0
      %1471 = vmatpush1.msra.mxu0 0.0
      %1472 = vmatprep.subr.mxu0 0.0
      %1473 = vmatpush1.msra.mxu0 0.0
      %1474 = vmatprep.subr.mxu0 0.0
      %1475 = vmatpush1.msra.mxu0 0.0
      %1476 = vmatprep.subr.mxu0 0.0
      %1477 = vmatpush1.msra.mxu0 0.0
      %1478 = vmatprep.subr.mxu0 0.0
      %1479 = vmatpush1.msra.mxu0 0.0
      %1480 = vmatprep.subr.mxu0 0.0
      %1481 = vmatpush1.msra.mxu0 0.0
      %1482 = vmatprep.subr.mxu0 0.0
      %1483 = vmatpush1.msra.mxu0 0.0
      %1484 = vmatprep.subr.mxu0 0.0
      %1485 = vmatpush1.msra.mxu0 0.0
      %1486 = vmatprep.subr.mxu0 0.0
      %1487 = vmatpush1.msra.mxu0 0.0
      %1488 = vmatprep.subr.mxu0 0.0
      %1489 = vmatpush1.msra.mxu0 0.0
      %1490 = vmatprep.subr.mxu0 0.0
      %1491 = vmatpush1.msra.mxu0 0.0
      %1492 = vmatprep.subr.mxu0 0.0
      %1493 = vmatpush1.msra.mxu0 0.0
      %1494 = vmatprep.subr.mxu0 0.0
      %1495 = vmatpush1.msra.mxu0 0.0
      %1496 = vmatprep.subr.mxu0 0.0
      %1497 = vmatpush1.msra.mxu0 0.0
      %1498 = vmatprep.subr.mxu0 0.0
      %1499 = vmatpush1.msra.mxu0 0.0
      %1500 = vmatprep.subr.mxu0 0.0
      %1501 = vmatpush1.msra.mxu0 0.0
      %1502 = vmatprep.subr.mxu0 0.0
      %1503 = vmatpush1.msra.mxu0 0.0
      %1504 = vmatprep.subr.mxu0 0.0
      %1505 = vmatpush1.msra.mxu0 0.0
      %1506 = vmatprep.mubr.f32.mxu0 0.0
      %1507 = vmatmul.mubr.f32.gmra.mrb[0].mxu0 %v1440
      %v1508 = vpop.f32.mrb[0].mxu0
      %v1509 = vadd.f32 0.0, %v1508
      %v1510 = vpop.f32.mrb[0].mxu0
      %1511 = vdwg.mxu0
      %1512 = vrot.lane.b32.xlu0 %v555, 80
      %v1513 = vpop.permute.xlu0 %1512
      %v1514 = vsel %vm329, %v1513, 0
      %1516 = vmatprep.subr.mxu0 0.0
      %1517 = vmatpush1.msra.mxu0 %v238
      %1518 = vmatprep.subr.mxu0 0.0
      %1519 = vmatpush1.msra.mxu0 %v239
      %1520 = vmatprep.subr.mxu0 0.0
      %1521 = vmatpush1.msra.mxu0 0.0
      %1522 = vmatprep.subr.mxu0 0.0
      %1523 = vmatpush1.msra.mxu0 0.0
      %1524 = vmatprep.subr.mxu0 0.0
      %1525 = vmatpush1.msra.mxu0 0.0
      %1526 = vmatprep.subr.mxu0 0.0
      %1527 = vmatpush1.msra.mxu0 0.0
      %1528 = vmatprep.subr.mxu0 0.0
      %1529 = vmatpush1.msra.mxu0 0.0
      %1530 = vmatprep.subr.mxu0 0.0
      %1531 = vmatpush1.msra.mxu0 0.0
      %1532 = vmatprep.subr.mxu0 0.0
      %1533 = vmatpush1.msra.mxu0 0.0
      %1534 = vmatprep.subr.mxu0 0.0
      %1535 = vmatpush1.msra.mxu0 0.0
      %1536 = vmatprep.subr.mxu0 0.0
      %1537 = vmatpush1.msra.mxu0 0.0
      %1538 = vmatprep.subr.mxu0 0.0
      %1539 = vmatpush1.msra.mxu0 0.0
      %1540 = vmatprep.subr.mxu0 0.0
      %1541 = vmatpush1.msra.mxu0 0.0
      %1542 = vmatprep.subr.mxu0 0.0
      %1543 = vmatpush1.msra.mxu0 0.0
      %1544 = vmatprep.subr.mxu0 0.0
      %1545 = vmatpush1.msra.mxu0 0.0
      %1546 = vmatprep.subr.mxu0 0.0
      %1547 = vmatpush1.msra.mxu0 0.0
      %1548 = vmatprep.subr.mxu0 0.0
      %1549 = vmatpush1.msra.mxu0 0.0
      %1550 = vmatprep.subr.mxu0 0.0
      %1551 = vmatpush1.msra.mxu0 0.0
      %1552 = vmatprep.subr.mxu0 0.0
      %1553 = vmatpush1.msra.mxu0 0.0
      %1554 = vmatprep.subr.mxu0 0.0
      %1555 = vmatpush1.msra.mxu0 0.0
      %1556 = vmatprep.subr.mxu0 0.0
      %1557 = vmatpush1.msra.mxu0 0.0
      %1558 = vmatprep.subr.mxu0 0.0
      %1559 = vmatpush1.msra.mxu0 0.0
      %1560 = vmatprep.subr.mxu0 0.0
      %1561 = vmatpush1.msra.mxu0 0.0
      %1562 = vmatprep.subr.mxu0 0.0
      %1563 = vmatpush1.msra.mxu0 0.0
      %1564 = vmatprep.subr.mxu0 0.0
      %1565 = vmatpush1.msra.mxu0 0.0
      %1566 = vmatprep.subr.mxu0 0.0
      %1567 = vmatpush1.msra.mxu0 0.0
      %1568 = vmatprep.subr.mxu0 0.0
      %1569 = vmatpush1.msra.mxu0 0.0
      %1570 = vmatprep.subr.mxu0 0.0
      %1571 = vmatpush1.msra.mxu0 0.0
      %1572 = vmatprep.subr.mxu0 0.0
      %1573 = vmatpush1.msra.mxu0 0.0
      %1574 = vmatprep.subr.mxu0 0.0
      %1575 = vmatpush1.msra.mxu0 0.0
      %1576 = vmatprep.subr.mxu0 0.0
      %1577 = vmatpush1.msra.mxu0 0.0
      %1578 = vmatprep.subr.mxu0 0.0
      %1579 = vmatpush1.msra.mxu0 0.0
      %1580 = vmatprep.mubr.f32.mxu0 0.0
      %1581 = vmatmul.mubr.f32.gmra.mrb[0].mxu0 %v1514
      %v1582 = vpop.f32.mrb[0].mxu0
      %v1583 = vadd.f32 %v1509, %v1582
      %v1584 = vpop.f32.mrb[0].mxu0
      %1585 = vdwg.mxu0
      %v1586 = vadd.f32 %v1583, %v477
      %v1589 = vunpack.c.l.s4 1983009808
      %v1590 = vunpack.c.0.s8 %v1589
      %v1591 = vlaneseq
      %v1592 = vshrl.u32 %v1591, 7
      %v1593 = vsub.s32 %v1590, %v1592
      %v1594 = vrot.slane %v1586, %v1593
      %1595 = vrot.lane.b32.xlu0 %v1594, 96
      %v1596 = vpop.permute.xlu0 %1595
      %1598 = vst.msk [vmem:[%s235 + $0x2] sm:$0x3] %vm964, %v1596
      %1599 = vrot.lane.b32.xlu0 %v328, 64
      %v1600 = vpop.permute.xlu0 %1599
      %v1601 = vsel %vm329, %v1600, 0
      %1603 = vmatprep.subr.mxu0 0.0
      %1604 = vmatpush1.msra.mxu0 %v241
      %1605 = vmatprep.subr.mxu0 0.0
      %1606 = vmatpush1.msra.mxu0 %v242
      %1607 = vmatprep.subr.mxu0 0.0
      %1608 = vmatpush1.msra.mxu0 0.0
      %1609 = vmatprep.subr.mxu0 0.0
      %1610 = vmatpush1.msra.mxu0 0.0
      %1611 = vmatprep.subr.mxu0 0.0
      %1612 = vmatpush1.msra.mxu0 0.0
      %1613 = vmatprep.subr.mxu0 0.0
      %1614 = vmatpush1.msra.mxu0 0.0
      %1615 = vmatprep.subr.mxu0 0.0
      %1616 = vmatpush1.msra.mxu0 0.0
      %1617 = vmatprep.subr.mxu0 0.0
      %1618 = vmatpush1.msra.mxu0 0.0
      %1619 = vmatprep.subr.mxu0 0.0
      %1620 = vmatpush1.msra.mxu0 0.0
      %1621 = vmatprep.subr.mxu0 0.0
      %1622 = vmatpush1.msra.mxu0 0.0
      %1623 = vmatprep.subr.mxu0 0.0
      %1624 = vmatpush1.msra.mxu0 0.0
      %1625 = vmatprep.subr.mxu0 0.0
      %1626 = vmatpush1.msra.mxu0 0.0
      %1627 = vmatprep.subr.mxu0 0.0
      %1628 = vmatpush1.msra.mxu0 0.0
      %1629 = vmatprep.subr.mxu0 0.0
      %1630 = vmatpush1.msra.mxu0 0.0
      %1631 = vmatprep.subr.mxu0 0.0
      %1632 = vmatpush1.msra.mxu0 0.0
      %1633 = vmatprep.subr.mxu0 0.0
      %1634 = vmatpush1.msra.mxu0 0.0
      %1635 = vmatprep.subr.mxu0 0.0
      %1636 = vmatpush1.msra.mxu0 0.0
      %1637 = vmatprep.subr.mxu0 0.0
      %1638 = vmatpush1.msra.mxu0 0.0
      %1639 = vmatprep.subr.mxu0 0.0
      %1640 = vmatpush1.msra.mxu0 0.0
      %1641 = vmatprep.subr.mxu0 0.0
      %1642 = vmatpush1.msra.mxu0 0.0
      %1643 = vmatprep.subr.mxu0 0.0
      %1644 = vmatpush1.msra.mxu0 0.0
      %1645 = vmatprep.subr.mxu0 0.0
      %1646 = vmatpush1.msra.mxu0 0.0
      %1647 = vmatprep.subr.mxu0 0.0
      %1648 = vmatpush1.msra.mxu0 0.0
      %1649 = vmatprep.subr.mxu0 0.0
      %1650 = vmatpush1.msra.mxu0 0.0
      %1651 = vmatprep.subr.mxu0 0.0
      %1652 = vmatpush1.msra.mxu0 0.0
      %1653 = vmatprep.subr.mxu0 0.0
      %1654 = vmatpush1.msra.mxu0 0.0
      %1655 = vmatprep.subr.mxu0 0.0
      %1656 = vmatpush1.msra.mxu0 0.0
      %1657 = vmatprep.subr.mxu0 0.0
      %1658 = vmatpush1.msra.mxu0 0.0
      %1659 = vmatprep.subr.mxu0 0.0
      %1660 = vmatpush1.msra.mxu0 0.0
      %1661 = vmatprep.subr.mxu0 0.0
      %1662 = vmatpush1.msra.mxu0 0.0
      %1663 = vmatprep.subr.mxu0 0.0
      %1664 = vmatpush1.msra.mxu0 0.0
      %1665 = vmatprep.subr.mxu0 0.0
      %1666 = vmatpush1.msra.mxu0 0.0
      %1667 = vmatprep.mubr.f32.mxu0 0.0
      %1668 = vmatmul.mubr.f32.gmra.mrb[0].mxu0 %v1601
      %v1669 = vpop.f32.mrb[0].mxu0
      %v1670 = vadd.f32 0.0, %v1669
      %v1671 = vpop.f32.mrb[0].mxu0
      %1672 = vdwg.mxu0
      %1673 = vrot.lane.b32.xlu0 %v323, 64
      %v1674 = vpop.permute.xlu0 %1673
      %v1675 = vsel %vm329, %v1674, 0
      %1677 = vmatprep.subr.mxu0 0.0
      %1678 = vmatpush1.msra.mxu0 %v238
      %1679 = vmatprep.subr.mxu0 0.0
      %1680 = vmatpush1.msra.mxu0 %v239
      %1681 = vmatprep.subr.mxu0 0.0
      %1682 = vmatpush1.msra.mxu0 0.0
      %1683 = vmatprep.subr.mxu0 0.0
      %1684 = vmatpush1.msra.mxu0 0.0
      %1685 = vmatprep.subr.mxu0 0.0
      %1686 = vmatpush1.msra.mxu0 0.0
      %1687 = vmatprep.subr.mxu0 0.0
      %1688 = vmatpush1.msra.mxu0 0.0
      %1689 = vmatprep.subr.mxu0 0.0
      %1690 = vmatpush1.msra.mxu0 0.0
      %1691 = vmatprep.subr.mxu0 0.0
      %1692 = vmatpush1.msra.mxu0 0.0
      %1693 = vmatprep.subr.mxu0 0.0
      %1694 = vmatpush1.msra.mxu0 0.0
      %1695 = vmatprep.subr.mxu0 0.0
      %1696 = vmatpush1.msra.mxu0 0.0
      %1697 = vmatprep.subr.mxu0 0.0
      %1698 = vmatpush1.msra.mxu0 0.0
      %1699 = vmatprep.subr.mxu0 0.0
      %1700 = vmatpush1.msra.mxu0 0.0
      %1701 = vmatprep.subr.mxu0 0.0
      %1702 = vmatpush1.msra.mxu0 0.0
      %1703 = vmatprep.subr.mxu0 0.0
      %1704 = vmatpush1.msra.mxu0 0.0
      %1705 = vmatprep.subr.mxu0 0.0
      %1706 = vmatpush1.msra.mxu0 0.0
      %1707 = vmatprep.subr.mxu0 0.0
      %1708 = vmatpush1.msra.mxu0 0.0
      %1709 = vmatprep.subr.mxu0 0.0
      %1710 = vmatpush1.msra.mxu0 0.0
      %1711 = vmatprep.subr.mxu0 0.0
      %1712 = vmatpush1.msra.mxu0 0.0
      %1713 = vmatprep.subr.mxu0 0.0
      %1714 = vmatpush1.msra.mxu0 0.0
      %1715 = vmatprep.subr.mxu0 0.0
      %1716 = vmatpush1.msra.mxu0 0.0
      %1717 = vmatprep.subr.mxu0 0.0
      %1718 = vmatpush1.msra.mxu0 0.0
      %1719 = vmatprep.subr.mxu0 0.0
      %1720 = vmatpush1.msra.mxu0 0.0
      %1721 = vmatprep.subr.mxu0 0.0
      %1722 = vmatpush1.msra.mxu0 0.0
      %1723 = vmatprep.subr.mxu0 0.0
      %1724 = vmatpush1.msra.mxu0 0.0
      %1725 = vmatprep.subr.mxu0 0.0
      %1726 = vmatpush1.msra.mxu0 0.0
      %1727 = vmatprep.subr.mxu0 0.0
      %1728 = vmatpush1.msra.mxu0 0.0
      %1729 = vmatprep.subr.mxu0 0.0
      %1730 = vmatpush1.msra.mxu0 0.0
      %1731 = vmatprep.subr.mxu0 0.0
      %1732 = vmatpush1.msra.mxu0 0.0
      %1733 = vmatprep.subr.mxu0 0.0
      %1734 = vmatpush1.msra.mxu0 0.0
      %1735 = vmatprep.subr.mxu0 0.0
      %1736 = vmatpush1.msra.mxu0 0.0
      %1737 = vmatprep.subr.mxu0 0.0
      %1738 = vmatpush1.msra.mxu0 0.0
      %1739 = vmatprep.subr.mxu0 0.0
      %1740 = vmatpush1.msra.mxu0 0.0
      %1741 = vmatprep.mubr.f32.mxu0 0.0
      %1742 = vmatmul.mubr.f32.gmra.mrb[0].mxu0 %v1675
      %v1743 = vpop.f32.mrb[0].mxu0
      %v1744 = vadd.f32 %v1670, %v1743
      %v1745 = vpop.f32.mrb[0].mxu0
      %1746 = vdwg.mxu0
      %v1747 = vadd.f32 %v1744, %v477
      %1748 = vst.msk [vmem:[%s235 + $0x4] sm:$0x3] %vm480, %v1747
      %1749 = vrot.lane.b32.xlu0 %v482, 64
      %v1750 = vpop.permute.xlu0 %1749
      %v1751 = vsel %vm329, %v1750, 0
      %1753 = vmatprep.subr.mxu0 0.0
      %1754 = vmatpush1.msra.mxu0 %v241
      %1755 = vmatprep.subr.mxu0 0.0
      %1756 = vmatpush1.msra.mxu0 %v242
      %1757 = vmatprep.subr.mxu0 0.0
      %1758 = vmatpush1.msra.mxu0 0.0
      %1759 = vmatprep.subr.mxu0 0.0
      %1760 = vmatpush1.msra.mxu0 0.0
      %1761 = vmatprep.subr.mxu0 0.0
      %1762 = vmatpush1.msra.mxu0 0.0
      %1763 = vmatprep.subr.mxu0 0.0
      %1764 = vmatpush1.msra.mxu0 0.0
      %1765 = vmatprep.subr.mxu0 0.0
      %1766 = vmatpush1.msra.mxu0 0.0
      %1767 = vmatprep.subr.mxu0 0.0
      %1768 = vmatpush1.msra.mxu0 0.0
      %1769 = vmatprep.subr.mxu0 0.0
      %1770 = vmatpush1.msra.mxu0 0.0
      %1771 = vmatprep.subr.mxu0 0.0
      %1772 = vmatpush1.msra.mxu0 0.0
      %1773 = vmatprep.subr.mxu0 0.0
      %1774 = vmatpush1.msra.mxu0 0.0
      %1775 = vmatprep.subr.mxu0 0.0
      %1776 = vmatpush1.msra.mxu0 0.0
      %1777 = vmatprep.subr.mxu0 0.0
      %1778 = vmatpush1.msra.mxu0 0.0
      %1779 = vmatprep.subr.mxu0 0.0
      %1780 = vmatpush1.msra.mxu0 0.0
      %1781 = vmatprep.subr.mxu0 0.0
      %1782 = vmatpush1.msra.mxu0 0.0
      %1783 = vmatprep.subr.mxu0 0.0
      %1784 = vmatpush1.msra.mxu0 0.0
      %1785 = vmatprep.subr.mxu0 0.0
      %1786 = vmatpush1.msra.mxu0 0.0
      %1787 = vmatprep.subr.mxu0 0.0
      %1788 = vmatpush1.msra.mxu0 0.0
      %1789 = vmatprep.subr.mxu0 0.0
      %1790 = vmatpush1.msra.mxu0 0.0
      %1791 = vmatprep.subr.mxu0 0.0
      %1792 = vmatpush1.msra.mxu0 0.0
      %1793 = vmatprep.subr.mxu0 0.0
      %1794 = vmatpush1.msra.mxu0 0.0
      %1795 = vmatprep.subr.mxu0 0.0
      %1796 = vmatpush1.msra.mxu0 0.0
      %1797 = vmatprep.subr.mxu0 0.0
      %1798 = vmatpush1.msra.mxu0 0.0
      %1799 = vmatprep.subr.mxu0 0.0
      %1800 = vmatpush1.msra.mxu0 0.0
      %1801 = vmatprep.subr.mxu0 0.0
      %1802 = vmatpush1.msra.mxu0 0.0
      %1803 = vmatprep.subr.mxu0 0.0
      %1804 = vmatpush1.msra.mxu0 0.0
      %1805 = vmatprep.subr.mxu0 0.0
      %1806 = vmatpush1.msra.mxu0 0.0
      %1807 = vmatprep.subr.mxu0 0.0
      %1808 = vmatpush1.msra.mxu0 0.0
      %1809 = vmatprep.subr.mxu0 0.0
      %1810 = vmatpush1.msra.mxu0 0.0
      %1811 = vmatprep.subr.mxu0 0.0
      %1812 = vmatpush1.msra.mxu0 0.0
      %1813 = vmatprep.subr.mxu0 0.0
      %1814 = vmatpush1.msra.mxu0 0.0
      %1815 = vmatprep.subr.mxu0 0.0
      %1816 = vmatpush1.msra.mxu0 0.0
      %1817 = vmatprep.mubr.f32.mxu0 0.0
      %1818 = vmatmul.mubr.f32.gmra.mrb[0].mxu0 %v1751
      %v1819 = vpop.f32.mrb[0].mxu0
      %v1820 = vadd.f32 0.0, %v1819
      %v1821 = vpop.f32.mrb[0].mxu0
      %1822 = vdwg.mxu0
      %1823 = vrot.lane.b32.xlu0 %v555, 64
      %v1824 = vpop.permute.xlu0 %1823
      %v1825 = vsel %vm329, %v1824, 0
      %1827 = vmatprep.subr.mxu0 0.0
      %1828 = vmatpush1.msra.mxu0 %v238
      %1829 = vmatprep.subr.mxu0 0.0
      %1830 = vmatpush1.msra.mxu0 %v239
      %1831 = vmatprep.subr.mxu0 0.0
      %1832 = vmatpush1.msra.mxu0 0.0
      %1833 = vmatprep.subr.mxu0 0.0
      %1834 = vmatpush1.msra.mxu0 0.0
      %1835 = vmatprep.subr.mxu0 0.0
      %1836 = vmatpush1.msra.mxu0 0.0
      %1837 = vmatprep.subr.mxu0 0.0
      %1838 = vmatpush1.msra.mxu0 0.0
      %1839 = vmatprep.subr.mxu0 0.0
      %1840 = vmatpush1.msra.mxu0 0.0
      %1841 = vmatprep.subr.mxu0 0.0
      %1842 = vmatpush1.msra.mxu0 0.0
      %1843 = vmatprep.subr.mxu0 0.0
      %1844 = vmatpush1.msra.mxu0 0.0
      %1845 = vmatprep.subr.mxu0 0.0
      %1846 = vmatpush1.msra.mxu0 0.0
      %1847 = vmatprep.subr.mxu0 0.0
      %1848 = vmatpush1.msra.mxu0 0.0
      %1849 = vmatprep.subr.mxu0 0.0
      %1850 = vmatpush1.msra.mxu0 0.0
      %1851 = vmatprep.subr.mxu0 0.0
      %1852 = vmatpush1.msra.mxu0 0.0
      %1853 = vmatprep.subr.mxu0 0.0
      %1854 = vmatpush1.msra.mxu0 0.0
      %1855 = vmatprep.subr.mxu0 0.0
      %1856 = vmatpush1.msra.mxu0 0.0
      %1857 = vmatprep.subr.mxu0 0.0
      %1858 = vmatpush1.msra.mxu0 0.0
      %1859 = vmatprep.subr.mxu0 0.0
      %1860 = vmatpush1.msra.mxu0 0.0
      %1861 = vmatprep.subr.mxu0 0.0
      %1862 = vmatpush1.msra.mxu0 0.0
      %1863 = vmatprep.subr.mxu0 0.0
      %1864 = vmatpush1.msra.mxu0 0.0
      %1865 = vmatprep.subr.mxu0 0.0
      %1866 = vmatpush1.msra.mxu0 0.0
      %1867 = vmatprep.subr.mxu0 0.0
      %1868 = vmatpush1.msra.mxu0 0.0
      %1869 = vmatprep.subr.mxu0 0.0
      %1870 = vmatpush1.msra.mxu0 0.0
      %1871 = vmatprep.subr.mxu0 0.0
      %1872 = vmatpush1.msra.mxu0 0.0
      %1873 = vmatprep.subr.mxu0 0.0
      %1874 = vmatpush1.msra.mxu0 0.0
      %1875 = vmatprep.subr.mxu0 0.0
      %1876 = vmatpush1.msra.mxu0 0.0
      %1877 = vmatprep.subr.mxu0 0.0
      %1878 = vmatpush1.msra.mxu0 0.0
      %1879 = vmatprep.subr.mxu0 0.0
      %1880 = vmatpush1.msra.mxu0 0.0
      %1881 = vmatprep.subr.mxu0 0.0
      %1882 = vmatpush1.msra.mxu0 0.0
      %1883 = vmatprep.subr.mxu0 0.0
      %1884 = vmatpush1.msra.mxu0 0.0
      %1885 = vmatprep.subr.mxu0 0.0
      %1886 = vmatpush1.msra.mxu0 0.0
      %1887 = vmatprep.subr.mxu0 0.0
      %1888 = vmatpush1.msra.mxu0 0.0
      %1889 = vmatprep.subr.mxu0 0.0
      %1890 = vmatpush1.msra.mxu0 0.0
      %1891 = vmatprep.mubr.f32.mxu0 0.0
      %1892 = vmatmul.mubr.f32.gmra.mrb[0].mxu0 %v1825
      %v1893 = vpop.f32.mrb[0].mxu0
      %v1894 = vadd.f32 %v1820, %v1893
      %v1895 = vpop.f32.mrb[0].mxu0
      %1896 = vdwg.mxu0
      %v1897 = vadd.f32 %v1894, %v477
      %v1900 = vunpack.c.l.s4 1983009808
      %v1901 = vunpack.c.0.s8 %v1900
      %v1902 = vlaneseq
      %v1903 = vshrl.u32 %v1902, 7
      %v1904 = vsub.s32 %v1901, %v1903
      %v1905 = vrot.slane %v1897, %v1904
      %1906 = vrot.lane.b32.xlu0 %v1905, 32
      %v1907 = vpop.permute.xlu0 %1906
      %1909 = vst.msk [vmem:[%s235 + $0x4] sm:$0x3] %vm640, %v1907
      %1910 = vrot.lane.b32.xlu0 %v328, 48
      %v1911 = vpop.permute.xlu0 %1910
      %v1912 = vsel %vm329, %v1911, 0
      %1914 = vmatprep.subr.mxu0 0.0
      %1915 = vmatpush1.msra.mxu0 %v241
      %1916 = vmatprep.subr.mxu0 0.0
      %1917 = vmatpush1.msra.mxu0 %v242
      %1918 = vmatprep.subr.mxu0 0.0
      %1919 = vmatpush1.msra.mxu0 0.0
      %1920 = vmatprep.subr.mxu0 0.0
      %1921 = vmatpush1.msra.mxu0 0.0
      %1922 = vmatprep.subr.mxu0 0.0
      %1923 = vmatpush1.msra.mxu0 0.0
      %1924 = vmatprep.subr.mxu0 0.0
      %1925 = vmatpush1.msra.mxu0 0.0
      %1926 = vmatprep.subr.mxu0 0.0
      %1927 = vmatpush1.msra.mxu0 0.0
      %1928 = vmatprep.subr.mxu0 0.0
      %1929 = vmatpush1.msra.mxu0 0.0
      %1930 = vmatprep.subr.mxu0 0.0
      %1931 = vmatpush1.msra.mxu0 0.0
      %1932 = vmatprep.subr.mxu0 0.0
      %1933 = vmatpush1.msra.mxu0 0.0
      %1934 = vmatprep.subr.mxu0 0.0
      %1935 = vmatpush1.msra.mxu0 0.0
      %1936 = vmatprep.subr.mxu0 0.0
      %1937 = vmatpush1.msra.mxu0 0.0
      %1938 = vmatprep.subr.mxu0 0.0
      %1939 = vmatpush1.msra.mxu0 0.0
      %1940 = vmatprep.subr.mxu0 0.0
      %1941 = vmatpush1.msra.mxu0 0.0
      %1942 = vmatprep.subr.mxu0 0.0
      %1943 = vmatpush1.msra.mxu0 0.0
      %1944 = vmatprep.subr.mxu0 0.0
      %1945 = vmatpush1.msra.mxu0 0.0
      %1946 = vmatprep.subr.mxu0 0.0
      %1947 = vmatpush1.msra.mxu0 0.0
      %1948 = vmatprep.subr.mxu0 0.0
      %1949 = vmatpush1.msra.mxu0 0.0
      %1950 = vmatprep.subr.mxu0 0.0
      %1951 = vmatpush1.msra.mxu0 0.0
      %1952 = vmatprep.subr.mxu0 0.0
      %1953 = vmatpush1.msra.mxu0 0.0
      %1954 = vmatprep.subr.mxu0 0.0
      %1955 = vmatpush1.msra.mxu0 0.0
      %1956 = vmatprep.subr.mxu0 0.0
      %1957 = vmatpush1.msra.mxu0 0.0
      %1958 = vmatprep.subr.mxu0 0.0
      %1959 = vmatpush1.msra.mxu0 0.0
      %1960 = vmatprep.subr.mxu0 0.0
      %1961 = vmatpush1.msra.mxu0 0.0
      %1962 = vmatprep.subr.mxu0 0.0
      %1963 = vmatpush1.msra.mxu0 0.0
      %1964 = vmatprep.subr.mxu0 0.0
      %1965 = vmatpush1.msra.mxu0 0.0
      %1966 = vmatprep.subr.mxu0 0.0
      %1967 = vmatpush1.msra.mxu0 0.0
      %1968 = vmatprep.subr.mxu0 0.0
      %1969 = vmatpush1.msra.mxu0 0.0
      %1970 = vmatprep.subr.mxu0 0.0
      %1971 = vmatpush1.msra.mxu0 0.0
      %1972 = vmatprep.subr.mxu0 0.0
      %1973 = vmatpush1.msra.mxu0 0.0
      %1974 = vmatprep.subr.mxu0 0.0
      %1975 = vmatpush1.msra.mxu0 0.0
      %1976 = vmatprep.subr.mxu0 0.0
      %1977 = vmatpush1.msra.mxu0 0.0
      %1978 = vmatprep.mubr.f32.mxu0 0.0
      %1979 = vmatmul.mubr.f32.gmra.mrb[0].mxu0 %v1912
      %v1980 = vpop.f32.mrb[0].mxu0
      %v1981 = vadd.f32 0.0, %v1980
      %v1982 = vpop.f32.mrb[0].mxu0
      %1983 = vdwg.mxu0
      %1984 = vrot.lane.b32.xlu0 %v323, 48
      %v1985 = vpop.permute.xlu0 %1984
      %v1986 = vsel %vm329, %v1985, 0
      %1988 = vmatprep.subr.mxu0 0.0
      %1989 = vmatpush1.msra.mxu0 %v238
      %1990 = vmatprep.subr.mxu0 0.0
      %1991 = vmatpush1.msra.mxu0 %v239
      %1992 = vmatprep.subr.mxu0 0.0
      %1993 = vmatpush1.msra.mxu0 0.0
      %1994 = vmatprep.subr.mxu0 0.0
      %1995 = vmatpush1.msra.mxu0 0.0
      %1996 = vmatprep.subr.mxu0 0.0
      %1997 = vmatpush1.msra.mxu0 0.0
      %1998 = vmatprep.subr.mxu0 0.0
      %1999 = vmatpush1.msra.mxu0 0.0
      %2000 = vmatprep.subr.mxu0 0.0
      %2001 = vmatpush1.msra.mxu0 0.0
      %2002 = vmatprep.subr.mxu0 0.0
      %2003 = vmatpush1.msra.mxu0 0.0
      %2004 = vmatprep.subr.mxu0 0.0
      %2005 = vmatpush1.msra.mxu0 0.0
      %2006 = vmatprep.subr.mxu0 0.0
      %2007 = vmatpush1.msra.mxu0 0.0
      %2008 = vmatprep.subr.mxu0 0.0
      %2009 = vmatpush1.msra.mxu0 0.0
      %2010 = vmatprep.subr.mxu0 0.0
      %2011 = vmatpush1.msra.mxu0 0.0
      %2012 = vmatprep.subr.mxu0 0.0
      %2013 = vmatpush1.msra.mxu0 0.0
      %2014 = vmatprep.subr.mxu0 0.0
      %2015 = vmatpush1.msra.mxu0 0.0
      %2016 = vmatprep.subr.mxu0 0.0
      %2017 = vmatpush1.msra.mxu0 0.0
      %2018 = vmatprep.subr.mxu0 0.0
      %2019 = vmatpush1.msra.mxu0 0.0
      %2020 = vmatprep.subr.mxu0 0.0
      %2021 = vmatpush1.msra.mxu0 0.0
      %2022 = vmatprep.subr.mxu0 0.0
      %2023 = vmatpush1.msra.mxu0 0.0
      %2024 = vmatprep.subr.mxu0 0.0
      %2025 = vmatpush1.msra.mxu0 0.0
      %2026 = vmatprep.subr.mxu0 0.0
      %2027 = vmatpush1.msra.mxu0 0.0
      %2028 = vmatprep.subr.mxu0 0.0
      %2029 = vmatpush1.msra.mxu0 0.0
      %2030 = vmatprep.subr.mxu0 0.0
      %2031 = vmatpush1.msra.mxu0 0.0
      %2032 = vmatprep.subr.mxu0 0.0
      %2033 = vmatpush1.msra.mxu0 0.0
      %2034 = vmatprep.subr.mxu0 0.0
      %2035 = vmatpush1.msra.mxu0 0.0
      %2036 = vmatprep.subr.mxu0 0.0
      %2037 = vmatpush1.msra.mxu0 0.0
      %2038 = vmatprep.subr.mxu0 0.0
      %2039 = vmatpush1.msra.mxu0 0.0
      %2040 = vmatprep.subr.mxu0 0.0
      %2041 = vmatpush1.msra.mxu0 0.0
      %2042 = vmatprep.subr.mxu0 0.0
      %2043 = vmatpush1.msra.mxu0 0.0
      %2044 = vmatprep.subr.mxu0 0.0
      %2045 = vmatpush1.msra.mxu0 0.0
      %2046 = vmatprep.subr.mxu0 0.0
      %2047 = vmatpush1.msra.mxu0 0.0
      %2048 = vmatprep.subr.mxu0 0.0
      %2049 = vmatpush1.msra.mxu0 0.0
      %2050 = vmatprep.subr.mxu0 0.0
      %2051 = vmatpush1.msra.mxu0 0.0
      %2052 = vmatprep.mubr.f32.mxu0 0.0
      %2053 = vmatmul.mubr.f32.gmra.mrb[0].mxu0 %v1986
      %v2054 = vpop.f32.mrb[0].mxu0
      %v2055 = vadd.f32 %v1981, %v2054
      %v2056 = vpop.f32.mrb[0].mxu0
      %2057 = vdwg.mxu0
      %v2058 = vadd.f32 %v2055, %v477
      %v2061 = vunpack.c.l.s4 1983009808
      %v2062 = vunpack.c.0.s8 %v2061
      %v2063 = vlaneseq
      %v2064 = vshrl.u32 %v2063, 7
      %v2065 = vsub.s32 %v2062, %v2064
      %v2066 = vrot.slane %v2058, %v2065
      %2067 = vrot.lane.b32.xlu0 %v2066, 64
      %v2068 = vpop.permute.xlu0 %2067
      %2070 = vst.msk [vmem:[%s235 + $0x4] sm:$0x3] %vm802, %v2068
      %2071 = vrot.lane.b32.xlu0 %v482, 48
      %v2072 = vpop.permute.xlu0 %2071
      %v2073 = vsel %vm329, %v2072, 0
      %2075 = vmatprep.subr.mxu0 0.0
      %2076 = vmatpush1.msra.mxu0 %v241
      %2077 = vmatprep.subr.mxu0 0.0
      %2078 = vmatpush1.msra.mxu0 %v242
      %2079 = vmatprep.subr.mxu0 0.0
      %2080 = vmatpush1.msra.mxu0 0.0
      %2081 = vmatprep.subr.mxu0 0.0
      %2082 = vmatpush1.msra.mxu0 0.0
      %2083 = vmatprep.subr.mxu0 0.0
      %2084 = vmatpush1.msra.mxu0 0.0
      %2085 = vmatprep.subr.mxu0 0.0
      %2086 = vmatpush1.msra.mxu0 0.0
      %2087 = vmatprep.subr.mxu0 0.0
      %2088 = vmatpush1.msra.mxu0 0.0
      %2089 = vmatprep.subr.mxu0 0.0
      %2090 = vmatpush1.msra.mxu0 0.0
      %2091 = vmatprep.subr.mxu0 0.0
      %2092 = vmatpush1.msra.mxu0 0.0
      %2093 = vmatprep.subr.mxu0 0.0
      %2094 = vmatpush1.msra.mxu0 0.0
      %2095 = vmatprep.subr.mxu0 0.0
      %2096 = vmatpush1.msra.mxu0 0.0
      %2097 = vmatprep.subr.mxu0 0.0
      %2098 = vmatpush1.msra.mxu0 0.0
      %2099 = vmatprep.subr.mxu0 0.0
      %2100 = vmatpush1.msra.mxu0 0.0
      %2101 = vmatprep.subr.mxu0 0.0
      %2102 = vmatpush1.msra.mxu0 0.0
      %2103 = vmatprep.subr.mxu0 0.0
      %2104 = vmatpush1.msra.mxu0 0.0
      %2105 = vmatprep.subr.mxu0 0.0
      %2106 = vmatpush1.msra.mxu0 0.0
      %2107 = vmatprep.subr.mxu0 0.0
      %2108 = vmatpush1.msra.mxu0 0.0
      %2109 = vmatprep.subr.mxu0 0.0
      %2110 = vmatpush1.msra.mxu0 0.0
      %2111 = vmatprep.subr.mxu0 0.0
      %2112 = vmatpush1.msra.mxu0 0.0
      %2113 = vmatprep.subr.mxu0 0.0
      %2114 = vmatpush1.msra.mxu0 0.0
      %2115 = vmatprep.subr.mxu0 0.0
      %2116 = vmatpush1.msra.mxu0 0.0
      %2117 = vmatprep.subr.mxu0 0.0
      %2118 = vmatpush1.msra.mxu0 0.0
      %2119 = vmatprep.subr.mxu0 0.0
      %2120 = vmatpush1.msra.mxu0 0.0
      %2121 = vmatprep.subr.mxu0 0.0
      %2122 = vmatpush1.msra.mxu0 0.0
      %2123 = vmatprep.subr.mxu0 0.0
      %2124 = vmatpush1.msra.mxu0 0.0
      %2125 = vmatprep.subr.mxu0 0.0
      %2126 = vmatpush1.msra.mxu0 0.0
      %2127 = vmatprep.subr.mxu0 0.0
      %2128 = vmatpush1.msra.mxu0 0.0
      %2129 = vmatprep.subr.mxu0 0.0
      %2130 = vmatpush1.msra.mxu0 0.0
      %2131 = vmatprep.subr.mxu0 0.0
      %2132 = vmatpush1.msra.mxu0 0.0
      %2133 = vmatprep.subr.mxu0 0.0
      %2134 = vmatpush1.msra.mxu0 0.0
      %2135 = vmatprep.subr.mxu0 0.0
      %2136 = vmatpush1.msra.mxu0 0.0
      %2137 = vmatprep.subr.mxu0 0.0
      %2138 = vmatpush1.msra.mxu0 0.0
      %2139 = vmatprep.mubr.f32.mxu0 0.0
      %2140 = vmatmul.mubr.f32.gmra.mrb[0].mxu0 %v2073
      %v2141 = vpop.f32.mrb[0].mxu0
      %v2142 = vadd.f32 0.0, %v2141
      %v2143 = vpop.f32.mrb[0].mxu0
      %2144 = vdwg.mxu0
      %2145 = vrot.lane.b32.xlu0 %v555, 48
      %v2146 = vpop.permute.xlu0 %2145
      %v2147 = vsel %vm329, %v2146, 0
      %2149 = vmatprep.subr.mxu0 0.0
      %2150 = vmatpush1.msra.mxu0 %v238
      %2151 = vmatprep.subr.mxu0 0.0
      %2152 = vmatpush1.msra.mxu0 %v239
      %2153 = vmatprep.subr.mxu0 0.0
      %2154 = vmatpush1.msra.mxu0 0.0
      %2155 = vmatprep.subr.mxu0 0.0
      %2156 = vmatpush1.msra.mxu0 0.0
      %2157 = vmatprep.subr.mxu0 0.0
      %2158 = vmatpush1.msra.mxu0 0.0
      %2159 = vmatprep.subr.mxu0 0.0
      %2160 = vmatpush1.msra.mxu0 0.0
      %2161 = vmatprep.subr.mxu0 0.0
      %2162 = vmatpush1.msra.mxu0 0.0
      %2163 = vmatprep.subr.mxu0 0.0
      %2164 = vmatpush1.msra.mxu0 0.0
      %2165 = vmatprep.subr.mxu0 0.0
      %2166 = vmatpush1.msra.mxu0 0.0
      %2167 = vmatprep.subr.mxu0 0.0
      %2168 = vmatpush1.msra.mxu0 0.0
      %2169 = vmatprep.subr.mxu0 0.0
      %2170 = vmatpush1.msra.mxu0 0.0
      %2171 = vmatprep.subr.mxu0 0.0
      %2172 = vmatpush1.msra.mxu0 0.0
      %2173 = vmatprep.subr.mxu0 0.0
      %2174 = vmatpush1.msra.mxu0 0.0
      %2175 = vmatprep.subr.mxu0 0.0
      %2176 = vmatpush1.msra.mxu0 0.0
      %2177 = vmatprep.subr.mxu0 0.0
      %2178 = vmatpush1.msra.mxu0 0.0
      %2179 = vmatprep.subr.mxu0 0.0
      %2180 = vmatpush1.msra.mxu0 0.0
      %2181 = vmatprep.subr.mxu0 0.0
      %2182 = vmatpush1.msra.mxu0 0.0
      %2183 = vmatprep.subr.mxu0 0.0
      %2184 = vmatpush1.msra.mxu0 0.0
      %2185 = vmatprep.subr.mxu0 0.0
      %2186 = vmatpush1.msra.mxu0 0.0
      %2187 = vmatprep.subr.mxu0 0.0
      %2188 = vmatpush1.msra.mxu0 0.0
      %2189 = vmatprep.subr.mxu0 0.0
      %2190 = vmatpush1.msra.mxu0 0.0
      %2191 = vmatprep.subr.mxu0 0.0
      %2192 = vmatpush1.msra.mxu0 0.0
      %2193 = vmatprep.subr.mxu0 0.0
      %2194 = vmatpush1.msra.mxu0 0.0
      %2195 = vmatprep.subr.mxu0 0.0
      %2196 = vmatpush1.msra.mxu0 0.0
      %2197 = vmatprep.subr.mxu0 0.0
      %2198 = vmatpush1.msra.mxu0 0.0
      %2199 = vmatprep.subr.mxu0 0.0
      %2200 = vmatpush1.msra.mxu0 0.0
      %2201 = vmatprep.subr.mxu0 0.0
      %2202 = vmatpush1.msra.mxu0 0.0
      %2203 = vmatprep.subr.mxu0 0.0
      %2204 = vmatpush1.msra.mxu0 0.0
      %2205 = vmatprep.subr.mxu0 0.0
      %2206 = vmatpush1.msra.mxu0 0.0
      %2207 = vmatprep.subr.mxu0 0.0
      %2208 = vmatpush1.msra.mxu0 0.0
      %2209 = vmatprep.subr.mxu0 0.0
      %2210 = vmatpush1.msra.mxu0 0.0
      %2211 = vmatprep.subr.mxu0 0.0
      %2212 = vmatpush1.msra.mxu0 0.0
      %2213 = vmatprep.mubr.f32.mxu0 0.0
      %2214 = vmatmul.mubr.f32.gmra.mrb[0].mxu0 %v2147
      %v2215 = vpop.f32.mrb[0].mxu0
      %v2216 = vadd.f32 %v2142, %v2215
      %v2217 = vpop.f32.mrb[0].mxu0
      %2218 = vdwg.mxu0
      %v2219 = vadd.f32 %v2216, %v477
      %v2222 = vunpack.c.l.s4 1983009808
      %v2223 = vunpack.c.0.s8 %v2222
      %v2224 = vlaneseq
      %v2225 = vshrl.u32 %v2224, 7
      %v2226 = vsub.s32 %v2223, %v2225
      %v2227 = vrot.slane %v2219, %v2226
      %2228 = vrot.lane.b32.xlu0 %v2227, 96
      %v2229 = vpop.permute.xlu0 %2228
      %2231 = vst.msk [vmem:[%s235 + $0x4] sm:$0x3] %vm964, %v2229
      %2232 = vrot.lane.b32.xlu0 %v328, 32
      %v2233 = vpop.permute.xlu0 %2232
      %v2234 = vsel %vm329, %v2233, 0
      %2236 = vmatprep.subr.mxu0 0.0
      %2237 = vmatpush1.msra.mxu0 %v241
      %2238 = vmatprep.subr.mxu0 0.0
      %2239 = vmatpush1.msra.mxu0 %v242
      %2240 = vmatprep.subr.mxu0 0.0
      %2241 = vmatpush1.msra.mxu0 0.0
      %2242 = vmatprep.subr.mxu0 0.0
      %2243 = vmatpush1.msra.mxu0 0.0
      %2244 = vmatprep.subr.mxu0 0.0
      %2245 = vmatpush1.msra.mxu0 0.0
      %2246 = vmatprep.subr.mxu0 0.0
      %2247 = vmatpush1.msra.mxu0 0.0
      %2248 = vmatprep.subr.mxu0 0.0
      %2249 = vmatpush1.msra.mxu0 0.0
      %2250 = vmatprep.subr.mxu0 0.0
      %2251 = vmatpush1.msra.mxu0 0.0
      %2252 = vmatprep.subr.mxu0 0.0
      %2253 = vmatpush1.msra.mxu0 0.0
      %2254 = vmatprep.subr.mxu0 0.0
      %2255 = vmatpush1.msra.mxu0 0.0
      %2256 = vmatprep.subr.mxu0 0.0
      %2257 = vmatpush1.msra.mxu0 0.0
      %2258 = vmatprep.subr.mxu0 0.0
      %2259 = vmatpush1.msra.mxu0 0.0
      %2260 = vmatprep.subr.mxu0 0.0
      %2261 = vmatpush1.msra.mxu0 0.0
      %2262 = vmatprep.subr.mxu0 0.0
      %2263 = vmatpush1.msra.mxu0 0.0
      %2264 = vmatprep.subr.mxu0 0.0
      %2265 = vmatpush1.msra.mxu0 0.0
      %2266 = vmatprep.subr.mxu0 0.0
      %2267 = vmatpush1.msra.mxu0 0.0
      %2268 = vmatprep.subr.mxu0 0.0
      %2269 = vmatpush1.msra.mxu0 0.0
      %2270 = vmatprep.subr.mxu0 0.0
      %2271 = vmatpush1.msra.mxu0 0.0
      %2272 = vmatprep.subr.mxu0 0.0
      %2273 = vmatpush1.msra.mxu0 0.0
      %2274 = vmatprep.subr.mxu0 0.0
      %2275 = vmatpush1.msra.mxu0 0.0
      %2276 = vmatprep.subr.mxu0 0.0
      %2277 = vmatpush1.msra.mxu0 0.0
      %2278 = vmatprep.subr.mxu0 0.0
      %2279 = vmatpush1.msra.mxu0 0.0
      %2280 = vmatprep.subr.mxu0 0.0
      %2281 = vmatpush1.msra.mxu0 0.0
      %2282 = vmatprep.subr.mxu0 0.0
      %2283 = vmatpush1.msra.mxu0 0.0
      %2284 = vmatprep.subr.mxu0 0.0
      %2285 = vmatpush1.msra.mxu0 0.0
      %2286 = vmatprep.subr.mxu0 0.0
      %2287 = vmatpush1.msra.mxu0 0.0
      %2288 = vmatprep.subr.mxu0 0.0
      %2289 = vmatpush1.msra.mxu0 0.0
      %2290 = vmatprep.subr.mxu0 0.0
      %2291 = vmatpush1.msra.mxu0 0.0
      %2292 = vmatprep.subr.mxu0 0.0
      %2293 = vmatpush1.msra.mxu0 0.0
      %2294 = vmatprep.subr.mxu0 0.0
      %2295 = vmatpush1.msra.mxu0 0.0
      %2296 = vmatprep.subr.mxu0 0.0
      %2297 = vmatpush1.msra.mxu0 0.0
      %2298 = vmatprep.subr.mxu0 0.0
      %2299 = vmatpush1.msra.mxu0 0.0
      %2300 = vmatprep.mubr.f32.mxu0 0.0
      %2301 = vmatmul.mubr.f32.gmra.mrb[0].mxu0 %v2234
      %v2302 = vpop.f32.mrb[0].mxu0
      %v2303 = vadd.f32 0.0, %v2302
      %v2304 = vpop.f32.mrb[0].mxu0
      %2305 = vdwg.mxu0
      %2306 = vrot.lane.b32.xlu0 %v323, 32
      %v2307 = vpop.permute.xlu0 %2306
      %v2308 = vsel %vm329, %v2307, 0
      %2310 = vmatprep.subr.mxu0 0.0
      %2311 = vmatpush1.msra.mxu0 %v238
      %2312 = vmatprep.subr.mxu0 0.0
      %2313 = vmatpush1.msra.mxu0 %v239
      %2314 = vmatprep.subr.mxu0 0.0
      %2315 = vmatpush1.msra.mxu0 0.0
      %2316 = vmatprep.subr.mxu0 0.0
      %2317 = vmatpush1.msra.mxu0 0.0
      %2318 = vmatprep.subr.mxu0 0.0
      %2319 = vmatpush1.msra.mxu0 0.0
      %2320 = vmatprep.subr.mxu0 0.0
      %2321 = vmatpush1.msra.mxu0 0.0
      %2322 = vmatprep.subr.mxu0 0.0
      %2323 = vmatpush1.msra.mxu0 0.0
      %2324 = vmatprep.subr.mxu0 0.0
      %2325 = vmatpush1.msra.mxu0 0.0
      %2326 = vmatprep.subr.mxu0 0.0
      %2327 = vmatpush1.msra.mxu0 0.0
      %2328 = vmatprep.subr.mxu0 0.0
      %2329 = vmatpush1.msra.mxu0 0.0
      %2330 = vmatprep.subr.mxu0 0.0
      %2331 = vmatpush1.msra.mxu0 0.0
      %2332 = vmatprep.subr.mxu0 0.0
      %2333 = vmatpush1.msra.mxu0 0.0
      %2334 = vmatprep.subr.mxu0 0.0
      %2335 = vmatpush1.msra.mxu0 0.0
      %2336 = vmatprep.subr.mxu0 0.0
      %2337 = vmatpush1.msra.mxu0 0.0
      %2338 = vmatprep.subr.mxu0 0.0
      %2339 = vmatpush1.msra.mxu0 0.0
      %2340 = vmatprep.subr.mxu0 0.0
      %2341 = vmatpush1.msra.mxu0 0.0
      %2342 = vmatprep.subr.mxu0 0.0
      %2343 = vmatpush1.msra.mxu0 0.0
      %2344 = vmatprep.subr.mxu0 0.0
      %2345 = vmatpush1.msra.mxu0 0.0
      %2346 = vmatprep.subr.mxu0 0.0
      %2347 = vmatpush1.msra.mxu0 0.0
      %2348 = vmatprep.subr.mxu0 0.0
      %2349 = vmatpush1.msra.mxu0 0.0
      %2350 = vmatprep.subr.mxu0 0.0
      %2351 = vmatpush1.msra.mxu0 0.0
      %2352 = vmatprep.subr.mxu0 0.0
      %2353 = vmatpush1.msra.mxu0 0.0
      %2354 = vmatprep.subr.mxu0 0.0
      %2355 = vmatpush1.msra.mxu0 0.0
      %2356 = vmatprep.subr.mxu0 0.0
      %2357 = vmatpush1.msra.mxu0 0.0
      %2358 = vmatprep.subr.mxu0 0.0
      %2359 = vmatpush1.msra.mxu0 0.0
      %2360 = vmatprep.subr.mxu0 0.0
      %2361 = vmatpush1.msra.mxu0 0.0
      %2362 = vmatprep.subr.mxu0 0.0
      %2363 = vmatpush1.msra.mxu0 0.0
      %2364 = vmatprep.subr.mxu0 0.0
      %2365 = vmatpush1.msra.mxu0 0.0
      %2366 = vmatprep.subr.mxu0 0.0
      %2367 = vmatpush1.msra.mxu0 0.0
      %2368 = vmatprep.subr.mxu0 0.0
      %2369 = vmatpush1.msra.mxu0 0.0
      %2370 = vmatprep.subr.mxu0 0.0
      %2371 = vmatpush1.msra.mxu0 0.0
      %2372 = vmatprep.subr.mxu0 0.0
      %2373 = vmatpush1.msra.mxu0 0.0
      %2374 = vmatprep.mubr.f32.mxu0 0.0
      %2375 = vmatmul.mubr.f32.gmra.mrb[0].mxu0 %v2308
      %v2376 = vpop.f32.mrb[0].mxu0
      %v2377 = vadd.f32 %v2303, %v2376
      %v2378 = vpop.f32.mrb[0].mxu0
      %2379 = vdwg.mxu0
      %v2380 = vadd.f32 %v2377, %v477
      %2381 = vst.msk [vmem:[%s235 + $0x6] sm:$0x3] %vm480, %v2380
      %2382 = vrot.lane.b32.xlu0 %v482, 32
      %v2383 = vpop.permute.xlu0 %2382
      %v2384 = vsel %vm329, %v2383, 0
      %2386 = vmatprep.subr.mxu0 0.0
      %2387 = vmatpush1.msra.mxu0 %v241
      %2388 = vmatprep.subr.mxu0 0.0
      %2389 = vmatpush1.msra.mxu0 %v242
      %2390 = vmatprep.subr.mxu0 0.0
      %2391 = vmatpush1.msra.mxu0 0.0
      %2392 = vmatprep.subr.mxu0 0.0
      %2393 = vmatpush1.msra.mxu0 0.0
      %2394 = vmatprep.subr.mxu0 0.0
      %2395 = vmatpush1.msra.mxu0 0.0
      %2396 = vmatprep.subr.mxu0 0.0
      %2397 = vmatpush1.msra.mxu0 0.0
      %2398 = vmatprep.subr.mxu0 0.0
      %2399 = vmatpush1.msra.mxu0 0.0
      %2400 = vmatprep.subr.mxu0 0.0
      %2401 = vmatpush1.msra.mxu0 0.0
      %2402 = vmatprep.subr.mxu0 0.0
      %2403 = vmatpush1.msra.mxu0 0.0
      %2404 = vmatprep.subr.mxu0 0.0
      %2405 = vmatpush1.msra.mxu0 0.0
      %2406 = vmatprep.subr.mxu0 0.0
      %2407 = vmatpush1.msra.mxu0 0.0
      %2408 = vmatprep.subr.mxu0 0.0
      %2409 = vmatpush1.msra.mxu0 0.0
      %2410 = vmatprep.subr.mxu0 0.0
      %2411 = vmatpush1.msra.mxu0 0.0
      %2412 = vmatprep.subr.mxu0 0.0
      %2413 = vmatpush1.msra.mxu0 0.0
      %2414 = vmatprep.subr.mxu0 0.0
      %2415 = vmatpush1.msra.mxu0 0.0
      %2416 = vmatprep.subr.mxu0 0.0
      %2417 = vmatpush1.msra.mxu0 0.0
      %2418 = vmatprep.subr.mxu0 0.0
      %2419 = vmatpush1.msra.mxu0 0.0
      %2420 = vmatprep.subr.mxu0 0.0
      %2421 = vmatpush1.msra.mxu0 0.0
      %2422 = vmatprep.subr.mxu0 0.0
      %2423 = vmatpush1.msra.mxu0 0.0
      %2424 = vmatprep.subr.mxu0 0.0
      %2425 = vmatpush1.msra.mxu0 0.0
      %2426 = vmatprep.subr.mxu0 0.0
      %2427 = vmatpush1.msra.mxu0 0.0
      %2428 = vmatprep.subr.mxu0 0.0
      %2429 = vmatpush1.msra.mxu0 0.0
      %2430 = vmatprep.subr.mxu0 0.0
      %2431 = vmatpush1.msra.mxu0 0.0
      %2432 = vmatprep.subr.mxu0 0.0
      %2433 = vmatpush1.msra.mxu0 0.0
      %2434 = vmatprep.subr.mxu0 0.0
      %2435 = vmatpush1.msra.mxu0 0.0
      %2436 = vmatprep.subr.mxu0 0.0
      %2437 = vmatpush1.msra.mxu0 0.0
      %2438 = vmatprep.subr.mxu0 0.0
      %2439 = vmatpush1.msra.mxu0 0.0
      %2440 = vmatprep.subr.mxu0 0.0
      %2441 = vmatpush1.msra.mxu0 0.0
      %2442 = vmatprep.subr.mxu0 0.0
      %2443 = vmatpush1.msra.mxu0 0.0
      %2444 = vmatprep.subr.mxu0 0.0
      %2445 = vmatpush1.msra.mxu0 0.0
      %2446 = vmatprep.subr.mxu0 0.0
      %2447 = vmatpush1.msra.mxu0 0.0
      %2448 = vmatprep.subr.mxu0 0.0
      %2449 = vmatpush1.msra.mxu0 0.0
      %2450 = vmatprep.mubr.f32.mxu0 0.0
      %2451 = vmatmul.mubr.f32.gmra.mrb[0].mxu0 %v2384
      %v2452 = vpop.f32.mrb[0].mxu0
      %v2453 = vadd.f32 0.0, %v2452
      %v2454 = vpop.f32.mrb[0].mxu0
      %2455 = vdwg.mxu0
      %2456 = vrot.lane.b32.xlu0 %v555, 32
      %v2457 = vpop.permute.xlu0 %2456
      %v2458 = vsel %vm329, %v2457, 0
      %2460 = vmatprep.subr.mxu0 0.0
      %2461 = vmatpush1.msra.mxu0 %v238
      %2462 = vmatprep.subr.mxu0 0.0
      %2463 = vmatpush1.msra.mxu0 %v239
      %2464 = vmatprep.subr.mxu0 0.0
      %2465 = vmatpush1.msra.mxu0 0.0
      %2466 = vmatprep.subr.mxu0 0.0
      %2467 = vmatpush1.msra.mxu0 0.0
      %2468 = vmatprep.subr.mxu0 0.0
      %2469 = vmatpush1.msra.mxu0 0.0
      %2470 = vmatprep.subr.mxu0 0.0
      %2471 = vmatpush1.msra.mxu0 0.0
      %2472 = vmatprep.subr.mxu0 0.0
      %2473 = vmatpush1.msra.mxu0 0.0
      %2474 = vmatprep.subr.mxu0 0.0
      %2475 = vmatpush1.msra.mxu0 0.0
      %2476 = vmatprep.subr.mxu0 0.0
      %2477 = vmatpush1.msra.mxu0 0.0
      %2478 = vmatprep.subr.mxu0 0.0
      %2479 = vmatpush1.msra.mxu0 0.0
      %2480 = vmatprep.subr.mxu0 0.0
      %2481 = vmatpush1.msra.mxu0 0.0
      %2482 = vmatprep.subr.mxu0 0.0
      %2483 = vmatpush1.msra.mxu0 0.0
      %2484 = vmatprep.subr.mxu0 0.0
      %2485 = vmatpush1.msra.mxu0 0.0
      %2486 = vmatprep.subr.mxu0 0.0
      %2487 = vmatpush1.msra.mxu0 0.0
      %2488 = vmatprep.subr.mxu0 0.0
      %2489 = vmatpush1.msra.mxu0 0.0
      %2490 = vmatprep.subr.mxu0 0.0
      %2491 = vmatpush1.msra.mxu0 0.0
      %2492 = vmatprep.subr.mxu0 0.0
      %2493 = vmatpush1.msra.mxu0 0.0
      %2494 = vmatprep.subr.mxu0 0.0
      %2495 = vmatpush1.msra.mxu0 0.0
      %2496 = vmatprep.subr.mxu0 0.0
      %2497 = vmatpush1.msra.mxu0 0.0
      %2498 = vmatprep.subr.mxu0 0.0
      %2499 = vmatpush1.msra.mxu0 0.0
      %2500 = vmatprep.subr.mxu0 0.0
      %2501 = vmatpush1.msra.mxu0 0.0
      %2502 = vmatprep.subr.mxu0 0.0
      %2503 = vmatpush1.msra.mxu0 0.0
      %2504 = vmatprep.subr.mxu0 0.0
      %2505 = vmatpush1.msra.mxu0 0.0
      %2506 = vmatprep.subr.mxu0 0.0
      %2507 = vmatpush1.msra.mxu0 0.0
      %2508 = vmatprep.subr.mxu0 0.0
      %2509 = vmatpush1.msra.mxu0 0.0
      %2510 = vmatprep.subr.mxu0 0.0
      %2511 = vmatpush1.msra.mxu0 0.0
      %2512 = vmatprep.subr.mxu0 0.0
      %2513 = vmatpush1.msra.mxu0 0.0
      %2514 = vmatprep.subr.mxu0 0.0
      %2515 = vmatpush1.msra.mxu0 0.0
      %2516 = vmatprep.subr.mxu0 0.0
      %2517 = vmatpush1.msra.mxu0 0.0
      %2518 = vmatprep.subr.mxu0 0.0
      %2519 = vmatpush1.msra.mxu0 0.0
      %2520 = vmatprep.subr.mxu0 0.0
      %2521 = vmatpush1.msra.mxu0 0.0
      %2522 = vmatprep.subr.mxu0 0.0
      %2523 = vmatpush1.msra.mxu0 0.0
      %2524 = vmatprep.mubr.f32.mxu0 0.0
      %2525 = vmatmul.mubr.f32.gmra.mrb[0].mxu0 %v2458
      %v2526 = vpop.f32.mrb[0].mxu0
      %v2527 = vadd.f32 %v2453, %v2526
      %v2528 = vpop.f32.mrb[0].mxu0
      %2529 = vdwg.mxu0
      %v2530 = vadd.f32 %v2527, %v477
      %v2533 = vunpack.c.l.s4 1983009808
      %v2534 = vunpack.c.0.s8 %v2533
      %v2535 = vlaneseq
      %v2536 = vshrl.u32 %v2535, 7
      %v2537 = vsub.s32 %v2534, %v2536
      %v2538 = vrot.slane %v2530, %v2537
      %2539 = vrot.lane.b32.xlu0 %v2538, 32
      %v2540 = vpop.permute.xlu0 %2539
      %2542 = vst.msk [vmem:[%s235 + $0x6] sm:$0x3] %vm640, %v2540
      %2543 = vrot.lane.b32.xlu0 %v328, 16
      %v2544 = vpop.permute.xlu0 %2543
      %v2545 = vsel %vm329, %v2544, 0
      %2547 = vmatprep.subr.mxu0 0.0
      %2548 = vmatpush1.msra.mxu0 %v241
      %2549 = vmatprep.subr.mxu0 0.0
      %2550 = vmatpush1.msra.mxu0 %v242
      %2551 = vmatprep.subr.mxu0 0.0
      %2552 = vmatpush1.msra.mxu0 0.0
      %2553 = vmatprep.subr.mxu0 0.0
      %2554 = vmatpush1.msra.mxu0 0.0
      %2555 = vmatprep.subr.mxu0 0.0
      %2556 = vmatpush1.msra.mxu0 0.0
      %2557 = vmatprep.subr.mxu0 0.0
      %2558 = vmatpush1.msra.mxu0 0.0
      %2559 = vmatprep.subr.mxu0 0.0
      %2560 = vmatpush1.msra.mxu0 0.0
      %2561 = vmatprep.subr.mxu0 0.0
      %2562 = vmatpush1.msra.mxu0 0.0
      %2563 = vmatprep.subr.mxu0 0.0
      %2564 = vmatpush1.msra.mxu0 0.0
      %2565 = vmatprep.subr.mxu0 0.0
      %2566 = vmatpush1.msra.mxu0 0.0
      %2567 = vmatprep.subr.mxu0 0.0
      %2568 = vmatpush1.msra.mxu0 0.0
      %2569 = vmatprep.subr.mxu0 0.0
      %2570 = vmatpush1.msra.mxu0 0.0
      %2571 = vmatprep.subr.mxu0 0.0
      %2572 = vmatpush1.msra.mxu0 0.0
      %2573 = vmatprep.subr.mxu0 0.0
      %2574 = vmatpush1.msra.mxu0 0.0
      %2575 = vmatprep.subr.mxu0 0.0
      %2576 = vmatpush1.msra.mxu0 0.0
      %2577 = vmatprep.subr.mxu0 0.0
      %2578 = vmatpush1.msra.mxu0 0.0
      %2579 = vmatprep.subr.mxu0 0.0
      %2580 = vmatpush1.msra.mxu0 0.0
      %2581 = vmatprep.subr.mxu0 0.0
      %2582 = vmatpush1.msra.mxu0 0.0
      %2583 = vmatprep.subr.mxu0 0.0
      %2584 = vmatpush1.msra.mxu0 0.0
      %2585 = vmatprep.subr.mxu0 0.0
      %2586 = vmatpush1.msra.mxu0 0.0
      %2587 = vmatprep.subr.mxu0 0.0
      %2588 = vmatpush1.msra.mxu0 0.0
      %2589 = vmatprep.subr.mxu0 0.0
      %2590 = vmatpush1.msra.mxu0 0.0
      %2591 = vmatprep.subr.mxu0 0.0
      %2592 = vmatpush1.msra.mxu0 0.0
      %2593 = vmatprep.subr.mxu0 0.0
      %2594 = vmatpush1.msra.mxu0 0.0
      %2595 = vmatprep.subr.mxu0 0.0
      %2596 = vmatpush1.msra.mxu0 0.0
      %2597 = vmatprep.subr.mxu0 0.0
      %2598 = vmatpush1.msra.mxu0 0.0
      %2599 = vmatprep.subr.mxu0 0.0
      %2600 = vmatpush1.msra.mxu0 0.0
      %2601 = vmatprep.subr.mxu0 0.0
      %2602 = vmatpush1.msra.mxu0 0.0
      %2603 = vmatprep.subr.mxu0 0.0
      %2604 = vmatpush1.msra.mxu0 0.0
      %2605 = vmatprep.subr.mxu0 0.0
      %2606 = vmatpush1.msra.mxu0 0.0
      %2607 = vmatprep.subr.mxu0 0.0
      %2608 = vmatpush1.msra.mxu0 0.0
      %2609 = vmatprep.subr.mxu0 0.0
      %2610 = vmatpush1.msra.mxu0 0.0
      %2611 = vmatprep.mubr.f32.mxu0 0.0
      %2612 = vmatmul.mubr.f32.gmra.mrb[0].mxu0 %v2545
      %v2613 = vpop.f32.mrb[0].mxu0
      %v2614 = vadd.f32 0.0, %v2613
      %v2615 = vpop.f32.mrb[0].mxu0
      %2616 = vdwg.mxu0
      %2617 = vrot.lane.b32.xlu0 %v323, 16
      %v2618 = vpop.permute.xlu0 %2617
      %v2619 = vsel %vm329, %v2618, 0
      %2621 = vmatprep.subr.mxu0 0.0
      %2622 = vmatpush1.msra.mxu0 %v238
      %2623 = vmatprep.subr.mxu0 0.0
      %2624 = vmatpush1.msra.mxu0 %v239
      %2625 = vmatprep.subr.mxu0 0.0
      %2626 = vmatpush1.msra.mxu0 0.0
      %2627 = vmatprep.subr.mxu0 0.0
      %2628 = vmatpush1.msra.mxu0 0.0
      %2629 = vmatprep.subr.mxu0 0.0
      %2630 = vmatpush1.msra.mxu0 0.0
      %2631 = vmatprep.subr.mxu0 0.0
      %2632 = vmatpush1.msra.mxu0 0.0
      %2633 = vmatprep.subr.mxu0 0.0
      %2634 = vmatpush1.msra.mxu0 0.0
      %2635 = vmatprep.subr.mxu0 0.0
      %2636 = vmatpush1.msra.mxu0 0.0
      %2637 = vmatprep.subr.mxu0 0.0
      %2638 = vmatpush1.msra.mxu0 0.0
      %2639 = vmatprep.subr.mxu0 0.0
      %2640 = vmatpush1.msra.mxu0 0.0
      %2641 = vmatprep.subr.mxu0 0.0
      %2642 = vmatpush1.msra.mxu0 0.0
      %2643 = vmatprep.subr.mxu0 0.0
      %2644 = vmatpush1.msra.mxu0 0.0
      %2645 = vmatprep.subr.mxu0 0.0
      %2646 = vmatpush1.msra.mxu0 0.0
      %2647 = vmatprep.subr.mxu0 0.0
      %2648 = vmatpush1.msra.mxu0 0.0
      %2649 = vmatprep.subr.mxu0 0.0
      %2650 = vmatpush1.msra.mxu0 0.0
      %2651 = vmatprep.subr.mxu0 0.0
      %2652 = vmatpush1.msra.mxu0 0.0
      %2653 = vmatprep.subr.mxu0 0.0
      %2654 = vmatpush1.msra.mxu0 0.0
      %2655 = vmatprep.subr.mxu0 0.0
      %2656 = vmatpush1.msra.mxu0 0.0
      %2657 = vmatprep.subr.mxu0 0.0
      %2658 = vmatpush1.msra.mxu0 0.0
      %2659 = vmatprep.subr.mxu0 0.0
      %2660 = vmatpush1.msra.mxu0 0.0
      %2661 = vmatprep.subr.mxu0 0.0
      %2662 = vmatpush1.msra.mxu0 0.0
      %2663 = vmatprep.subr.mxu0 0.0
      %2664 = vmatpush1.msra.mxu0 0.0
      %2665 = vmatprep.subr.mxu0 0.0
      %2666 = vmatpush1.msra.mxu0 0.0
      %2667 = vmatprep.subr.mxu0 0.0
      %2668 = vmatpush1.msra.mxu0 0.0
      %2669 = vmatprep.subr.mxu0 0.0
      %2670 = vmatpush1.msra.mxu0 0.0
      %2671 = vmatprep.subr.mxu0 0.0
      %2672 = vmatpush1.msra.mxu0 0.0
      %2673 = vmatprep.subr.mxu0 0.0
      %2674 = vmatpush1.msra.mxu0 0.0
      %2675 = vmatprep.subr.mxu0 0.0
      %2676 = vmatpush1.msra.mxu0 0.0
      %2677 = vmatprep.subr.mxu0 0.0
      %2678 = vmatpush1.msra.mxu0 0.0
      %2679 = vmatprep.subr.mxu0 0.0
      %2680 = vmatpush1.msra.mxu0 0.0
      %2681 = vmatprep.subr.mxu0 0.0
      %2682 = vmatpush1.msra.mxu0 0.0
      %2683 = vmatprep.subr.mxu0 0.0
      %2684 = vmatpush1.msra.mxu0 0.0
      %2685 = vmatprep.mubr.f32.mxu0 0.0
      %2686 = vmatmul.mubr.f32.gmra.mrb[0].mxu0 %v2619
      %v2687 = vpop.f32.mrb[0].mxu0
      %v2688 = vadd.f32 %v2614, %v2687
      %v2689 = vpop.f32.mrb[0].mxu0
      %2690 = vdwg.mxu0
      %v2691 = vadd.f32 %v2688, %v477
      %v2694 = vunpack.c.l.s4 1983009808
      %v2695 = vunpack.c.0.s8 %v2694
      %v2696 = vlaneseq
      %v2697 = vshrl.u32 %v2696, 7
      %v2698 = vsub.s32 %v2695, %v2697
      %v2699 = vrot.slane %v2691, %v2698
      %2700 = vrot.lane.b32.xlu0 %v2699, 64
      %v2701 = vpop.permute.xlu0 %2700
      %2703 = vst.msk [vmem:[%s235 + $0x6] sm:$0x3] %vm802, %v2701
      %2704 = vrot.lane.b32.xlu0 %v482, 16
      %v2705 = vpop.permute.xlu0 %2704
      %v2706 = vsel %vm329, %v2705, 0
      %2708 = vmatprep.subr.mxu0 0.0
      %2709 = vmatpush1.msra.mxu0 %v241
      %2710 = vmatprep.subr.mxu0 0.0
      %2711 = vmatpush1.msra.mxu0 %v242
      %2712 = vmatprep.subr.mxu0 0.0
      %2713 = vmatpush1.msra.mxu0 0.0
      %2714 = vmatprep.subr.mxu0 0.0
      %2715 = vmatpush1.msra.mxu0 0.0
      %2716 = vmatprep.subr.mxu0 0.0
      %2717 = vmatpush1.msra.mxu0 0.0
      %2718 = vmatprep.subr.mxu0 0.0
      %2719 = vmatpush1.msra.mxu0 0.0
      %2720 = vmatprep.subr.mxu0 0.0
      %2721 = vmatpush1.msra.mxu0 0.0
      %2722 = vmatprep.subr.mxu0 0.0
      %2723 = vmatpush1.msra.mxu0 0.0
      %2724 = vmatprep.subr.mxu0 0.0
      %2725 = vmatpush1.msra.mxu0 0.0
      %2726 = vmatprep.subr.mxu0 0.0
      %2727 = vmatpush1.msra.mxu0 0.0
      %2728 = vmatprep.subr.mxu0 0.0
      %2729 = vmatpush1.msra.mxu0 0.0
      %2730 = vmatprep.subr.mxu0 0.0
      %2731 = vmatpush1.msra.mxu0 0.0
      %2732 = vmatprep.subr.mxu0 0.0
      %2733 = vmatpush1.msra.mxu0 0.0
      %2734 = vmatprep.subr.mxu0 0.0
      %2735 = vmatpush1.msra.mxu0 0.0
      %2736 = vmatprep.subr.mxu0 0.0
      %2737 = vmatpush1.msra.mxu0 0.0
      %2738 = vmatprep.subr.mxu0 0.0
      %2739 = vmatpush1.msra.mxu0 0.0
      %2740 = vmatprep.subr.mxu0 0.0
      %2741 = vmatpush1.msra.mxu0 0.0
      %2742 = vmatprep.subr.mxu0 0.0
      %2743 = vmatpush1.msra.mxu0 0.0
      %2744 = vmatprep.subr.mxu0 0.0
      %2745 = vmatpush1.msra.mxu0 0.0
      %2746 = vmatprep.subr.mxu0 0.0
      %2747 = vmatpush1.msra.mxu0 0.0
      %2748 = vmatprep.subr.mxu0 0.0
      %2749 = vmatpush1.msra.mxu0 0.0
      %2750 = vmatprep.subr.mxu0 0.0
      %2751 = vmatpush1.msra.mxu0 0.0
      %2752 = vmatprep.subr.mxu0 0.0
      %2753 = vmatpush1.msra.mxu0 0.0
      %2754 = vmatprep.subr.mxu0 0.0
      %2755 = vmatpush1.msra.mxu0 0.0
      %2756 = vmatprep.subr.mxu0 0.0
      %2757 = vmatpush1.msra.mxu0 0.0
      %2758 = vmatprep.subr.mxu0 0.0
      %2759 = vmatpush1.msra.mxu0 0.0
      %2760 = vmatprep.subr.mxu0 0.0
      %2761 = vmatpush1.msra.mxu0 0.0
      %2762 = vmatprep.subr.mxu0 0.0
      %2763 = vmatpush1.msra.mxu0 0.0
      %2764 = vmatprep.subr.mxu0 0.0
      %2765 = vmatpush1.msra.mxu0 0.0
      %2766 = vmatprep.subr.mxu0 0.0
      %2767 = vmatpush1.msra.mxu0 0.0
      %2768 = vmatprep.subr.mxu0 0.0
      %2769 = vmatpush1.msra.mxu0 0.0
      %2770 = vmatprep.subr.mxu0 0.0
      %2771 = vmatpush1.msra.mxu0 0.0
      %2772 = vmatprep.mubr.f32.mxu0 0.0
      %2773 = vmatmul.mubr.f32.gmra.mrb[0].mxu0 %v2706
      %v2774 = vpop.f32.mrb[0].mxu0
      %v2775 = vadd.f32 0.0, %v2774
      %v2776 = vpop.f32.mrb[0].mxu0
      %2777 = vdwg.mxu0
      %2778 = vrot.lane.b32.xlu0 %v555, 16
      %v2779 = vpop.permute.xlu0 %2778
      %v2780 = vsel %vm329, %v2779, 0
      %2782 = vmatprep.subr.mxu0 0.0
      %2783 = vmatpush1.msra.mxu0 %v238
      %2784 = vmatprep.subr.mxu0 0.0
      %2785 = vmatpush1.msra.mxu0 %v239
      %2786 = vmatprep.subr.mxu0 0.0
      %2787 = vmatpush1.msra.mxu0 0.0
      %2788 = vmatprep.subr.mxu0 0.0
      %2789 = vmatpush1.msra.mxu0 0.0
      %2790 = vmatprep.subr.mxu0 0.0
      %2791 = vmatpush1.msra.mxu0 0.0
      %2792 = vmatprep.subr.mxu0 0.0
      %2793 = vmatpush1.msra.mxu0 0.0
      %2794 = vmatprep.subr.mxu0 0.0
      %2795 = vmatpush1.msra.mxu0 0.0
      %2796 = vmatprep.subr.mxu0 0.0
      %2797 = vmatpush1.msra.mxu0 0.0
      %2798 = vmatprep.subr.mxu0 0.0
      %2799 = vmatpush1.msra.mxu0 0.0
      %2800 = vmatprep.subr.mxu0 0.0
      %2801 = vmatpush1.msra.mxu0 0.0
      %2802 = vmatprep.subr.mxu0 0.0
      %2803 = vmatpush1.msra.mxu0 0.0
      %2804 = vmatprep.subr.mxu0 0.0
      %2805 = vmatpush1.msra.mxu0 0.0
      %2806 = vmatprep.subr.mxu0 0.0
      %2807 = vmatpush1.msra.mxu0 0.0
      %2808 = vmatprep.subr.mxu0 0.0
      %2809 = vmatpush1.msra.mxu0 0.0
      %2810 = vmatprep.subr.mxu0 0.0
      %2811 = vmatpush1.msra.mxu0 0.0
      %2812 = vmatprep.subr.mxu0 0.0
      %2813 = vmatpush1.msra.mxu0 0.0
      %2814 = vmatprep.subr.mxu0 0.0
      %2815 = vmatpush1.msra.mxu0 0.0
      %2816 = vmatprep.subr.mxu0 0.0
      %2817 = vmatpush1.msra.mxu0 0.0
      %2818 = vmatprep.subr.mxu0 0.0
      %2819 = vmatpush1.msra.mxu0 0.0
      %2820 = vmatprep.subr.mxu0 0.0
      %2821 = vmatpush1.msra.mxu0 0.0
      %2822 = vmatprep.subr.mxu0 0.0
      %2823 = vmatpush1.msra.mxu0 0.0
      %2824 = vmatprep.subr.mxu0 0.0
      %2825 = vmatpush1.msra.mxu0 0.0
      %2826 = vmatprep.subr.mxu0 0.0
      %2827 = vmatpush1.msra.mxu0 0.0
      %2828 = vmatprep.subr.mxu0 0.0
      %2829 = vmatpush1.msra.mxu0 0.0
      %2830 = vmatprep.subr.mxu0 0.0
      %2831 = vmatpush1.msra.mxu0 0.0
      %2832 = vmatprep.subr.mxu0 0.0
      %2833 = vmatpush1.msra.mxu0 0.0
      %2834 = vmatprep.subr.mxu0 0.0
      %2835 = vmatpush1.msra.mxu0 0.0
      %2836 = vmatprep.subr.mxu0 0.0
      %2837 = vmatpush1.msra.mxu0 0.0
      %2838 = vmatprep.subr.mxu0 0.0
      %2839 = vmatpush1.msra.mxu0 0.0
      %2840 = vmatprep.subr.mxu0 0.0
      %2841 = vmatpush1.msra.mxu0 0.0
      %2842 = vmatprep.subr.mxu0 0.0
      %2843 = vmatpush1.msra.mxu0 0.0
      %2844 = vmatprep.subr.mxu0 0.0
      %2845 = vmatpush1.msra.mxu0 0.0
      %2846 = vmatprep.mubr.f32.mxu0 0.0
      %2847 = vmatmul.mubr.f32.gmra.mrb[0].mxu0 %v2780
      %v2848 = vpop.f32.mrb[0].mxu0
      %v2849 = vadd.f32 %v2775, %v2848
      %v2850 = vpop.f32.mrb[0].mxu0
      %2851 = vdwg.mxu0
      %v2852 = vadd.f32 %v2849, %v477
      %v2855 = vunpack.c.l.s4 1983009808
      %v2856 = vunpack.c.0.s8 %v2855
      %v2857 = vlaneseq
      %v2858 = vshrl.u32 %v2857, 7
      %v2859 = vsub.s32 %v2856, %v2858
      %v2860 = vrot.slane %v2852, %v2859
      %2861 = vrot.lane.b32.xlu0 %v2860, 96
      %v2862 = vpop.permute.xlu0 %2861
      %2864 = vst.msk [vmem:[%s235 + $0x6] sm:$0x3] %vm964, %v2862
      %v2866 = vrot.slane %v325, 2
      %v2867 = vsel %vm329, %v2866, 0
      %2869 = vmatprep.subr.mxu0 0.0
      %2870 = vmatpush1.msra.mxu0 %v241
      %2871 = vmatprep.subr.mxu0 0.0
      %2872 = vmatpush1.msra.mxu0 %v242
      %2873 = vmatprep.subr.mxu0 0.0
      %2874 = vmatpush1.msra.mxu0 0.0
      %2875 = vmatprep.subr.mxu0 0.0
      %2876 = vmatpush1.msra.mxu0 0.0
      %2877 = vmatprep.subr.mxu0 0.0
      %2878 = vmatpush1.msra.mxu0 0.0
      %2879 = vmatprep.subr.mxu0 0.0
      %2880 = vmatpush1.msra.mxu0 0.0
      %2881 = vmatprep.subr.mxu0 0.0
      %2882 = vmatpush1.msra.mxu0 0.0
      %2883 = vmatprep.subr.mxu0 0.0
      %2884 = vmatpush1.msra.mxu0 0.0
      %2885 = vmatprep.subr.mxu0 0.0
      %2886 = vmatpush1.msra.mxu0 0.0
      %2887 = vmatprep.subr.mxu0 0.0
      %2888 = vmatpush1.msra.mxu0 0.0
      %2889 = vmatprep.subr.mxu0 0.0
      %2890 = vmatpush1.msra.mxu0 0.0
      %2891 = vmatprep.subr.mxu0 0.0
      %2892 = vmatpush1.msra.mxu0 0.0
      %2893 = vmatprep.subr.mxu0 0.0
      %2894 = vmatpush1.msra.mxu0 0.0
      %2895 = vmatprep.subr.mxu0 0.0
      %2896 = vmatpush1.msra.mxu0 0.0
      %2897 = vmatprep.subr.mxu0 0.0
      %2898 = vmatpush1.msra.mxu0 0.0
      %2899 = vmatprep.subr.mxu0 0.0
      %2900 = vmatpush1.msra.mxu0 0.0
      %2901 = vmatprep.subr.mxu0 0.0
      %2902 = vmatpush1.msra.mxu0 0.0
      %2903 = vmatprep.subr.mxu0 0.0
      %2904 = vmatpush1.msra.mxu0 0.0
      %2905 = vmatprep.subr.mxu0 0.0
      %2906 = vmatpush1.msra.mxu0 0.0
      %2907 = vmatprep.subr.mxu0 0.0
      %2908 = vmatpush1.msra.mxu0 0.0
      %2909 = vmatprep.subr.mxu0 0.0
      %2910 = vmatpush1.msra.mxu0 0.0
      %2911 = vmatprep.subr.mxu0 0.0
      %2912 = vmatpush1.msra.mxu0 0.0
      %2913 = vmatprep.subr.mxu0 0.0
      %2914 = vmatpush1.msra.mxu0 0.0
      %2915 = vmatprep.subr.mxu0 0.0
      %2916 = vmatpush1.msra.mxu0 0.0
      %2917 = vmatprep.subr.mxu0 0.0
      %2918 = vmatpush1.msra.mxu0 0.0
      %2919 = vmatprep.subr.mxu0 0.0
      %2920 = vmatpush1.msra.mxu0 0.0
      %2921 = vmatprep.subr.mxu0 0.0
      %2922 = vmatpush1.msra.mxu0 0.0
      %2923 = vmatprep.subr.mxu0 0.0
      %2924 = vmatpush1.msra.mxu0 0.0
      %2925 = vmatprep.subr.mxu0 0.0
      %2926 = vmatpush1.msra.mxu0 0.0
      %2927 = vmatprep.subr.mxu0 0.0
      %2928 = vmatpush1.msra.mxu0 0.0
      %2929 = vmatprep.subr.mxu0 0.0
      %2930 = vmatpush1.msra.mxu0 0.0
      %2931 = vmatprep.subr.mxu0 0.0
      %2932 = vmatpush1.msra.mxu0 0.0
      %2933 = vmatprep.mubr.f32.mxu0 0.0
      %2934 = vmatmul.mubr.f32.gmra.mrb[0].mxu0 %v2867
      %v2935 = vpop.f32.mrb[0].mxu0
      %v2936 = vadd.f32 0.0, %v2935
      %v2937 = vpop.f32.mrb[0].mxu0
      %2938 = vdwg.mxu0
      %v2939 = vsel %vm329, %v325, 0
      %2941 = vmatprep.subr.mxu0 0.0
      %2942 = vmatpush1.msra.mxu0 %v238
      %2943 = vmatprep.subr.mxu0 0.0
      %2944 = vmatpush1.msra.mxu0 %v239
      %2945 = vmatprep.subr.mxu0 0.0
      %2946 = vmatpush1.msra.mxu0 0.0
      %2947 = vmatprep.subr.mxu0 0.0
      %2948 = vmatpush1.msra.mxu0 0.0
      %2949 = vmatprep.subr.mxu0 0.0
      %2950 = vmatpush1.msra.mxu0 0.0
      %2951 = vmatprep.subr.mxu0 0.0
      %2952 = vmatpush1.msra.mxu0 0.0
      %2953 = vmatprep.subr.mxu0 0.0
      %2954 = vmatpush1.msra.mxu0 0.0
      %2955 = vmatprep.subr.mxu0 0.0
      %2956 = vmatpush1.msra.mxu0 0.0
      %2957 = vmatprep.subr.mxu0 0.0
      %2958 = vmatpush1.msra.mxu0 0.0
      %2959 = vmatprep.subr.mxu0 0.0
      %2960 = vmatpush1.msra.mxu0 0.0
      %2961 = vmatprep.subr.mxu0 0.0
      %2962 = vmatpush1.msra.mxu0 0.0
      %2963 = vmatprep.subr.mxu0 0.0
      %2964 = vmatpush1.msra.mxu0 0.0
      %2965 = vmatprep.subr.mxu0 0.0
      %2966 = vmatpush1.msra.mxu0 0.0
      %2967 = vmatprep.subr.mxu0 0.0
      %2968 = vmatpush1.msra.mxu0 0.0
      %2969 = vmatprep.subr.mxu0 0.0
      %2970 = vmatpush1.msra.mxu0 0.0
      %2971 = vmatprep.subr.mxu0 0.0
      %2972 = vmatpush1.msra.mxu0 0.0
      %2973 = vmatprep.subr.mxu0 0.0
      %2974 = vmatpush1.msra.mxu0 0.0
      %2975 = vmatprep.subr.mxu0 0.0
      %2976 = vmatpush1.msra.mxu0 0.0
      %2977 = vmatprep.subr.mxu0 0.0
      %2978 = vmatpush1.msra.mxu0 0.0
      %2979 = vmatprep.subr.mxu0 0.0
      %2980 = vmatpush1.msra.mxu0 0.0
      %2981 = vmatprep.subr.mxu0 0.0
      %2982 = vmatpush1.msra.mxu0 0.0
      %2983 = vmatprep.subr.mxu0 0.0
      %2984 = vmatpush1.msra.mxu0 0.0
      %2985 = vmatprep.subr.mxu0 0.0
      %2986 = vmatpush1.msra.mxu0 0.0
      %2987 = vmatprep.subr.mxu0 0.0
      %2988 = vmatpush1.msra.mxu0 0.0
      %2989 = vmatprep.subr.mxu0 0.0
      %2990 = vmatpush1.msra.mxu0 0.0
      %2991 = vmatprep.subr.mxu0 0.0
      %2992 = vmatpush1.msra.mxu0 0.0
      %2993 = vmatprep.subr.mxu0 0.0
      %2994 = vmatpush1.msra.mxu0 0.0
      %2995 = vmatprep.subr.mxu0 0.0
      %2996 = vmatpush1.msra.mxu0 0.0
      %2997 = vmatprep.subr.mxu0 0.0
      %2998 = vmatpush1.msra.mxu0 0.0
      %2999 = vmatprep.subr.mxu0 0.0
      %3000 = vmatpush1.msra.mxu0 0.0
      %3001 = vmatprep.subr.mxu0 0.0
      %3002 = vmatpush1.msra.mxu0 0.0
      %3003 = vmatprep.subr.mxu0 0.0
      %3004 = vmatpush1.msra.mxu0 0.0
      %3005 = vmatprep.mubr.f32.mxu0 0.0
      %3006 = vmatmul.mubr.f32.gmra.mrb[0].mxu0 %v2939
      %v3007 = vpop.f32.mrb[0].mxu0
      %v3008 = vadd.f32 %v2936, %v3007
      %v3009 = vpop.f32.mrb[0].mxu0
      %3010 = vdwg.mxu0
      %v3011 = vadd.f32 %v3008, %v477
      %3012 = vst.msk [vmem:[%s235 + $0x8] sm:$0x3] %vm480, %v3011
      %v3013 = vrot.slane %v325, 6
      %v3014 = vsel %vm329, %v3013, 0
      %3016 = vmatprep.subr.mxu0 0.0
      %3017 = vmatpush1.msra.mxu0 %v241
      %3018 = vmatprep.subr.mxu0 0.0
      %3019 = vmatpush1.msra.mxu0 %v242
      %3020 = vmatprep.subr.mxu0 0.0
      %3021 = vmatpush1.msra.mxu0 0.0
      %3022 = vmatprep.subr.mxu0 0.0
      %3023 = vmatpush1.msra.mxu0 0.0
      %3024 = vmatprep.subr.mxu0 0.0
      %3025 = vmatpush1.msra.mxu0 0.0
      %3026 = vmatprep.subr.mxu0 0.0
      %3027 = vmatpush1.msra.mxu0 0.0
      %3028 = vmatprep.subr.mxu0 0.0
      %3029 = vmatpush1.msra.mxu0 0.0
      %3030 = vmatprep.subr.mxu0 0.0
      %3031 = vmatpush1.msra.mxu0 0.0
      %3032 = vmatprep.subr.mxu0 0.0
      %3033 = vmatpush1.msra.mxu0 0.0
      %3034 = vmatprep.subr.mxu0 0.0
      %3035 = vmatpush1.msra.mxu0 0.0
      %3036 = vmatprep.subr.mxu0 0.0
      %3037 = vmatpush1.msra.mxu0 0.0
      %3038 = vmatprep.subr.mxu0 0.0
      %3039 = vmatpush1.msra.mxu0 0.0
      %3040 = vmatprep.subr.mxu0 0.0
      %3041 = vmatpush1.msra.mxu0 0.0
      %3042 = vmatprep.subr.mxu0 0.0
      %3043 = vmatpush1.msra.mxu0 0.0
      %3044 = vmatprep.subr.mxu0 0.0
      %3045 = vmatpush1.msra.mxu0 0.0
      %3046 = vmatprep.subr.mxu0 0.0
      %3047 = vmatpush1.msra.mxu0 0.0
      %3048 = vmatprep.subr.mxu0 0.0
      %3049 = vmatpush1.msra.mxu0 0.0
      %3050 = vmatprep.subr.mxu0 0.0
      %3051 = vmatpush1.msra.mxu0 0.0
      %3052 = vmatprep.subr.mxu0 0.0
      %3053 = vmatpush1.msra.mxu0 0.0
      %3054 = vmatprep.subr.mxu0 0.0
      %3055 = vmatpush1.msra.mxu0 0.0
      %3056 = vmatprep.subr.mxu0 0.0
      %3057 = vmatpush1.msra.mxu0 0.0
      %3058 = vmatprep.subr.mxu0 0.0
      %3059 = vmatpush1.msra.mxu0 0.0
      %3060 = vmatprep.subr.mxu0 0.0
      %3061 = vmatpush1.msra.mxu0 0.0
      %3062 = vmatprep.subr.mxu0 0.0
      %3063 = vmatpush1.msra.mxu0 0.0
      %3064 = vmatprep.subr.mxu0 0.0
      %3065 = vmatpush1.msra.mxu0 0.0
      %3066 = vmatprep.subr.mxu0 0.0
      %3067 = vmatpush1.msra.mxu0 0.0
      %3068 = vmatprep.subr.mxu0 0.0
      %3069 = vmatpush1.msra.mxu0 0.0
      %3070 = vmatprep.subr.mxu0 0.0
      %3071 = vmatpush1.msra.mxu0 0.0
      %3072 = vmatprep.subr.mxu0 0.0
      %3073 = vmatpush1.msra.mxu0 0.0
      %3074 = vmatprep.subr.mxu0 0.0
      %3075 = vmatpush1.msra.mxu0 0.0
      %3076 = vmatprep.subr.mxu0 0.0
      %3077 = vmatpush1.msra.mxu0 0.0
      %3078 = vmatprep.subr.mxu0 0.0
      %3079 = vmatpush1.msra.mxu0 0.0
      %3080 = vmatprep.mubr.f32.mxu0 0.0
      %3081 = vmatmul.mubr.f32.gmra.mrb[0].mxu0 %v3014
      %v3082 = vpop.f32.mrb[0].mxu0
      %v3083 = vadd.f32 0.0, %v3082
      %v3084 = vpop.f32.mrb[0].mxu0
      %3085 = vdwg.mxu0
      %v3086 = vrot.slane %v325, 4
      %v3087 = vsel %vm329, %v3086, 0
      %3089 = vmatprep.subr.mxu0 0.0
      %3090 = vmatpush1.msra.mxu0 %v238
      %3091 = vmatprep.subr.mxu0 0.0
      %3092 = vmatpush1.msra.mxu0 %v239
      %3093 = vmatprep.subr.mxu0 0.0
      %3094 = vmatpush1.msra.mxu0 0.0
      %3095 = vmatprep.subr.mxu0 0.0
      %3096 = vmatpush1.msra.mxu0 0.0
      %3097 = vmatprep.subr.mxu0 0.0
      %3098 = vmatpush1.msra.mxu0 0.0
      %3099 = vmatprep.subr.mxu0 0.0
      %3100 = vmatpush1.msra.mxu0 0.0
      %3101 = vmatprep.subr.mxu0 0.0
      %3102 = vmatpush1.msra.mxu0 0.0
      %3103 = vmatprep.subr.mxu0 0.0
      %3104 = vmatpush1.msra.mxu0 0.0
      %3105 = vmatprep.subr.mxu0 0.0
      %3106 = vmatpush1.msra.mxu0 0.0
      %3107 = vmatprep.subr.mxu0 0.0
      %3108 = vmatpush1.msra.mxu0 0.0
      %3109 = vmatprep.subr.mxu0 0.0
      %3110 = vmatpush1.msra.mxu0 0.0
      %3111 = vmatprep.subr.mxu0 0.0
      %3112 = vmatpush1.msra.mxu0 0.0
      %3113 = vmatprep.subr.mxu0 0.0
      %3114 = vmatpush1.msra.mxu0 0.0
      %3115 = vmatprep.subr.mxu0 0.0
      %3116 = vmatpush1.msra.mxu0 0.0
      %3117 = vmatprep.subr.mxu0 0.0
      %3118 = vmatpush1.msra.mxu0 0.0
      %3119 = vmatprep.subr.mxu0 0.0
      %3120 = vmatpush1.msra.mxu0 0.0
      %3121 = vmatprep.subr.mxu0 0.0
      %3122 = vmatpush1.msra.mxu0 0.0
      %3123 = vmatprep.subr.mxu0 0.0
      %3124 = vmatpush1.msra.mxu0 0.0
      %3125 = vmatprep.subr.mxu0 0.0
      %3126 = vmatpush1.msra.mxu0 0.0
      %3127 = vmatprep.subr.mxu0 0.0
      %3128 = vmatpush1.msra.mxu0 0.0
      %3129 = vmatprep.subr.mxu0 0.0
      %3130 = vmatpush1.msra.mxu0 0.0
      %3131 = vmatprep.subr.mxu0 0.0
      %3132 = vmatpush1.msra.mxu0 0.0
      %3133 = vmatprep.subr.mxu0 0.0
      %3134 = vmatpush1.msra.mxu0 0.0
      %3135 = vmatprep.subr.mxu0 0.0
      %3136 = vmatpush1.msra.mxu0 0.0
      %3137 = vmatprep.subr.mxu0 0.0
      %3138 = vmatpush1.msra.mxu0 0.0
      %3139 = vmatprep.subr.mxu0 0.0
      %3140 = vmatpush1.msra.mxu0 0.0
      %3141 = vmatprep.subr.mxu0 0.0
      %3142 = vmatpush1.msra.mxu0 0.0
      %3143 = vmatprep.subr.mxu0 0.0
      %3144 = vmatpush1.msra.mxu0 0.0
      %3145 = vmatprep.subr.mxu0 0.0
      %3146 = vmatpush1.msra.mxu0 0.0
      %3147 = vmatprep.subr.mxu0 0.0
      %3148 = vmatpush1.msra.mxu0 0.0
      %3149 = vmatprep.subr.mxu0 0.0
      %3150 = vmatpush1.msra.mxu0 0.0
      %3151 = vmatprep.subr.mxu0 0.0
      %3152 = vmatpush1.msra.mxu0 0.0
      %3153 = vmatprep.mubr.f32.mxu0 0.0
      %3154 = vmatmul.mubr.f32.gmra.mrb[0].mxu0 %v3087
      %v3155 = vpop.f32.mrb[0].mxu0
      %v3156 = vadd.f32 %v3083, %v3155
      %v3157 = vpop.f32.mrb[0].mxu0
      %3158 = vdwg.mxu0
      %v3159 = vadd.f32 %v3156, %v477
      %v3162 = vunpack.c.l.s4 1983009808
      %v3163 = vunpack.c.0.s8 %v3162
      %v3164 = vlaneseq
      %v3165 = vshrl.u32 %v3164, 7
      %v3166 = vsub.s32 %v3163, %v3165
      %v3167 = vrot.slane %v3159, %v3166
      %3168 = vrot.lane.b32.xlu0 %v3167, 32
      %v3169 = vpop.permute.xlu0 %3168
      %3171 = vst.msk [vmem:[%s235 + $0x8] sm:$0x3] %vm640, %v3169
      %3172 = vrot.lane.b32.xlu0 %v2866, 112
      %v3173 = vpop.permute.xlu0 %3172
      %v3174 = vsel %vm329, %v3173, 0
      %3176 = vmatprep.subr.mxu0 0.0
      %3177 = vmatpush1.msra.mxu0 %v241
      %3178 = vmatprep.subr.mxu0 0.0
      %3179 = vmatpush1.msra.mxu0 %v242
      %3180 = vmatprep.subr.mxu0 0.0
      %3181 = vmatpush1.msra.mxu0 0.0
      %3182 = vmatprep.subr.mxu0 0.0
      %3183 = vmatpush1.msra.mxu0 0.0
      %3184 = vmatprep.subr.mxu0 0.0
      %3185 = vmatpush1.msra.mxu0 0.0
      %3186 = vmatprep.subr.mxu0 0.0
      %3187 = vmatpush1.msra.mxu0 0.0
      %3188 = vmatprep.subr.mxu0 0.0
      %3189 = vmatpush1.msra.mxu0 0.0
      %3190 = vmatprep.subr.mxu0 0.0
      %3191 = vmatpush1.msra.mxu0 0.0
      %3192 = vmatprep.subr.mxu0 0.0
      %3193 = vmatpush1.msra.mxu0 0.0
      %3194 = vmatprep.subr.mxu0 0.0
      %3195 = vmatpush1.msra.mxu0 0.0
      %3196 = vmatprep.subr.mxu0 0.0
      %3197 = vmatpush1.msra.mxu0 0.0
      %3198 = vmatprep.subr.mxu0 0.0
      %3199 = vmatpush1.msra.mxu0 0.0
      %3200 = vmatprep.subr.mxu0 0.0
      %3201 = vmatpush1.msra.mxu0 0.0
      %3202 = vmatprep.subr.mxu0 0.0
      %3203 = vmatpush1.msra.mxu0 0.0
      %3204 = vmatprep.subr.mxu0 0.0
      %3205 = vmatpush1.msra.mxu0 0.0
      %3206 = vmatprep.subr.mxu0 0.0
      %3207 = vmatpush1.msra.mxu0 0.0
      %3208 = vmatprep.subr.mxu0 0.0
      %3209 = vmatpush1.msra.mxu0 0.0
      %3210 = vmatprep.subr.mxu0 0.0
      %3211 = vmatpush1.msra.mxu0 0.0
      %3212 = vmatprep.subr.mxu0 0.0
      %3213 = vmatpush1.msra.mxu0 0.0
      %3214 = vmatprep.subr.mxu0 0.0
      %3215 = vmatpush1.msra.mxu0 0.0
      %3216 = vmatprep.subr.mxu0 0.0
      %3217 = vmatpush1.msra.mxu0 0.0
      %3218 = vmatprep.subr.mxu0 0.0
      %3219 = vmatpush1.msra.mxu0 0.0
      %3220 = vmatprep.subr.mxu0 0.0
      %3221 = vmatpush1.msra.mxu0 0.0
      %3222 = vmatprep.subr.mxu0 0.0
      %3223 = vmatpush1.msra.mxu0 0.0
      %3224 = vmatprep.subr.mxu0 0.0
      %3225 = vmatpush1.msra.mxu0 0.0
      %3226 = vmatprep.subr.mxu0 0.0
      %3227 = vmatpush1.msra.mxu0 0.0
      %3228 = vmatprep.subr.mxu0 0.0
      %3229 = vmatpush1.msra.mxu0 0.0
      %3230 = vmatprep.subr.mxu0 0.0
      %3231 = vmatpush1.msra.mxu0 0.0
      %3232 = vmatprep.subr.mxu0 0.0
      %3233 = vmatpush1.msra.mxu0 0.0
      %3234 = vmatprep.subr.mxu0 0.0
      %3235 = vmatpush1.msra.mxu0 0.0
      %3236 = vmatprep.subr.mxu0 0.0
      %3237 = vmatpush1.msra.mxu0 0.0
      %3238 = vmatprep.subr.mxu0 0.0
      %3239 = vmatpush1.msra.mxu0 0.0
      %3240 = vmatprep.mubr.f32.mxu0 0.0
      %3241 = vmatmul.mubr.f32.gmra.mrb[0].mxu0 %v3174
      %v3242 = vpop.f32.mrb[0].mxu0
      %v3243 = vadd.f32 0.0, %v3242
      %v3244 = vpop.f32.mrb[0].mxu0
      %3245 = vdwg.mxu0
      %3246 = vrot.lane.b32.xlu0 %v325, 112
      %v3247 = vpop.permute.xlu0 %3246
      %v3248 = vsel %vm329, %v3247, 0
      %3250 = vmatprep.subr.mxu0 0.0
      %3251 = vmatpush1.msra.mxu0 %v238
      %3252 = vmatprep.subr.mxu0 0.0
      %3253 = vmatpush1.msra.mxu0 %v239
      %3254 = vmatprep.subr.mxu0 0.0
      %3255 = vmatpush1.msra.mxu0 0.0
      %3256 = vmatprep.subr.mxu0 0.0
      %3257 = vmatpush1.msra.mxu0 0.0
      %3258 = vmatprep.subr.mxu0 0.0
      %3259 = vmatpush1.msra.mxu0 0.0
      %3260 = vmatprep.subr.mxu0 0.0
      %3261 = vmatpush1.msra.mxu0 0.0
      %3262 = vmatprep.subr.mxu0 0.0
      %3263 = vmatpush1.msra.mxu0 0.0
      %3264 = vmatprep.subr.mxu0 0.0
      %3265 = vmatpush1.msra.mxu0 0.0
      %3266 = vmatprep.subr.mxu0 0.0
      %3267 = vmatpush1.msra.mxu0 0.0
      %3268 = vmatprep.subr.mxu0 0.0
      %3269 = vmatpush1.msra.mxu0 0.0
      %3270 = vmatprep.subr.mxu0 0.0
      %3271 = vmatpush1.msra.mxu0 0.0
      %3272 = vmatprep.subr.mxu0 0.0
      %3273 = vmatpush1.msra.mxu0 0.0
      %3274 = vmatprep.subr.mxu0 0.0
      %3275 = vmatpush1.msra.mxu0 0.0
      %3276 = vmatprep.subr.mxu0 0.0
      %3277 = vmatpush1.msra.mxu0 0.0
      %3278 = vmatprep.subr.mxu0 0.0
      %3279 = vmatpush1.msra.mxu0 0.0
      %3280 = vmatprep.subr.mxu0 0.0
      %3281 = vmatpush1.msra.mxu0 0.0
      %3282 = vmatprep.subr.mxu0 0.0
      %3283 = vmatpush1.msra.mxu0 0.0
      %3284 = vmatprep.subr.mxu0 0.0
      %3285 = vmatpush1.msra.mxu0 0.0
      %3286 = vmatprep.subr.mxu0 0.0
      %3287 = vmatpush1.msra.mxu0 0.0
      %3288 = vmatprep.subr.mxu0 0.0
      %3289 = vmatpush1.msra.mxu0 0.0
      %3290 = vmatprep.subr.mxu0 0.0
      %3291 = vmatpush1.msra.mxu0 0.0
      %3292 = vmatprep.subr.mxu0 0.0
      %3293 = vmatpush1.msra.mxu0 0.0
      %3294 = vmatprep.subr.mxu0 0.0
      %3295 = vmatpush1.msra.mxu0 0.0
      %3296 = vmatprep.subr.mxu0 0.0
      %3297 = vmatpush1.msra.mxu0 0.0
      %3298 = vmatprep.subr.mxu0 0.0
      %3299 = vmatpush1.msra.mxu0 0.0
      %3300 = vmatprep.subr.mxu0 0.0
      %3301 = vmatpush1.msra.mxu0 0.0
      %3302 = vmatprep.subr.mxu0 0.0
      %3303 = vmatpush1.msra.mxu0 0.0
      %3304 = vmatprep.subr.mxu0 0.0
      %3305 = vmatpush1.msra.mxu0 0.0
      %3306 = vmatprep.subr.mxu0 0.0
      %3307 = vmatpush1.msra.mxu0 0.0
      %3308 = vmatprep.subr.mxu0 0.0
      %3309 = vmatpush1.msra.mxu0 0.0
      %3310 = vmatprep.subr.mxu0 0.0
      %3311 = vmatpush1.msra.mxu0 0.0
      %3312 = vmatprep.subr.mxu0 0.0
      %3313 = vmatpush1.msra.mxu0 0.0
      %3314 = vmatprep.mubr.f32.mxu0 0.0
      %3315 = vmatmul.mubr.f32.gmra.mrb[0].mxu0 %v3248
      %v3316 = vpop.f32.mrb[0].mxu0
      %v3317 = vadd.f32 %v3243, %v3316
      %v3318 = vpop.f32.mrb[0].mxu0
      %3319 = vdwg.mxu0
      %v3320 = vadd.f32 %v3317, %v477
      %v3323 = vunpack.c.l.s4 1983009808
      %v3324 = vunpack.c.0.s8 %v3323
      %v3325 = vlaneseq
      %v3326 = vshrl.u32 %v3325, 7
      %v3327 = vsub.s32 %v3324, %v3326
      %v3328 = vrot.slane %v3320, %v3327
      %3329 = vrot.lane.b32.xlu0 %v3328, 64
      %v3330 = vpop.permute.xlu0 %3329
      %3332 = vst.msk [vmem:[%s235 + $0x8] sm:$0x3] %vm802, %v3330
      %3333 = vrot.lane.b32.xlu0 %v3013, 112
      %v3334 = vpop.permute.xlu0 %3333
      %v3335 = vsel %vm329, %v3334, 0
      %3337 = vmatprep.subr.mxu0 0.0
      %3338 = vmatpush1.msra.mxu0 %v241
      %3339 = vmatprep.subr.mxu0 0.0
      %3340 = vmatpush1.msra.mxu0 %v242
      %3341 = vmatprep.subr.mxu0 0.0
      %3342 = vmatpush1.msra.mxu0 0.0
      %3343 = vmatprep.subr.mxu0 0.0
      %3344 = vmatpush1.msra.mxu0 0.0
      %3345 = vmatprep.subr.mxu0 0.0
      %3346 = vmatpush1.msra.mxu0 0.0
      %3347 = vmatprep.subr.mxu0 0.0
      %3348 = vmatpush1.msra.mxu0 0.0
      %3349 = vmatprep.subr.mxu0 0.0
      %3350 = vmatpush1.msra.mxu0 0.0
      %3351 = vmatprep.subr.mxu0 0.0
      %3352 = vmatpush1.msra.mxu0 0.0
      %3353 = vmatprep.subr.mxu0 0.0
      %3354 = vmatpush1.msra.mxu0 0.0
      %3355 = vmatprep.subr.mxu0 0.0
      %3356 = vmatpush1.msra.mxu0 0.0
      %3357 = vmatprep.subr.mxu0 0.0
      %3358 = vmatpush1.msra.mxu0 0.0
      %3359 = vmatprep.subr.mxu0 0.0
      %3360 = vmatpush1.msra.mxu0 0.0
      %3361 = vmatprep.subr.mxu0 0.0
      %3362 = vmatpush1.msra.mxu0 0.0
      %3363 = vmatprep.subr.mxu0 0.0
      %3364 = vmatpush1.msra.mxu0 0.0
      %3365 = vmatprep.subr.mxu0 0.0
      %3366 = vmatpush1.msra.mxu0 0.0
      %3367 = vmatprep.subr.mxu0 0.0
      %3368 = vmatpush1.msra.mxu0 0.0
      %3369 = vmatprep.subr.mxu0 0.0
      %3370 = vmatpush1.msra.mxu0 0.0
      %3371 = vmatprep.subr.mxu0 0.0
      %3372 = vmatpush1.msra.mxu0 0.0
      %3373 = vmatprep.subr.mxu0 0.0
      %3374 = vmatpush1.msra.mxu0 0.0
      %3375 = vmatprep.subr.mxu0 0.0
      %3376 = vmatpush1.msra.mxu0 0.0
      %3377 = vmatprep.subr.mxu0 0.0
      %3378 = vmatpush1.msra.mxu0 0.0
      %3379 = vmatprep.subr.mxu0 0.0
      %3380 = vmatpush1.msra.mxu0 0.0
      %3381 = vmatprep.subr.mxu0 0.0
      %3382 = vmatpush1.msra.mxu0 0.0
      %3383 = vmatprep.subr.mxu0 0.0
      %3384 = vmatpush1.msra.mxu0 0.0
      %3385 = vmatprep.subr.mxu0 0.0
      %3386 = vmatpush1.msra.mxu0 0.0
      %3387 = vmatprep.subr.mxu0 0.0
      %3388 = vmatpush1.msra.mxu0 0.0
      %3389 = vmatprep.subr.mxu0 0.0
      %3390 = vmatpush1.msra.mxu0 0.0
      %3391 = vmatprep.subr.mxu0 0.0
      %3392 = vmatpush1.msra.mxu0 0.0
      %3393 = vmatprep.subr.mxu0 0.0
      %3394 = vmatpush1.msra.mxu0 0.0
      %3395 = vmatprep.subr.mxu0 0.0
      %3396 = vmatpush1.msra.mxu0 0.0
      %3397 = vmatprep.subr.mxu0 0.0
      %3398 = vmatpush1.msra.mxu0 0.0
      %3399 = vmatprep.subr.mxu0 0.0
      %3400 = vmatpush1.msra.mxu0 0.0
      %3401 = vmatprep.mubr.f32.mxu0 0.0
      %3402 = vmatmul.mubr.f32.gmra.mrb[0].mxu0 %v3335
      %v3403 = vpop.f32.mrb[0].mxu0
      %v3404 = vadd.f32 0.0, %v3403
      %v3405 = vpop.f32.mrb[0].mxu0
      %3406 = vdwg.mxu0
      %3407 = vrot.lane.b32.xlu0 %v3086, 112
      %v3408 = vpop.permute.xlu0 %3407
      %v3409 = vsel %vm329, %v3408, 0
      %3411 = vmatprep.subr.mxu0 0.0
      %3412 = vmatpush1.msra.mxu0 %v238
      %3413 = vmatprep.subr.mxu0 0.0
      %3414 = vmatpush1.msra.mxu0 %v239
      %3415 = vmatprep.subr.mxu0 0.0
      %3416 = vmatpush1.msra.mxu0 0.0
      %3417 = vmatprep.subr.mxu0 0.0
      %3418 = vmatpush1.msra.mxu0 0.0
      %3419 = vmatprep.subr.mxu0 0.0
      %3420 = vmatpush1.msra.mxu0 0.0
      %3421 = vmatprep.subr.mxu0 0.0
      %3422 = vmatpush1.msra.mxu0 0.0
      %3423 = vmatprep.subr.mxu0 0.0
      %3424 = vmatpush1.msra.mxu0 0.0
      %3425 = vmatprep.subr.mxu0 0.0
      %3426 = vmatpush1.msra.mxu0 0.0
      %3427 = vmatprep.subr.mxu0 0.0
      %3428 = vmatpush1.msra.mxu0 0.0
      %3429 = vmatprep.subr.mxu0 0.0
      %3430 = vmatpush1.msra.mxu0 0.0
      %3431 = vmatprep.subr.mxu0 0.0
      %3432 = vmatpush1.msra.mxu0 0.0
      %3433 = vmatprep.subr.mxu0 0.0
      %3434 = vmatpush1.msra.mxu0 0.0
      %3435 = vmatprep.subr.mxu0 0.0
      %3436 = vmatpush1.msra.mxu0 0.0
      %3437 = vmatprep.subr.mxu0 0.0
      %3438 = vmatpush1.msra.mxu0 0.0
      %3439 = vmatprep.subr.mxu0 0.0
      %3440 = vmatpush1.msra.mxu0 0.0
      %3441 = vmatprep.subr.mxu0 0.0
      %3442 = vmatpush1.msra.mxu0 0.0
      %3443 = vmatprep.subr.mxu0 0.0
      %3444 = vmatpush1.msra.mxu0 0.0
      %3445 = vmatprep.subr.mxu0 0.0
      %3446 = vmatpush1.msra.mxu0 0.0
      %3447 = vmatprep.subr.mxu0 0.0
      %3448 = vmatpush1.msra.mxu0 0.0
      %3449 = vmatprep.subr.mxu0 0.0
      %3450 = vmatpush1.msra.mxu0 0.0
      %3451 = vmatprep.subr.mxu0 0.0
      %3452 = vmatpush1.msra.mxu0 0.0
      %3453 = vmatprep.subr.mxu0 0.0
      %3454 = vmatpush1.msra.mxu0 0.0
      %3455 = vmatprep.subr.mxu0 0.0
      %3456 = vmatpush1.msra.mxu0 0.0
      %3457 = vmatprep.subr.mxu0 0.0
      %3458 = vmatpush1.msra.mxu0 0.0
      %3459 = vmatprep.subr.mxu0 0.0
      %3460 = vmatpush1.msra.mxu0 0.0
      %3461 = vmatprep.subr.mxu0 0.0
      %3462 = vmatpush1.msra.mxu0 0.0
      %3463 = vmatprep.subr.mxu0 0.0
      %3464 = vmatpush1.msra.mxu0 0.0
      %3465 = vmatprep.subr.mxu0 0.0
      %3466 = vmatpush1.msra.mxu0 0.0
      %3467 = vmatprep.subr.mxu0 0.0
      %3468 = vmatpush1.msra.mxu0 0.0
      %3469 = vmatprep.subr.mxu0 0.0
      %3470 = vmatpush1.msra.mxu0 0.0
      %3471 = vmatprep.subr.mxu0 0.0
      %3472 = vmatpush1.msra.mxu0 0.0
      %3473 = vmatprep.subr.mxu0 0.0
      %3474 = vmatpush1.msra.mxu0 0.0
      %3475 = vmatprep.mubr.f32.mxu0 0.0
      %3476 = vmatmul.mubr.f32.gmra.mrb[0].mxu0 %v3409
      %v3477 = vpop.f32.mrb[0].mxu0
      %v3478 = vadd.f32 %v3404, %v3477
      %v3479 = vpop.f32.mrb[0].mxu0
      %3480 = vdwg.mxu0
      %v3481 = vadd.f32 %v3478, %v477
      %v3484 = vunpack.c.l.s4 1983009808
      %v3485 = vunpack.c.0.s8 %v3484
      %v3486 = vlaneseq
      %v3487 = vshrl.u32 %v3486, 7
      %v3488 = vsub.s32 %v3485, %v3487
      %v3489 = vrot.slane %v3481, %v3488
      %3490 = vrot.lane.b32.xlu0 %v3489, 96
      %v3491 = vpop.permute.xlu0 %3490
      %3493 = vst.msk [vmem:[%s235 + $0x8] sm:$0x3] %vm964, %v3491
      %3494 = vrot.lane.b32.xlu0 %v2866, 96
      %v3495 = vpop.permute.xlu0 %3494
      %v3496 = vsel %vm329, %v3495, 0
      %3498 = vmatprep.subr.mxu0 0.0
      %3499 = vmatpush1.msra.mxu0 %v241
      %3500 = vmatprep.subr.mxu0 0.0
      %3501 = vmatpush1.msra.mxu0 %v242
      %3502 = vmatprep.subr.mxu0 0.0
      %3503 = vmatpush1.msra.mxu0 0.0
      %3504 = vmatprep.subr.mxu0 0.0
      %3505 = vmatpush1.msra.mxu0 0.0
      %3506 = vmatprep.subr.mxu0 0.0
      %3507 = vmatpush1.msra.mxu0 0.0
      %3508 = vmatprep.subr.mxu0 0.0
      %3509 = vmatpush1.msra.mxu0 0.0
      %3510 = vmatprep.subr.mxu0 0.0
      %3511 = vmatpush1.msra.mxu0 0.0
      %3512 = vmatprep.subr.mxu0 0.0
      %3513 = vmatpush1.msra.mxu0 0.0
      %3514 = vmatprep.subr.mxu0 0.0
      %3515 = vmatpush1.msra.mxu0 0.0
      %3516 = vmatprep.subr.mxu0 0.0
      %3517 = vmatpush1.msra.mxu0 0.0
      %3518 = vmatprep.subr.mxu0 0.0
      %3519 = vmatpush1.msra.mxu0 0.0
      %3520 = vmatprep.subr.mxu0 0.0
      %3521 = vmatpush1.msra.mxu0 0.0
      %3522 = vmatprep.subr.mxu0 0.0
      %3523 = vmatpush1.msra.mxu0 0.0
      %3524 = vmatprep.subr.mxu0 0.0
      %3525 = vmatpush1.msra.mxu0 0.0
      %3526 = vmatprep.subr.mxu0 0.0
      %3527 = vmatpush1.msra.mxu0 0.0
      %3528 = vmatprep.subr.mxu0 0.0
      %3529 = vmatpush1.msra.mxu0 0.0
      %3530 = vmatprep.subr.mxu0 0.0
      %3531 = vmatpush1.msra.mxu0 0.0
      %3532 = vmatprep.subr.mxu0 0.0
      %3533 = vmatpush1.msra.mxu0 0.0
      %3534 = vmatprep.subr.mxu0 0.0
      %3535 = vmatpush1.msra.mxu0 0.0
      %3536 = vmatprep.subr.mxu0 0.0
      %3537 = vmatpush1.msra.mxu0 0.0
      %3538 = vmatprep.subr.mxu0 0.0
      %3539 = vmatpush1.msra.mxu0 0.0
      %3540 = vmatprep.subr.mxu0 0.0
      %3541 = vmatpush1.msra.mxu0 0.0
      %3542 = vmatprep.subr.mxu0 0.0
      %3543 = vmatpush1.msra.mxu0 0.0
      %3544 = vmatprep.subr.mxu0 0.0
      %3545 = vmatpush1.msra.mxu0 0.0
      %3546 = vmatprep.subr.mxu0 0.0
      %3547 = vmatpush1.msra.mxu0 0.0
      %3548 = vmatprep.subr.mxu0 0.0
      %3549 = vmatpush1.msra.mxu0 0.0
      %3550 = vmatprep.subr.mxu0 0.0
      %3551 = vmatpush1.msra.mxu0 0.0
      %3552 = vmatprep.subr.mxu0 0.0
      %3553 = vmatpush1.msra.mxu0 0.0
      %3554 = vmatprep.subr.mxu0 0.0
      %3555 = vmatpush1.msra.mxu0 0.0
      %3556 = vmatprep.subr.mxu0 0.0
      %3557 = vmatpush1.msra.mxu0 0.0
      %3558 = vmatprep.subr.mxu0 0.0
      %3559 = vmatpush1.msra.mxu0 0.0
      %3560 = vmatprep.subr.mxu0 0.0
      %3561 = vmatpush1.msra.mxu0 0.0
      %3562 = vmatprep.mubr.f32.mxu0 0.0
      %3563 = vmatmul.mubr.f32.gmra.mrb[0].mxu0 %v3496
      %v3564 = vpop.f32.mrb[0].mxu0
      %v3565 = vadd.f32 0.0, %v3564
      %v3566 = vpop.f32.mrb[0].mxu0
      %3567 = vdwg.mxu0
      %3568 = vrot.lane.b32.xlu0 %v325, 96
      %v3569 = vpop.permute.xlu0 %3568
      %v3570 = vsel %vm329, %v3569, 0
      %3572 = vmatprep.subr.mxu0 0.0
      %3573 = vmatpush1.msra.mxu0 %v238
      %3574 = vmatprep.subr.mxu0 0.0
      %3575 = vmatpush1.msra.mxu0 %v239
      %3576 = vmatprep.subr.mxu0 0.0
      %3577 = vmatpush1.msra.mxu0 0.0
      %3578 = vmatprep.subr.mxu0 0.0
      %3579 = vmatpush1.msra.mxu0 0.0
      %3580 = vmatprep.subr.mxu0 0.0
      %3581 = vmatpush1.msra.mxu0 0.0
      %3582 = vmatprep.subr.mxu0 0.0
      %3583 = vmatpush1.msra.mxu0 0.0
      %3584 = vmatprep.subr.mxu0 0.0
      %3585 = vmatpush1.msra.mxu0 0.0
      %3586 = vmatprep.subr.mxu0 0.0
      %3587 = vmatpush1.msra.mxu0 0.0
      %3588 = vmatprep.subr.mxu0 0.0
      %3589 = vmatpush1.msra.mxu0 0.0
      %3590 = vmatprep.subr.mxu0 0.0
      %3591 = vmatpush1.msra.mxu0 0.0
      %3592 = vmatprep.subr.mxu0 0.0
      %3593 = vmatpush1.msra.mxu0 0.0
      %3594 = vmatprep.subr.mxu0 0.0
      %3595 = vmatpush1.msra.mxu0 0.0
      %3596 = vmatprep.subr.mxu0 0.0
      %3597 = vmatpush1.msra.mxu0 0.0
      %3598 = vmatprep.subr.mxu0 0.0
      %3599 = vmatpush1.msra.mxu0 0.0
      %3600 = vmatprep.subr.mxu0 0.0
      %3601 = vmatpush1.msra.mxu0 0.0
      %3602 = vmatprep.subr.mxu0 0.0
      %3603 = vmatpush1.msra.mxu0 0.0
      %3604 = vmatprep.subr.mxu0 0.0
      %3605 = vmatpush1.msra.mxu0 0.0
      %3606 = vmatprep.subr.mxu0 0.0
      %3607 = vmatpush1.msra.mxu0 0.0
      %3608 = vmatprep.subr.mxu0 0.0
      %3609 = vmatpush1.msra.mxu0 0.0
      %3610 = vmatprep.subr.mxu0 0.0
      %3611 = vmatpush1.msra.mxu0 0.0
      %3612 = vmatprep.subr.mxu0 0.0
      %3613 = vmatpush1.msra.mxu0 0.0
      %3614 = vmatprep.subr.mxu0 0.0
      %3615 = vmatpush1.msra.mxu0 0.0
      %3616 = vmatprep.subr.mxu0 0.0
      %3617 = vmatpush1.msra.mxu0 0.0
      %3618 = vmatprep.subr.mxu0 0.0
      %3619 = vmatpush1.msra.mxu0 0.0
      %3620 = vmatprep.subr.mxu0 0.0
      %3621 = vmatpush1.msra.mxu0 0.0
      %3622 = vmatprep.subr.mxu0 0.0
      %3623 = vmatpush1.msra.mxu0 0.0
      %3624 = vmatprep.subr.mxu0 0.0
      %3625 = vmatpush1.msra.mxu0 0.0
      %3626 = vmatprep.subr.mxu0 0.0
      %3627 = vmatpush1.msra.mxu0 0.0
      %3628 = vmatprep.subr.mxu0 0.0
      %3629 = vmatpush1.msra.mxu0 0.0
      %3630 = vmatprep.subr.mxu0 0.0
      %3631 = vmatpush1.msra.mxu0 0.0
      %3632 = vmatprep.subr.mxu0 0.0
      %3633 = vmatpush1.msra.mxu0 0.0
      %3634 = vmatprep.subr.mxu0 0.0
      %3635 = vmatpush1.msra.mxu0 0.0
      %3636 = vmatprep.mubr.f32.mxu0 0.0
      %3637 = vmatmul.mubr.f32.gmra.mrb[0].mxu0 %v3570
      %v3638 = vpop.f32.mrb[0].mxu0
      %v3639 = vadd.f32 %v3565, %v3638
      %v3640 = vpop.f32.mrb[0].mxu0
      %3641 = vdwg.mxu0
      %v3642 = vadd.f32 %v3639, %v477
      %3643 = vst.msk [vmem:[%s235 + $0xa] sm:$0x3] %vm480, %v3642
      %3644 = vrot.lane.b32.xlu0 %v3013, 96
      %v3645 = vpop.permute.xlu0 %3644
      %v3646 = vsel %vm329, %v3645, 0
      %3648 = vmatprep.subr.mxu0 0.0
      %3649 = vmatpush1.msra.mxu0 %v241
      %3650 = vmatprep.subr.mxu0 0.0
      %3651 = vmatpush1.msra.mxu0 %v242
      %3652 = vmatprep.subr.mxu0 0.0
      %3653 = vmatpush1.msra.mxu0 0.0
      %3654 = vmatprep.subr.mxu0 0.0
      %3655 = vmatpush1.msra.mxu0 0.0
      %3656 = vmatprep.subr.mxu0 0.0
      %3657 = vmatpush1.msra.mxu0 0.0
      %3658 = vmatprep.subr.mxu0 0.0
      %3659 = vmatpush1.msra.mxu0 0.0
      %3660 = vmatprep.subr.mxu0 0.0
      %3661 = vmatpush1.msra.mxu0 0.0
      %3662 = vmatprep.subr.mxu0 0.0
      %3663 = vmatpush1.msra.mxu0 0.0
      %3664 = vmatprep.subr.mxu0 0.0
      %3665 = vmatpush1.msra.mxu0 0.0
      %3666 = vmatprep.subr.mxu0 0.0
      %3667 = vmatpush1.msra.mxu0 0.0
      %3668 = vmatprep.subr.mxu0 0.0
      %3669 = vmatpush1.msra.mxu0 0.0
      %3670 = vmatprep.subr.mxu0 0.0
      %3671 = vmatpush1.msra.mxu0 0.0
      %3672 = vmatprep.subr.mxu0 0.0
      %3673 = vmatpush1.msra.mxu0 0.0
      %3674 = vmatprep.subr.mxu0 0.0
      %3675 = vmatpush1.msra.mxu0 0.0
      %3676 = vmatprep.subr.mxu0 0.0
      %3677 = vmatpush1.msra.mxu0 0.0
      %3678 = vmatprep.subr.mxu0 0.0
      %3679 = vmatpush1.msra.mxu0 0.0
      %3680 = vmatprep.subr.mxu0 0.0
      %3681 = vmatpush1.msra.mxu0 0.0
      %3682 = vmatprep.subr.mxu0 0.0
      %3683 = vmatpush1.msra.mxu0 0.0
      %3684 = vmatprep.subr.mxu0 0.0
      %3685 = vmatpush1.msra.mxu0 0.0
      %3686 = vmatprep.subr.mxu0 0.0
      %3687 = vmatpush1.msra.mxu0 0.0
      %3688 = vmatprep.subr.mxu0 0.0
      %3689 = vmatpush1.msra.mxu0 0.0
      %3690 = vmatprep.subr.mxu0 0.0
      %3691 = vmatpush1.msra.mxu0 0.0
      %3692 = vmatprep.subr.mxu0 0.0
      %3693 = vmatpush1.msra.mxu0 0.0
      %3694 = vmatprep.subr.mxu0 0.0
      %3695 = vmatpush1.msra.mxu0 0.0
      %3696 = vmatprep.subr.mxu0 0.0
      %3697 = vmatpush1.msra.mxu0 0.0
      %3698 = vmatprep.subr.mxu0 0.0
      %3699 = vmatpush1.msra.mxu0 0.0
      %3700 = vmatprep.subr.mxu0 0.0
      %3701 = vmatpush1.msra.mxu0 0.0
      %3702 = vmatprep.subr.mxu0 0.0
      %3703 = vmatpush1.msra.mxu0 0.0
      %3704 = vmatprep.subr.mxu0 0.0
      %3705 = vmatpush1.msra.mxu0 0.0
      %3706 = vmatprep.subr.mxu0 0.0
      %3707 = vmatpush1.msra.mxu0 0.0
      %3708 = vmatprep.subr.mxu0 0.0
      %3709 = vmatpush1.msra.mxu0 0.0
      %3710 = vmatprep.subr.mxu0 0.0
      %3711 = vmatpush1.msra.mxu0 0.0
      %3712 = vmatprep.mubr.f32.mxu0 0.0
      %3713 = vmatmul.mubr.f32.gmra.mrb[0].mxu0 %v3646
      %v3714 = vpop.f32.mrb[0].mxu0
      %v3715 = vadd.f32 0.0, %v3714
      %v3716 = vpop.f32.mrb[0].mxu0
      %3717 = vdwg.mxu0
      %3718 = vrot.lane.b32.xlu0 %v3086, 96
      %v3719 = vpop.permute.xlu0 %3718
      %v3720 = vsel %vm329, %v3719, 0
      %3722 = vmatprep.subr.mxu0 0.0
      %3723 = vmatpush1.msra.mxu0 %v238
      %3724 = vmatprep.subr.mxu0 0.0
      %3725 = vmatpush1.msra.mxu0 %v239
      %3726 = vmatprep.subr.mxu0 0.0
      %3727 = vmatpush1.msra.mxu0 0.0
      %3728 = vmatprep.subr.mxu0 0.0
      %3729 = vmatpush1.msra.mxu0 0.0
      %3730 = vmatprep.subr.mxu0 0.0
      %3731 = vmatpush1.msra.mxu0 0.0
      %3732 = vmatprep.subr.mxu0 0.0
      %3733 = vmatpush1.msra.mxu0 0.0
      %3734 = vmatprep.subr.mxu0 0.0
      %3735 = vmatpush1.msra.mxu0 0.0
      %3736 = vmatprep.subr.mxu0 0.0
      %3737 = vmatpush1.msra.mxu0 0.0
      %3738 = vmatprep.subr.mxu0 0.0
      %3739 = vmatpush1.msra.mxu0 0.0
      %3740 = vmatprep.subr.mxu0 0.0
      %3741 = vmatpush1.msra.mxu0 0.0
      %3742 = vmatprep.subr.mxu0 0.0
      %3743 = vmatpush1.msra.mxu0 0.0
      %3744 = vmatprep.subr.mxu0 0.0
      %3745 = vmatpush1.msra.mxu0 0.0
      %3746 = vmatprep.subr.mxu0 0.0
      %3747 = vmatpush1.msra.mxu0 0.0
      %3748 = vmatprep.subr.mxu0 0.0
      %3749 = vmatpush1.msra.mxu0 0.0
      %3750 = vmatprep.subr.mxu0 0.0
      %3751 = vmatpush1.msra.mxu0 0.0
      %3752 = vmatprep.subr.mxu0 0.0
      %3753 = vmatpush1.msra.mxu0 0.0
      %3754 = vmatprep.subr.mxu0 0.0
      %3755 = vmatpush1.msra.mxu0 0.0
      %3756 = vmatprep.subr.mxu0 0.0
      %3757 = vmatpush1.msra.mxu0 0.0
      %3758 = vmatprep.subr.mxu0 0.0
      %3759 = vmatpush1.msra.mxu0 0.0
      %3760 = vmatprep.subr.mxu0 0.0
      %3761 = vmatpush1.msra.mxu0 0.0
      %3762 = vmatprep.subr.mxu0 0.0
      %3763 = vmatpush1.msra.mxu0 0.0
      %3764 = vmatprep.subr.mxu0 0.0
      %3765 = vmatpush1.msra.mxu0 0.0
      %3766 = vmatprep.subr.mxu0 0.0
      %3767 = vmatpush1.msra.mxu0 0.0
      %3768 = vmatprep.subr.mxu0 0.0
      %3769 = vmatpush1.msra.mxu0 0.0
      %3770 = vmatprep.subr.mxu0 0.0
      %3771 = vmatpush1.msra.mxu0 0.0
      %3772 = vmatprep.subr.mxu0 0.0
      %3773 = vmatpush1.msra.mxu0 0.0
      %3774 = vmatprep.subr.mxu0 0.0
      %3775 = vmatpush1.msra.mxu0 0.0
      %3776 = vmatprep.subr.mxu0 0.0
      %3777 = vmatpush1.msra.mxu0 0.0
      %3778 = vmatprep.subr.mxu0 0.0
      %3779 = vmatpush1.msra.mxu0 0.0
      %3780 = vmatprep.subr.mxu0 0.0
      %3781 = vmatpush1.msra.mxu0 0.0
      %3782 = vmatprep.subr.mxu0 0.0
      %3783 = vmatpush1.msra.mxu0 0.0
      %3784 = vmatprep.subr.mxu0 0.0
      %3785 = vmatpush1.msra.mxu0 0.0
      %3786 = vmatprep.mubr.f32.mxu0 0.0
      %3787 = vmatmul.mubr.f32.gmra.mrb[0].mxu0 %v3720
      %v3788 = vpop.f32.mrb[0].mxu0
      %v3789 = vadd.f32 %v3715, %v3788
      %v3790 = vpop.f32.mrb[0].mxu0
      %3791 = vdwg.mxu0
      %v3792 = vadd.f32 %v3789, %v477
      %v3795 = vunpack.c.l.s4 1983009808
      %v3796 = vunpack.c.0.s8 %v3795
      %v3797 = vlaneseq
      %v3798 = vshrl.u32 %v3797, 7
      %v3799 = vsub.s32 %v3796, %v3798
      %v3800 = vrot.slane %v3792, %v3799
      %3801 = vrot.lane.b32.xlu0 %v3800, 32
      %v3802 = vpop.permute.xlu0 %3801
      %3804 = vst.msk [vmem:[%s235 + $0xa] sm:$0x3] %vm640, %v3802
      %3805 = vrot.lane.b32.xlu0 %v2866, 80
      %v3806 = vpop.permute.xlu0 %3805
      %v3807 = vsel %vm329, %v3806, 0
      %3809 = vmatprep.subr.mxu0 0.0
      %3810 = vmatpush1.msra.mxu0 %v241
      %3811 = vmatprep.subr.mxu0 0.0
      %3812 = vmatpush1.msra.mxu0 %v242
      %3813 = vmatprep.subr.mxu0 0.0
      %3814 = vmatpush1.msra.mxu0 0.0
      %3815 = vmatprep.subr.mxu0 0.0
      %3816 = vmatpush1.msra.mxu0 0.0
      %3817 = vmatprep.subr.mxu0 0.0
      %3818 = vmatpush1.msra.mxu0 0.0
      %3819 = vmatprep.subr.mxu0 0.0
      %3820 = vmatpush1.msra.mxu0 0.0
      %3821 = vmatprep.subr.mxu0 0.0
      %3822 = vmatpush1.msra.mxu0 0.0
      %3823 = vmatprep.subr.mxu0 0.0
      %3824 = vmatpush1.msra.mxu0 0.0
      %3825 = vmatprep.subr.mxu0 0.0
      %3826 = vmatpush1.msra.mxu0 0.0
      %3827 = vmatprep.subr.mxu0 0.0
      %3828 = vmatpush1.msra.mxu0 0.0
      %3829 = vmatprep.subr.mxu0 0.0
      %3830 = vmatpush1.msra.mxu0 0.0
      %3831 = vmatprep.subr.mxu0 0.0
      %3832 = vmatpush1.msra.mxu0 0.0
      %3833 = vmatprep.subr.mxu0 0.0
      %3834 = vmatpush1.msra.mxu0 0.0
      %3835 = vmatprep.subr.mxu0 0.0
      %3836 = vmatpush1.msra.mxu0 0.0
      %3837 = vmatprep.subr.mxu0 0.0
      %3838 = vmatpush1.msra.mxu0 0.0
      %3839 = vmatprep.subr.mxu0 0.0
      %3840 = vmatpush1.msra.mxu0 0.0
      %3841 = vmatprep.subr.mxu0 0.0
      %3842 = vmatpush1.msra.mxu0 0.0
      %3843 = vmatprep.subr.mxu0 0.0
      %3844 = vmatpush1.msra.mxu0 0.0
      %3845 = vmatprep.subr.mxu0 0.0
      %3846 = vmatpush1.msra.mxu0 0.0
      %3847 = vmatprep.subr.mxu0 0.0
      %3848 = vmatpush1.msra.mxu0 0.0
      %3849 = vmatprep.subr.mxu0 0.0
      %3850 = vmatpush1.msra.mxu0 0.0
      %3851 = vmatprep.subr.mxu0 0.0
      %3852 = vmatpush1.msra.mxu0 0.0
      %3853 = vmatprep.subr.mxu0 0.0
      %3854 = vmatpush1.msra.mxu0 0.0
      %3855 = vmatprep.subr.mxu0 0.0
      %3856 = vmatpush1.msra.mxu0 0.0
      %3857 = vmatprep.subr.mxu0 0.0
      %3858 = vmatpush1.msra.mxu0 0.0
      %3859 = vmatprep.subr.mxu0 0.0
      %3860 = vmatpush1.msra.mxu0 0.0
      %3861 = vmatprep.subr.mxu0 0.0
      %3862 = vmatpush1.msra.mxu0 0.0
      %3863 = vmatprep.subr.mxu0 0.0
      %3864 = vmatpush1.msra.mxu0 0.0
      %3865 = vmatprep.subr.mxu0 0.0
      %3866 = vmatpush1.msra.mxu0 0.0
      %3867 = vmatprep.subr.mxu0 0.0
      %3868 = vmatpush1.msra.mxu0 0.0
      %3869 = vmatprep.subr.mxu0 0.0
      %3870 = vmatpush1.msra.mxu0 0.0
      %3871 = vmatprep.subr.mxu0 0.0
      %3872 = vmatpush1.msra.mxu0 0.0
      %3873 = vmatprep.mubr.f32.mxu0 0.0
      %3874 = vmatmul.mubr.f32.gmra.mrb[0].mxu0 %v3807
      %v3875 = vpop.f32.mrb[0].mxu0
      %v3876 = vadd.f32 0.0, %v3875
      %v3877 = vpop.f32.mrb[0].mxu0
      %3878 = vdwg.mxu0
      %3879 = vrot.lane.b32.xlu0 %v325, 80
      %v3880 = vpop.permute.xlu0 %3879
      %v3881 = vsel %vm329, %v3880, 0
      %3883 = vmatprep.subr.mxu0 0.0
      %3884 = vmatpush1.msra.mxu0 %v238
      %3885 = vmatprep.subr.mxu0 0.0
      %3886 = vmatpush1.msra.mxu0 %v239
      %3887 = vmatprep.subr.mxu0 0.0
      %3888 = vmatpush1.msra.mxu0 0.0
      %3889 = vmatprep.subr.mxu0 0.0
      %3890 = vmatpush1.msra.mxu0 0.0
      %3891 = vmatprep.subr.mxu0 0.0
      %3892 = vmatpush1.msra.mxu0 0.0
      %3893 = vmatprep.subr.mxu0 0.0
      %3894 = vmatpush1.msra.mxu0 0.0
      %3895 = vmatprep.subr.mxu0 0.0
      %3896 = vmatpush1.msra.mxu0 0.0
      %3897 = vmatprep.subr.mxu0 0.0
      %3898 = vmatpush1.msra.mxu0 0.0
      %3899 = vmatprep.subr.mxu0 0.0
      %3900 = vmatpush1.msra.mxu0 0.0
      %3901 = vmatprep.subr.mxu0 0.0
      %3902 = vmatpush1.msra.mxu0 0.0
      %3903 = vmatprep.subr.mxu0 0.0
      %3904 = vmatpush1.msra.mxu0 0.0
      %3905 = vmatprep.subr.mxu0 0.0
      %3906 = vmatpush1.msra.mxu0 0.0
      %3907 = vmatprep.subr.mxu0 0.0
      %3908 = vmatpush1.msra.mxu0 0.0
      %3909 = vmatprep.subr.mxu0 0.0
      %3910 = vmatpush1.msra.mxu0 0.0
      %3911 = vmatprep.subr.mxu0 0.0
      %3912 = vmatpush1.msra.mxu0 0.0
      %3913 = vmatprep.subr.mxu0 0.0
      %3914 = vmatpush1.msra.mxu0 0.0
      %3915 = vmatprep.subr.mxu0 0.0
      %3916 = vmatpush1.msra.mxu0 0.0
      %3917 = vmatprep.subr.mxu0 0.0
      %3918 = vmatpush1.msra.mxu0 0.0
      %3919 = vmatprep.subr.mxu0 0.0
      %3920 = vmatpush1.msra.mxu0 0.0
      %3921 = vmatprep.subr.mxu0 0.0
      %3922 = vmatpush1.msra.mxu0 0.0
      %3923 = vmatprep.subr.mxu0 0.0
      %3924 = vmatpush1.msra.mxu0 0.0
      %3925 = vmatprep.subr.mxu0 0.0
      %3926 = vmatpush1.msra.mxu0 0.0
      %3927 = vmatprep.subr.mxu0 0.0
      %3928 = vmatpush1.msra.mxu0 0.0
      %3929 = vmatprep.subr.mxu0 0.0
      %3930 = vmatpush1.msra.mxu0 0.0
      %3931 = vmatprep.subr.mxu0 0.0
      %3932 = vmatpush1.msra.mxu0 0.0
      %3933 = vmatprep.subr.mxu0 0.0
      %3934 = vmatpush1.msra.mxu0 0.0
      %3935 = vmatprep.subr.mxu0 0.0
      %3936 = vmatpush1.msra.mxu0 0.0
      %3937 = vmatprep.subr.mxu0 0.0
      %3938 = vmatpush1.msra.mxu0 0.0
      %3939 = vmatprep.subr.mxu0 0.0
      %3940 = vmatpush1.msra.mxu0 0.0
      %3941 = vmatprep.subr.mxu0 0.0
      %3942 = vmatpush1.msra.mxu0 0.0
      %3943 = vmatprep.subr.mxu0 0.0
      %3944 = vmatpush1.msra.mxu0 0.0
      %3945 = vmatprep.subr.mxu0 0.0
      %3946 = vmatpush1.msra.mxu0 0.0
      %3947 = vmatprep.mubr.f32.mxu0 0.0
      %3948 = vmatmul.mubr.f32.gmra.mrb[0].mxu0 %v3881
      %v3949 = vpop.f32.mrb[0].mxu0
      %v3950 = vadd.f32 %v3876, %v3949
      %v3951 = vpop.f32.mrb[0].mxu0
      %3952 = vdwg.mxu0
      %v3953 = vadd.f32 %v3950, %v477
      %v3956 = vunpack.c.l.s4 1983009808
      %v3957 = vunpack.c.0.s8 %v3956
      %v3958 = vlaneseq
      %v3959 = vshrl.u32 %v3958, 7
      %v3960 = vsub.s32 %v3957, %v3959
      %v3961 = vrot.slane %v3953, %v3960
      %3962 = vrot.lane.b32.xlu0 %v3961, 64
      %v3963 = vpop.permute.xlu0 %3962
      %3965 = vst.msk [vmem:[%s235 + $0xa] sm:$0x3] %vm802, %v3963
      %3966 = vrot.lane.b32.xlu0 %v3013, 80
      %v3967 = vpop.permute.xlu0 %3966
      %v3968 = vsel %vm329, %v3967, 0
      %3970 = vmatprep.subr.mxu0 0.0
      %3971 = vmatpush1.msra.mxu0 %v241
      %3972 = vmatprep.subr.mxu0 0.0
      %3973 = vmatpush1.msra.mxu0 %v242
      %3974 = vmatprep.subr.mxu0 0.0
      %3975 = vmatpush1.msra.mxu0 0.0
      %3976 = vmatprep.subr.mxu0 0.0
      %3977 = vmatpush1.msra.mxu0 0.0
      %3978 = vmatprep.subr.mxu0 0.0
      %3979 = vmatpush1.msra.mxu0 0.0
      %3980 = vmatprep.subr.mxu0 0.0
      %3981 = vmatpush1.msra.mxu0 0.0
      %3982 = vmatprep.subr.mxu0 0.0
      %3983 = vmatpush1.msra.mxu0 0.0
      %3984 = vmatprep.subr.mxu0 0.0
      %3985 = vmatpush1.msra.mxu0 0.0
      %3986 = vmatprep.subr.mxu0 0.0
      %3987 = vmatpush1.msra.mxu0 0.0
      %3988 = vmatprep.subr.mxu0 0.0
      %3989 = vmatpush1.msra.mxu0 0.0
      %3990 = vmatprep.subr.mxu0 0.0
      %3991 = vmatpush1.msra.mxu0 0.0
      %3992 = vmatprep.subr.mxu0 0.0
      %3993 = vmatpush1.msra.mxu0 0.0
      %3994 = vmatprep.subr.mxu0 0.0
      %3995 = vmatpush1.msra.mxu0 0.0
      %3996 = vmatprep.subr.mxu0 0.0
      %3997 = vmatpush1.msra.mxu0 0.0
      %3998 = vmatprep.subr.mxu0 0.0
      %3999 = vmatpush1.msra.mxu0 0.0
      %4000 = vmatprep.subr.mxu0 0.0
      %4001 = vmatpush1.msra.mxu0 0.0
      %4002 = vmatprep.subr.mxu0 0.0
      %4003 = vmatpush1.msra.mxu0 0.0
      %4004 = vmatprep.subr.mxu0 0.0
      %4005 = vmatpush1.msra.mxu0 0.0
      %4006 = vmatprep.subr.mxu0 0.0
      %4007 = vmatpush1.msra.mxu0 0.0
      %4008 = vmatprep.subr.mxu0 0.0
      %4009 = vmatpush1.msra.mxu0 0.0
      %4010 = vmatprep.subr.mxu0 0.0
      %4011 = vmatpush1.msra.mxu0 0.0
      %4012 = vmatprep.subr.mxu0 0.0
      %4013 = vmatpush1.msra.mxu0 0.0
      %4014 = vmatprep.subr.mxu0 0.0
      %4015 = vmatpush1.msra.mxu0 0.0
      %4016 = vmatprep.subr.mxu0 0.0
      %4017 = vmatpush1.msra.mxu0 0.0
      %4018 = vmatprep.subr.mxu0 0.0
      %4019 = vmatpush1.msra.mxu0 0.0
      %4020 = vmatprep.subr.mxu0 0.0
      %4021 = vmatpush1.msra.mxu0 0.0
      %4022 = vmatprep.subr.mxu0 0.0
      %4023 = vmatpush1.msra.mxu0 0.0
      %4024 = vmatprep.subr.mxu0 0.0
      %4025 = vmatpush1.msra.mxu0 0.0
      %4026 = vmatprep.subr.mxu0 0.0
      %4027 = vmatpush1.msra.mxu0 0.0
      %4028 = vmatprep.subr.mxu0 0.0
      %4029 = vmatpush1.msra.mxu0 0.0
      %4030 = vmatprep.subr.mxu0 0.0
      %4031 = vmatpush1.msra.mxu0 0.0
      %4032 = vmatprep.subr.mxu0 0.0
      %4033 = vmatpush1.msra.mxu0 0.0
      %4034 = vmatprep.mubr.f32.mxu0 0.0
      %4035 = vmatmul.mubr.f32.gmra.mrb[0].mxu0 %v3968
      %v4036 = vpop.f32.mrb[0].mxu0
      %v4037 = vadd.f32 0.0, %v4036
      %v4038 = vpop.f32.mrb[0].mxu0
      %4039 = vdwg.mxu0
      %4040 = vrot.lane.b32.xlu0 %v3086, 80
      %v4041 = vpop.permute.xlu0 %4040
      %v4042 = vsel %vm329, %v4041, 0
      %4044 = vmatprep.subr.mxu0 0.0
      %4045 = vmatpush1.msra.mxu0 %v238
      %4046 = vmatprep.subr.mxu0 0.0
      %4047 = vmatpush1.msra.mxu0 %v239
      %4048 = vmatprep.subr.mxu0 0.0
      %4049 = vmatpush1.msra.mxu0 0.0
      %4050 = vmatprep.subr.mxu0 0.0
      %4051 = vmatpush1.msra.mxu0 0.0
      %4052 = vmatprep.subr.mxu0 0.0
      %4053 = vmatpush1.msra.mxu0 0.0
      %4054 = vmatprep.subr.mxu0 0.0
      %4055 = vmatpush1.msra.mxu0 0.0
      %4056 = vmatprep.subr.mxu0 0.0
      %4057 = vmatpush1.msra.mxu0 0.0
      %4058 = vmatprep.subr.mxu0 0.0
      %4059 = vmatpush1.msra.mxu0 0.0
      %4060 = vmatprep.subr.mxu0 0.0
      %4061 = vmatpush1.msra.mxu0 0.0
      %4062 = vmatprep.subr.mxu0 0.0
      %4063 = vmatpush1.msra.mxu0 0.0
      %4064 = vmatprep.subr.mxu0 0.0
      %4065 = vmatpush1.msra.mxu0 0.0
      %4066 = vmatprep.subr.mxu0 0.0
      %4067 = vmatpush1.msra.mxu0 0.0
      %4068 = vmatprep.subr.mxu0 0.0
      %4069 = vmatpush1.msra.mxu0 0.0
      %4070 = vmatprep.subr.mxu0 0.0
      %4071 = vmatpush1.msra.mxu0 0.0
      %4072 = vmatprep.subr.mxu0 0.0
      %4073 = vmatpush1.msra.mxu0 0.0
      %4074 = vmatprep.subr.mxu0 0.0
      %4075 = vmatpush1.msra.mxu0 0.0
      %4076 = vmatprep.subr.mxu0 0.0
      %4077 = vmatpush1.msra.mxu0 0.0
      %4078 = vmatprep.subr.mxu0 0.0
      %4079 = vmatpush1.msra.mxu0 0.0
      %4080 = vmatprep.subr.mxu0 0.0
      %4081 = vmatpush1.msra.mxu0 0.0
      %4082 = vmatprep.subr.mxu0 0.0
      %4083 = vmatpush1.msra.mxu0 0.0
      %4084 = vmatprep.subr.mxu0 0.0
      %4085 = vmatpush1.msra.mxu0 0.0
      %4086 = vmatprep.subr.mxu0 0.0
      %4087 = vmatpush1.msra.mxu0 0.0
      %4088 = vmatprep.subr.mxu0 0.0
      %4089 = vmatpush1.msra.mxu0 0.0
      %4090 = vmatprep.subr.mxu0 0.0
      %4091 = vmatpush1.msra.mxu0 0.0
      %4092 = vmatprep.subr.mxu0 0.0
      %4093 = vmatpush1.msra.mxu0 0.0
      %4094 = vmatprep.subr.mxu0 0.0
      %4095 = vmatpush1.msra.mxu0 0.0
      %4096 = vmatprep.subr.mxu0 0.0
      %4097 = vmatpush1.msra.mxu0 0.0
      %4098 = vmatprep.subr.mxu0 0.0
      %4099 = vmatpush1.msra.mxu0 0.0
      %4100 = vmatprep.subr.mxu0 0.0
      %4101 = vmatpush1.msra.mxu0 0.0
      %4102 = vmatprep.subr.mxu0 0.0
      %4103 = vmatpush1.msra.mxu0 0.0
      %4104 = vmatprep.subr.mxu0 0.0
      %4105 = vmatpush1.msra.mxu0 0.0
      %4106 = vmatprep.subr.mxu0 0.0
      %4107 = vmatpush1.msra.mxu0 0.0
      %4108 = vmatprep.mubr.f32.mxu0 0.0
      %4109 = vmatmul.mubr.f32.gmra.mrb[0].mxu0 %v4042
      %v4110 = vpop.f32.mrb[0].mxu0
      %v4111 = vadd.f32 %v4037, %v4110
      %v4112 = vpop.f32.mrb[0].mxu0
      %4113 = vdwg.mxu0
      %v4114 = vadd.f32 %v4111, %v477
      %v4117 = vunpack.c.l.s4 1983009808
      %v4118 = vunpack.c.0.s8 %v4117
      %v4119 = vlaneseq
      %v4120 = vshrl.u32 %v4119, 7
      %v4121 = vsub.s32 %v4118, %v4120
      %v4122 = vrot.slane %v4114, %v4121
      %4123 = vrot.lane.b32.xlu0 %v4122, 96
      %v4124 = vpop.permute.xlu0 %4123
      %4126 = vst.msk [vmem:[%s235 + $0xa] sm:$0x3] %vm964, %v4124
      %4127 = vrot.lane.b32.xlu0 %v2866, 64
      %v4128 = vpop.permute.xlu0 %4127
      %v4129 = vsel %vm329, %v4128, 0
      %4131 = vmatprep.subr.mxu0 0.0
      %4132 = vmatpush1.msra.mxu0 %v241
      %4133 = vmatprep.subr.mxu0 0.0
      %4134 = vmatpush1.msra.mxu0 %v242
      %4135 = vmatprep.subr.mxu0 0.0
      %4136 = vmatpush1.msra.mxu0 0.0
      %4137 = vmatprep.subr.mxu0 0.0
      %4138 = vmatpush1.msra.mxu0 0.0
      %4139 = vmatprep.subr.mxu0 0.0
      %4140 = vmatpush1.msra.mxu0 0.0
      %4141 = vmatprep.subr.mxu0 0.0
      %4142 = vmatpush1.msra.mxu0 0.0
      %4143 = vmatprep.subr.mxu0 0.0
      %4144 = vmatpush1.msra.mxu0 0.0
      %4145 = vmatprep.subr.mxu0 0.0
      %4146 = vmatpush1.msra.mxu0 0.0
      %4147 = vmatprep.subr.mxu0 0.0
      %4148 = vmatpush1.msra.mxu0 0.0
      %4149 = vmatprep.subr.mxu0 0.0
      %4150 = vmatpush1.msra.mxu0 0.0
      %4151 = vmatprep.subr.mxu0 0.0
      %4152 = vmatpush1.msra.mxu0 0.0
      %4153 = vmatprep.subr.mxu0 0.0
      %4154 = vmatpush1.msra.mxu0 0.0
      %4155 = vmatprep.subr.mxu0 0.0
      %4156 = vmatpush1.msra.mxu0 0.0
      %4157 = vmatprep.subr.mxu0 0.0
      %4158 = vmatpush1.msra.mxu0 0.0
      %4159 = vmatprep.subr.mxu0 0.0
      %4160 = vmatpush1.msra.mxu0 0.0
      %4161 = vmatprep.subr.mxu0 0.0
      %4162 = vmatpush1.msra.mxu0 0.0
      %4163 = vmatprep.subr.mxu0 0.0
      %4164 = vmatpush1.msra.mxu0 0.0
      %4165 = vmatprep.subr.mxu0 0.0
      %4166 = vmatpush1.msra.mxu0 0.0
      %4167 = vmatprep.subr.mxu0 0.0
      %4168 = vmatpush1.msra.mxu0 0.0
      %4169 = vmatprep.subr.mxu0 0.0
      %4170 = vmatpush1.msra.mxu0 0.0
      %4171 = vmatprep.subr.mxu0 0.0
      %4172 = vmatpush1.msra.mxu0 0.0
      %4173 = vmatprep.subr.mxu0 0.0
      %4174 = vmatpush1.msra.mxu0 0.0
      %4175 = vmatprep.subr.mxu0 0.0
      %4176 = vmatpush1.msra.mxu0 0.0
      %4177 = vmatprep.subr.mxu0 0.0
      %4178 = vmatpush1.msra.mxu0 0.0
      %4179 = vmatprep.subr.mxu0 0.0
      %4180 = vmatpush1.msra.mxu0 0.0
      %4181 = vmatprep.subr.mxu0 0.0
      %4182 = vmatpush1.msra.mxu0 0.0
      %4183 = vmatprep.subr.mxu0 0.0
      %4184 = vmatpush1.msra.mxu0 0.0
      %4185 = vmatprep.subr.mxu0 0.0
      %4186 = vmatpush1.msra.mxu0 0.0
      %4187 = vmatprep.subr.mxu0 0.0
      %4188 = vmatpush1.msra.mxu0 0.0
      %4189 = vmatprep.subr.mxu0 0.0
      %4190 = vmatpush1.msra.mxu0 0.0
      %4191 = vmatprep.subr.mxu0 0.0
      %4192 = vmatpush1.msra.mxu0 0.0
      %4193 = vmatprep.subr.mxu0 0.0
      %4194 = vmatpush1.msra.mxu0 0.0
      %4195 = vmatprep.mubr.f32.mxu0 0.0
      %4196 = vmatmul.mubr.f32.gmra.mrb[0].mxu0 %v4129
      %v4197 = vpop.f32.mrb[0].mxu0
      %v4198 = vadd.f32 0.0, %v4197
      %v4199 = vpop.f32.mrb[0].mxu0
      %4200 = vdwg.mxu0
      %4201 = vrot.lane.b32.xlu0 %v325, 64
      %v4202 = vpop.permute.xlu0 %4201
      %v4203 = vsel %vm329, %v4202, 0
      %4205 = vmatprep.subr.mxu0 0.0
      %4206 = vmatpush1.msra.mxu0 %v238
      %4207 = vmatprep.subr.mxu0 0.0
      %4208 = vmatpush1.msra.mxu0 %v239
      %4209 = vmatprep.subr.mxu0 0.0
      %4210 = vmatpush1.msra.mxu0 0.0
      %4211 = vmatprep.subr.mxu0 0.0
      %4212 = vmatpush1.msra.mxu0 0.0
      %4213 = vmatprep.subr.mxu0 0.0
      %4214 = vmatpush1.msra.mxu0 0.0
      %4215 = vmatprep.subr.mxu0 0.0
      %4216 = vmatpush1.msra.mxu0 0.0
      %4217 = vmatprep.subr.mxu0 0.0
      %4218 = vmatpush1.msra.mxu0 0.0
      %4219 = vmatprep.subr.mxu0 0.0
      %4220 = vmatpush1.msra.mxu0 0.0
      %4221 = vmatprep.subr.mxu0 0.0
      %4222 = vmatpush1.msra.mxu0 0.0
      %4223 = vmatprep.subr.mxu0 0.0
      %4224 = vmatpush1.msra.mxu0 0.0
      %4225 = vmatprep.subr.mxu0 0.0
      %4226 = vmatpush1.msra.mxu0 0.0
      %4227 = vmatprep.subr.mxu0 0.0
      %4228 = vmatpush1.msra.mxu0 0.0
      %4229 = vmatprep.subr.mxu0 0.0
      %4230 = vmatpush1.msra.mxu0 0.0
      %4231 = vmatprep.subr.mxu0 0.0
      %4232 = vmatpush1.msra.mxu0 0.0
      %4233 = vmatprep.subr.mxu0 0.0
      %4234 = vmatpush1.msra.mxu0 0.0
      %4235 = vmatprep.subr.mxu0 0.0
      %4236 = vmatpush1.msra.mxu0 0.0
      %4237 = vmatprep.subr.mxu0 0.0
      %4238 = vmatpush1.msra.mxu0 0.0
      %4239 = vmatprep.subr.mxu0 0.0
      %4240 = vmatpush1.msra.mxu0 0.0
      %4241 = vmatprep.subr.mxu0 0.0
      %4242 = vmatpush1.msra.mxu0 0.0
      %4243 = vmatprep.subr.mxu0 0.0
      %4244 = vmatpush1.msra.mxu0 0.0
      %4245 = vmatprep.subr.mxu0 0.0
      %4246 = vmatpush1.msra.mxu0 0.0
      %4247 = vmatprep.subr.mxu0 0.0
      %4248 = vmatpush1.msra.mxu0 0.0
      %4249 = vmatprep.subr.mxu0 0.0
      %4250 = vmatpush1.msra.mxu0 0.0
      %4251 = vmatprep.subr.mxu0 0.0
      %4252 = vmatpush1.msra.mxu0 0.0
      %4253 = vmatprep.subr.mxu0 0.0
      %4254 = vmatpush1.msra.mxu0 0.0
      %4255 = vmatprep.subr.mxu0 0.0
      %4256 = vmatpush1.msra.mxu0 0.0
      %4257 = vmatprep.subr.mxu0 0.0
      %4258 = vmatpush1.msra.mxu0 0.0
      %4259 = vmatprep.subr.mxu0 0.0
      %4260 = vmatpush1.msra.mxu0 0.0
      %4261 = vmatprep.subr.mxu0 0.0
      %4262 = vmatpush1.msra.mxu0 0.0
      %4263 = vmatprep.subr.mxu0 0.0
      %4264 = vmatpush1.msra.mxu0 0.0
      %4265 = vmatprep.subr.mxu0 0.0
      %4266 = vmatpush1.msra.mxu0 0.0
      %4267 = vmatprep.subr.mxu0 0.0
      %4268 = vmatpush1.msra.mxu0 0.0
      %4269 = vmatprep.mubr.f32.mxu0 0.0
      %4270 = vmatmul.mubr.f32.gmra.mrb[0].mxu0 %v4203
      %v4271 = vpop.f32.mrb[0].mxu0
      %v4272 = vadd.f32 %v4198, %v4271
      %v4273 = vpop.f32.mrb[0].mxu0
      %4274 = vdwg.mxu0
      %v4275 = vadd.f32 %v4272, %v477
      %4276 = vst.msk [vmem:[%s235 + $0xc] sm:$0x3] %vm480, %v4275
      %4277 = vrot.lane.b32.xlu0 %v3013, 64
      %v4278 = vpop.permute.xlu0 %4277
      %v4279 = vsel %vm329, %v4278, 0
      %4281 = vmatprep.subr.mxu0 0.0
      %4282 = vmatpush1.msra.mxu0 %v241
      %4283 = vmatprep.subr.mxu0 0.0
      %4284 = vmatpush1.msra.mxu0 %v242
      %4285 = vmatprep.subr.mxu0 0.0
      %4286 = vmatpush1.msra.mxu0 0.0
      %4287 = vmatprep.subr.mxu0 0.0
      %4288 = vmatpush1.msra.mxu0 0.0
      %4289 = vmatprep.subr.mxu0 0.0
      %4290 = vmatpush1.msra.mxu0 0.0
      %4291 = vmatprep.subr.mxu0 0.0
      %4292 = vmatpush1.msra.mxu0 0.0
      %4293 = vmatprep.subr.mxu0 0.0
      %4294 = vmatpush1.msra.mxu0 0.0
      %4295 = vmatprep.subr.mxu0 0.0
      %4296 = vmatpush1.msra.mxu0 0.0
      %4297 = vmatprep.subr.mxu0 0.0
      %4298 = vmatpush1.msra.mxu0 0.0
      %4299 = vmatprep.subr.mxu0 0.0
      %4300 = vmatpush1.msra.mxu0 0.0
      %4301 = vmatprep.subr.mxu0 0.0
      %4302 = vmatpush1.msra.mxu0 0.0
      %4303 = vmatprep.subr.mxu0 0.0
      %4304 = vmatpush1.msra.mxu0 0.0
      %4305 = vmatprep.subr.mxu0 0.0
      %4306 = vmatpush1.msra.mxu0 0.0
      %4307 = vmatprep.subr.mxu0 0.0
      %4308 = vmatpush1.msra.mxu0 0.0
      %4309 = vmatprep.subr.mxu0 0.0
      %4310 = vmatpush1.msra.mxu0 0.0
      %4311 = vmatprep.subr.mxu0 0.0
      %4312 = vmatpush1.msra.mxu0 0.0
      %4313 = vmatprep.subr.mxu0 0.0
      %4314 = vmatpush1.msra.mxu0 0.0
      %4315 = vmatprep.subr.mxu0 0.0
      %4316 = vmatpush1.msra.mxu0 0.0
      %4317 = vmatprep.subr.mxu0 0.0
      %4318 = vmatpush1.msra.mxu0 0.0
      %4319 = vmatprep.subr.mxu0 0.0
      %4320 = vmatpush1.msra.mxu0 0.0
      %4321 = vmatprep.subr.mxu0 0.0
      %4322 = vmatpush1.msra.mxu0 0.0
      %4323 = vmatprep.subr.mxu0 0.0
      %4324 = vmatpush1.msra.mxu0 0.0
      %4325 = vmatprep.subr.mxu0 0.0
      %4326 = vmatpush1.msra.mxu0 0.0
      %4327 = vmatprep.subr.mxu0 0.0
      %4328 = vmatpush1.msra.mxu0 0.0
      %4329 = vmatprep.subr.mxu0 0.0
      %4330 = vmatpush1.msra.mxu0 0.0
      %4331 = vmatprep.subr.mxu0 0.0
      %4332 = vmatpush1.msra.mxu0 0.0
      %4333 = vmatprep.subr.mxu0 0.0
      %4334 = vmatpush1.msra.mxu0 0.0
      %4335 = vmatprep.subr.mxu0 0.0
      %4336 = vmatpush1.msra.mxu0 0.0
      %4337 = vmatprep.subr.mxu0 0.0
      %4338 = vmatpush1.msra.mxu0 0.0
      %4339 = vmatprep.subr.mxu0 0.0
      %4340 = vmatpush1.msra.mxu0 0.0
      %4341 = vmatprep.subr.mxu0 0.0
      %4342 = vmatpush1.msra.mxu0 0.0
      %4343 = vmatprep.subr.mxu0 0.0
      %4344 = vmatpush1.msra.mxu0 0.0
      %4345 = vmatprep.mubr.f32.mxu0 0.0
      %4346 = vmatmul.mubr.f32.gmra.mrb[0].mxu0 %v4279
      %v4347 = vpop.f32.mrb[0].mxu0
      %v4348 = vadd.f32 0.0, %v4347
      %v4349 = vpop.f32.mrb[0].mxu0
      %4350 = vdwg.mxu0
      %4351 = vrot.lane.b32.xlu0 %v3086, 64
      %v4352 = vpop.permute.xlu0 %4351
      %v4353 = vsel %vm329, %v4352, 0
      %4355 = vmatprep.subr.mxu0 0.0
      %4356 = vmatpush1.msra.mxu0 %v238
      %4357 = vmatprep.subr.mxu0 0.0
      %4358 = vmatpush1.msra.mxu0 %v239
      %4359 = vmatprep.subr.mxu0 0.0
      %4360 = vmatpush1.msra.mxu0 0.0
      %4361 = vmatprep.subr.mxu0 0.0
      %4362 = vmatpush1.msra.mxu0 0.0
      %4363 = vmatprep.subr.mxu0 0.0
      %4364 = vmatpush1.msra.mxu0 0.0
      %4365 = vmatprep.subr.mxu0 0.0
      %4366 = vmatpush1.msra.mxu0 0.0
      %4367 = vmatprep.subr.mxu0 0.0
      %4368 = vmatpush1.msra.mxu0 0.0
      %4369 = vmatprep.subr.mxu0 0.0
      %4370 = vmatpush1.msra.mxu0 0.0
      %4371 = vmatprep.subr.mxu0 0.0
      %4372 = vmatpush1.msra.mxu0 0.0
      %4373 = vmatprep.subr.mxu0 0.0
      %4374 = vmatpush1.msra.mxu0 0.0
      %4375 = vmatprep.subr.mxu0 0.0
      %4376 = vmatpush1.msra.mxu0 0.0
      %4377 = vmatprep.subr.mxu0 0.0
      %4378 = vmatpush1.msra.mxu0 0.0
      %4379 = vmatprep.subr.mxu0 0.0
      %4380 = vmatpush1.msra.mxu0 0.0
      %4381 = vmatprep.subr.mxu0 0.0
      %4382 = vmatpush1.msra.mxu0 0.0
      %4383 = vmatprep.subr.mxu0 0.0
      %4384 = vmatpush1.msra.mxu0 0.0
      %4385 = vmatprep.subr.mxu0 0.0
      %4386 = vmatpush1.msra.mxu0 0.0
      %4387 = vmatprep.subr.mxu0 0.0
      %4388 = vmatpush1.msra.mxu0 0.0
      %4389 = vmatprep.subr.mxu0 0.0
      %4390 = vmatpush1.msra.mxu0 0.0
      %4391 = vmatprep.subr.mxu0 0.0
      %4392 = vmatpush1.msra.mxu0 0.0
      %4393 = vmatprep.subr.mxu0 0.0
      %4394 = vmatpush1.msra.mxu0 0.0
      %4395 = vmatprep.subr.mxu0 0.0
      %4396 = vmatpush1.msra.mxu0 0.0
      %4397 = vmatprep.subr.mxu0 0.0
      %4398 = vmatpush1.msra.mxu0 0.0
      %4399 = vmatprep.subr.mxu0 0.0
      %4400 = vmatpush1.msra.mxu0 0.0
      %4401 = vmatprep.subr.mxu0 0.0
      %4402 = vmatpush1.msra.mxu0 0.0
      %4403 = vmatprep.subr.mxu0 0.0
      %4404 = vmatpush1.msra.mxu0 0.0
      %4405 = vmatprep.subr.mxu0 0.0
      %4406 = vmatpush1.msra.mxu0 0.0
      %4407 = vmatprep.subr.mxu0 0.0
      %4408 = vmatpush1.msra.mxu0 0.0
      %4409 = vmatprep.subr.mxu0 0.0
      %4410 = vmatpush1.msra.mxu0 0.0
      %4411 = vmatprep.subr.mxu0 0.0
      %4412 = vmatpush1.msra.mxu0 0.0
      %4413 = vmatprep.subr.mxu0 0.0
      %4414 = vmatpush1.msra.mxu0 0.0
      %4415 = vmatprep.subr.mxu0 0.0
      %4416 = vmatpush1.msra.mxu0 0.0
      %4417 = vmatprep.subr.mxu0 0.0
      %4418 = vmatpush1.msra.mxu0 0.0
      %4419 = vmatprep.mubr.f32.mxu0 0.0
      %4420 = vmatmul.mubr.f32.gmra.mrb[0].mxu0 %v4353
      %v4421 = vpop.f32.mrb[0].mxu0
      %v4422 = vadd.f32 %v4348, %v4421
      %v4423 = vpop.f32.mrb[0].mxu0
      %4424 = vdwg.mxu0
      %v4425 = vadd.f32 %v4422, %v477
      %v4428 = vunpack.c.l.s4 1983009808
      %v4429 = vunpack.c.0.s8 %v4428
      %v4430 = vlaneseq
      %v4431 = vshrl.u32 %v4430, 7
      %v4432 = vsub.s32 %v4429, %v4431
      %v4433 = vrot.slane %v4425, %v4432
      %4434 = vrot.lane.b32.xlu0 %v4433, 32
      %v4435 = vpop.permute.xlu0 %4434
      %4437 = vst.msk [vmem:[%s235 + $0xc] sm:$0x3] %vm640, %v4435
      %4438 = vrot.lane.b32.xlu0 %v2866, 48
      %v4439 = vpop.permute.xlu0 %4438
      %v4440 = vsel %vm329, %v4439, 0
      %4442 = vmatprep.subr.mxu0 0.0
      %4443 = vmatpush1.msra.mxu0 %v241
      %4444 = vmatprep.subr.mxu0 0.0
      %4445 = vmatpush1.msra.mxu0 %v242
      %4446 = vmatprep.subr.mxu0 0.0
      %4447 = vmatpush1.msra.mxu0 0.0
      %4448 = vmatprep.subr.mxu0 0.0
      %4449 = vmatpush1.msra.mxu0 0.0
      %4450 = vmatprep.subr.mxu0 0.0
      %4451 = vmatpush1.msra.mxu0 0.0
      %4452 = vmatprep.subr.mxu0 0.0
      %4453 = vmatpush1.msra.mxu0 0.0
      %4454 = vmatprep.subr.mxu0 0.0
      %4455 = vmatpush1.msra.mxu0 0.0
      %4456 = vmatprep.subr.mxu0 0.0
      %4457 = vmatpush1.msra.mxu0 0.0
      %4458 = vmatprep.subr.mxu0 0.0
      %4459 = vmatpush1.msra.mxu0 0.0
      %4460 = vmatprep.subr.mxu0 0.0
      %4461 = vmatpush1.msra.mxu0 0.0
      %4462 = vmatprep.subr.mxu0 0.0
      %4463 = vmatpush1.msra.mxu0 0.0
      %4464 = vmatprep.subr.mxu0 0.0
      %4465 = vmatpush1.msra.mxu0 0.0
      %4466 = vmatprep.subr.mxu0 0.0
      %4467 = vmatpush1.msra.mxu0 0.0
      %4468 = vmatprep.subr.mxu0 0.0
      %4469 = vmatpush1.msra.mxu0 0.0
      %4470 = vmatprep.subr.mxu0 0.0
      %4471 = vmatpush1.msra.mxu0 0.0
      %4472 = vmatprep.subr.mxu0 0.0
      %4473 = vmatpush1.msra.mxu0 0.0
      %4474 = vmatprep.subr.mxu0 0.0
      %4475 = vmatpush1.msra.mxu0 0.0
      %4476 = vmatprep.subr.mxu0 0.0
      %4477 = vmatpush1.msra.mxu0 0.0
      %4478 = vmatprep.subr.mxu0 0.0
      %4479 = vmatpush1.msra.mxu0 0.0
      %4480 = vmatprep.subr.mxu0 0.0
      %4481 = vmatpush1.msra.mxu0 0.0
      %4482 = vmatprep.subr.mxu0 0.0
      %4483 = vmatpush1.msra.mxu0 0.0
      %4484 = vmatprep.subr.mxu0 0.0
      %4485 = vmatpush1.msra.mxu0 0.0
      %4486 = vmatprep.subr.mxu0 0.0
      %4487 = vmatpush1.msra.mxu0 0.0
      %4488 = vmatprep.subr.mxu0 0.0
      %4489 = vmatpush1.msra.mxu0 0.0
      %4490 = vmatprep.subr.mxu0 0.0
      %4491 = vmatpush1.msra.mxu0 0.0
      %4492 = vmatprep.subr.mxu0 0.0
      %4493 = vmatpush1.msra.mxu0 0.0
      %4494 = vmatprep.subr.mxu0 0.0
      %4495 = vmatpush1.msra.mxu0 0.0
      %4496 = vmatprep.subr.mxu0 0.0
      %4497 = vmatpush1.msra.mxu0 0.0
      %4498 = vmatprep.subr.mxu0 0.0
      %4499 = vmatpush1.msra.mxu0 0.0
      %4500 = vmatprep.subr.mxu0 0.0
      %4501 = vmatpush1.msra.mxu0 0.0
      %4502 = vmatprep.subr.mxu0 0.0
      %4503 = vmatpush1.msra.mxu0 0.0
      %4504 = vmatprep.subr.mxu0 0.0
      %4505 = vmatpush1.msra.mxu0 0.0
      %4506 = vmatprep.mubr.f32.mxu0 0.0
      %4507 = vmatmul.mubr.f32.gmra.mrb[0].mxu0 %v4440
      %v4508 = vpop.f32.mrb[0].mxu0
      %v4509 = vadd.f32 0.0, %v4508
      %v4510 = vpop.f32.mrb[0].mxu0
      %4511 = vdwg.mxu0
      %4512 = vrot.lane.b32.xlu0 %v325, 48
      %v4513 = vpop.permute.xlu0 %4512
      %v4514 = vsel %vm329, %v4513, 0
      %4516 = vmatprep.subr.mxu0 0.0
      %4517 = vmatpush1.msra.mxu0 %v238
      %4518 = vmatprep.subr.mxu0 0.0
      %4519 = vmatpush1.msra.mxu0 %v239
      %4520 = vmatprep.subr.mxu0 0.0
      %4521 = vmatpush1.msra.mxu0 0.0
      %4522 = vmatprep.subr.mxu0 0.0
      %4523 = vmatpush1.msra.mxu0 0.0
      %4524 = vmatprep.subr.mxu0 0.0
      %4525 = vmatpush1.msra.mxu0 0.0
      %4526 = vmatprep.subr.mxu0 0.0
      %4527 = vmatpush1.msra.mxu0 0.0
      %4528 = vmatprep.subr.mxu0 0.0
      %4529 = vmatpush1.msra.mxu0 0.0
      %4530 = vmatprep.subr.mxu0 0.0
      %4531 = vmatpush1.msra.mxu0 0.0
      %4532 = vmatprep.subr.mxu0 0.0
      %4533 = vmatpush1.msra.mxu0 0.0
      %4534 = vmatprep.subr.mxu0 0.0
      %4535 = vmatpush1.msra.mxu0 0.0
      %4536 = vmatprep.subr.mxu0 0.0
      %4537 = vmatpush1.msra.mxu0 0.0
      %4538 = vmatprep.subr.mxu0 0.0
      %4539 = vmatpush1.msra.mxu0 0.0
      %4540 = vmatprep.subr.mxu0 0.0
      %4541 = vmatpush1.msra.mxu0 0.0
      %4542 = vmatprep.subr.mxu0 0.0
      %4543 = vmatpush1.msra.mxu0 0.0
      %4544 = vmatprep.subr.mxu0 0.0
      %4545 = vmatpush1.msra.mxu0 0.0
      %4546 = vmatprep.subr.mxu0 0.0
      %4547 = vmatpush1.msra.mxu0 0.0
      %4548 = vmatprep.subr.mxu0 0.0
      %4549 = vmatpush1.msra.mxu0 0.0
      %4550 = vmatprep.subr.mxu0 0.0
      %4551 = vmatpush1.msra.mxu0 0.0
      %4552 = vmatprep.subr.mxu0 0.0
      %4553 = vmatpush1.msra.mxu0 0.0
      %4554 = vmatprep.subr.mxu0 0.0
      %4555 = vmatpush1.msra.mxu0 0.0
      %4556 = vmatprep.subr.mxu0 0.0
      %4557 = vmatpush1.msra.mxu0 0.0
      %4558 = vmatprep.subr.mxu0 0.0
      %4559 = vmatpush1.msra.mxu0 0.0
      %4560 = vmatprep.subr.mxu0 0.0
      %4561 = vmatpush1.msra.mxu0 0.0
      %4562 = vmatprep.subr.mxu0 0.0
      %4563 = vmatpush1.msra.mxu0 0.0
      %4564 = vmatprep.subr.mxu0 0.0
      %4565 = vmatpush1.msra.mxu0 0.0
      %4566 = vmatprep.subr.mxu0 0.0
      %4567 = vmatpush1.msra.mxu0 0.0
      %4568 = vmatprep.subr.mxu0 0.0
      %4569 = vmatpush1.msra.mxu0 0.0
      %4570 = vmatprep.subr.mxu0 0.0
      %4571 = vmatpush1.msra.mxu0 0.0
      %4572 = vmatprep.subr.mxu0 0.0
      %4573 = vmatpush1.msra.mxu0 0.0
      %4574 = vmatprep.subr.mxu0 0.0
      %4575 = vmatpush1.msra.mxu0 0.0
      %4576 = vmatprep.subr.mxu0 0.0
      %4577 = vmatpush1.msra.mxu0 0.0
      %4578 = vmatprep.subr.mxu0 0.0
      %4579 = vmatpush1.msra.mxu0 0.0
      %4580 = vmatprep.mubr.f32.mxu0 0.0
      %4581 = vmatmul.mubr.f32.gmra.mrb[0].mxu0 %v4514
      %v4582 = vpop.f32.mrb[0].mxu0
      %v4583 = vadd.f32 %v4509, %v4582
      %v4584 = vpop.f32.mrb[0].mxu0
      %4585 = vdwg.mxu0
      %v4586 = vadd.f32 %v4583, %v477
      %v4589 = vunpack.c.l.s4 1983009808
      %v4590 = vunpack.c.0.s8 %v4589
      %v4591 = vlaneseq
      %v4592 = vshrl.u32 %v4591, 7
      %v4593 = vsub.s32 %v4590, %v4592
      %v4594 = vrot.slane %v4586, %v4593
      %4595 = vrot.lane.b32.xlu0 %v4594, 64
      %v4596 = vpop.permute.xlu0 %4595
      %4598 = vst.msk [vmem:[%s235 + $0xc] sm:$0x3] %vm802, %v4596
      %4599 = vrot.lane.b32.xlu0 %v3013, 48
      %v4600 = vpop.permute.xlu0 %4599
      %v4601 = vsel %vm329, %v4600, 0
      %4603 = vmatprep.subr.mxu0 0.0
      %4604 = vmatpush1.msra.mxu0 %v241
      %4605 = vmatprep.subr.mxu0 0.0
      %4606 = vmatpush1.msra.mxu0 %v242
      %4607 = vmatprep.subr.mxu0 0.0
      %4608 = vmatpush1.msra.mxu0 0.0
      %4609 = vmatprep.subr.mxu0 0.0
      %4610 = vmatpush1.msra.mxu0 0.0
      %4611 = vmatprep.subr.mxu0 0.0
      %4612 = vmatpush1.msra.mxu0 0.0
      %4613 = vmatprep.subr.mxu0 0.0
      %4614 = vmatpush1.msra.mxu0 0.0
      %4615 = vmatprep.subr.mxu0 0.0
      %4616 = vmatpush1.msra.mxu0 0.0
      %4617 = vmatprep.subr.mxu0 0.0
      %4618 = vmatpush1.msra.mxu0 0.0
      %4619 = vmatprep.subr.mxu0 0.0
      %4620 = vmatpush1.msra.mxu0 0.0
      %4621 = vmatprep.subr.mxu0 0.0
      %4622 = vmatpush1.msra.mxu0 0.0
      %4623 = vmatprep.subr.mxu0 0.0
      %4624 = vmatpush1.msra.mxu0 0.0
      %4625 = vmatprep.subr.mxu0 0.0
      %4626 = vmatpush1.msra.mxu0 0.0
      %4627 = vmatprep.subr.mxu0 0.0
      %4628 = vmatpush1.msra.mxu0 0.0
      %4629 = vmatprep.subr.mxu0 0.0
      %4630 = vmatpush1.msra.mxu0 0.0
      %4631 = vmatprep.subr.mxu0 0.0
      %4632 = vmatpush1.msra.mxu0 0.0
      %4633 = vmatprep.subr.mxu0 0.0
      %4634 = vmatpush1.msra.mxu0 0.0
      %4635 = vmatprep.subr.mxu0 0.0
      %4636 = vmatpush1.msra.mxu0 0.0
      %4637 = vmatprep.subr.mxu0 0.0
      %4638 = vmatpush1.msra.mxu0 0.0
      %4639 = vmatprep.subr.mxu0 0.0
      %4640 = vmatpush1.msra.mxu0 0.0
      %4641 = vmatprep.subr.mxu0 0.0
      %4642 = vmatpush1.msra.mxu0 0.0
      %4643 = vmatprep.subr.mxu0 0.0
      %4644 = vmatpush1.msra.mxu0 0.0
      %4645 = vmatprep.subr.mxu0 0.0
      %4646 = vmatpush1.msra.mxu0 0.0
      %4647 = vmatprep.subr.mxu0 0.0
      %4648 = vmatpush1.msra.mxu0 0.0
      %4649 = vmatprep.subr.mxu0 0.0
      %4650 = vmatpush1.msra.mxu0 0.0
      %4651 = vmatprep.subr.mxu0 0.0
      %4652 = vmatpush1.msra.mxu0 0.0
      %4653 = vmatprep.subr.mxu0 0.0
      %4654 = vmatpush1.msra.mxu0 0.0
      %4655 = vmatprep.subr.mxu0 0.0
      %4656 = vmatpush1.msra.mxu0 0.0
      %4657 = vmatprep.subr.mxu0 0.0
      %4658 = vmatpush1.msra.mxu0 0.0
      %4659 = vmatprep.subr.mxu0 0.0
      %4660 = vmatpush1.msra.mxu0 0.0
      %4661 = vmatprep.subr.mxu0 0.0
      %4662 = vmatpush1.msra.mxu0 0.0
      %4663 = vmatprep.subr.mxu0 0.0
      %4664 = vmatpush1.msra.mxu0 0.0
      %4665 = vmatprep.subr.mxu0 0.0
      %4666 = vmatpush1.msra.mxu0 0.0
      %4667 = vmatprep.mubr.f32.mxu0 0.0
      %4668 = vmatmul.mubr.f32.gmra.mrb[0].mxu0 %v4601
      %v4669 = vpop.f32.mrb[0].mxu0
      %v4670 = vadd.f32 0.0, %v4669
      %v4671 = vpop.f32.mrb[0].mxu0
      %4672 = vdwg.mxu0
      %4673 = vrot.lane.b32.xlu0 %v3086, 48
      %v4674 = vpop.permute.xlu0 %4673
      %v4675 = vsel %vm329, %v4674, 0
      %4677 = vmatprep.subr.mxu0 0.0
      %4678 = vmatpush1.msra.mxu0 %v238
      %4679 = vmatprep.subr.mxu0 0.0
      %4680 = vmatpush1.msra.mxu0 %v239
      %4681 = vmatprep.subr.mxu0 0.0
      %4682 = vmatpush1.msra.mxu0 0.0
      %4683 = vmatprep.subr.mxu0 0.0
      %4684 = vmatpush1.msra.mxu0 0.0
      %4685 = vmatprep.subr.mxu0 0.0
      %4686 = vmatpush1.msra.mxu0 0.0
      %4687 = vmatprep.subr.mxu0 0.0
      %4688 = vmatpush1.msra.mxu0 0.0
      %4689 = vmatprep.subr.mxu0 0.0
      %4690 = vmatpush1.msra.mxu0 0.0
      %4691 = vmatprep.subr.mxu0 0.0
      %4692 = vmatpush1.msra.mxu0 0.0
      %4693 = vmatprep.subr.mxu0 0.0
      %4694 = vmatpush1.msra.mxu0 0.0
      %4695 = vmatprep.subr.mxu0 0.0
      %4696 = vmatpush1.msra.mxu0 0.0
      %4697 = vmatprep.subr.mxu0 0.0
      %4698 = vmatpush1.msra.mxu0 0.0
      %4699 = vmatprep.subr.mxu0 0.0
      %4700 = vmatpush1.msra.mxu0 0.0
      %4701 = vmatprep.subr.mxu0 0.0
      %4702 = vmatpush1.msra.mxu0 0.0
      %4703 = vmatprep.subr.mxu0 0.0
      %4704 = vmatpush1.msra.mxu0 0.0
      %4705 = vmatprep.subr.mxu0 0.0
      %4706 = vmatpush1.msra.mxu0 0.0
      %4707 = vmatprep.subr.mxu0 0.0
      %4708 = vmatpush1.msra.mxu0 0.0
      %4709 = vmatprep.subr.mxu0 0.0
      %4710 = vmatpush1.msra.mxu0 0.0
      %4711 = vmatprep.subr.mxu0 0.0
      %4712 = vmatpush1.msra.mxu0 0.0
      %4713 = vmatprep.subr.mxu0 0.0
      %4714 = vmatpush1.msra.mxu0 0.0
      %4715 = vmatprep.subr.mxu0 0.0
      %4716 = vmatpush1.msra.mxu0 0.0
      %4717 = vmatprep.subr.mxu0 0.0
      %4718 = vmatpush1.msra.mxu0 0.0
      %4719 = vmatprep.subr.mxu0 0.0
      %4720 = vmatpush1.msra.mxu0 0.0
      %4721 = vmatprep.subr.mxu0 0.0
      %4722 = vmatpush1.msra.mxu0 0.0
      %4723 = vmatprep.subr.mxu0 0.0
      %4724 = vmatpush1.msra.mxu0 0.0
      %4725 = vmatprep.subr.mxu0 0.0
      %4726 = vmatpush1.msra.mxu0 0.0
      %4727 = vmatprep.subr.mxu0 0.0
      %4728 = vmatpush1.msra.mxu0 0.0
      %4729 = vmatprep.subr.mxu0 0.0
      %4730 = vmatpush1.msra.mxu0 0.0
      %4731 = vmatprep.subr.mxu0 0.0
      %4732 = vmatpush1.msra.mxu0 0.0
      %4733 = vmatprep.subr.mxu0 0.0
      %4734 = vmatpush1.msra.mxu0 0.0
      %4735 = vmatprep.subr.mxu0 0.0
      %4736 = vmatpush1.msra.mxu0 0.0
      %4737 = vmatprep.subr.mxu0 0.0
      %4738 = vmatpush1.msra.mxu0 0.0
      %4739 = vmatprep.subr.mxu0 0.0
      %4740 = vmatpush1.msra.mxu0 0.0
      %4741 = vmatprep.mubr.f32.mxu0 0.0
      %4742 = vmatmul.mubr.f32.gmra.mrb[0].mxu0 %v4675
      %v4743 = vpop.f32.mrb[0].mxu0
      %v4744 = vadd.f32 %v4670, %v4743
      %v4745 = vpop.f32.mrb[0].mxu0
      %4746 = vdwg.mxu0
      %v4747 = vadd.f32 %v4744, %v477
      %v4750 = vunpack.c.l.s4 1983009808
      %v4751 = vunpack.c.0.s8 %v4750
      %v4752 = vlaneseq
      %v4753 = vshrl.u32 %v4752, 7
      %v4754 = vsub.s32 %v4751, %v4753
      %v4755 = vrot.slane %v4747, %v4754
      %4756 = vrot.lane.b32.xlu0 %v4755, 96
      %v4757 = vpop.permute.xlu0 %4756
      %4759 = vst.msk [vmem:[%s235 + $0xc] sm:$0x3] %vm964, %v4757
      %4760 = vrot.lane.b32.xlu0 %v2866, 32
      %v4761 = vpop.permute.xlu0 %4760
      %v4762 = vsel %vm329, %v4761, 0
      %4764 = vmatprep.subr.mxu0 0.0
      %4765 = vmatpush1.msra.mxu0 %v241
      %4766 = vmatprep.subr.mxu0 0.0
      %4767 = vmatpush1.msra.mxu0 %v242
      %4768 = vmatprep.subr.mxu0 0.0
      %4769 = vmatpush1.msra.mxu0 0.0
      %4770 = vmatprep.subr.mxu0 0.0
      %4771 = vmatpush1.msra.mxu0 0.0
      %4772 = vmatprep.subr.mxu0 0.0
      %4773 = vmatpush1.msra.mxu0 0.0
      %4774 = vmatprep.subr.mxu0 0.0
      %4775 = vmatpush1.msra.mxu0 0.0
      %4776 = vmatprep.subr.mxu0 0.0
      %4777 = vmatpush1.msra.mxu0 0.0
      %4778 = vmatprep.subr.mxu0 0.0
      %4779 = vmatpush1.msra.mxu0 0.0
      %4780 = vmatprep.subr.mxu0 0.0
      %4781 = vmatpush1.msra.mxu0 0.0
      %4782 = vmatprep.subr.mxu0 0.0
      %4783 = vmatpush1.msra.mxu0 0.0
      %4784 = vmatprep.subr.mxu0 0.0
      %4785 = vmatpush1.msra.mxu0 0.0
      %4786 = vmatprep.subr.mxu0 0.0
      %4787 = vmatpush1.msra.mxu0 0.0
      %4788 = vmatprep.subr.mxu0 0.0
      %4789 = vmatpush1.msra.mxu0 0.0
      %4790 = vmatprep.subr.mxu0 0.0
      %4791 = vmatpush1.msra.mxu0 0.0
      %4792 = vmatprep.subr.mxu0 0.0
      %4793 = vmatpush1.msra.mxu0 0.0
      %4794 = vmatprep.subr.mxu0 0.0
      %4795 = vmatpush1.msra.mxu0 0.0
      %4796 = vmatprep.subr.mxu0 0.0
      %4797 = vmatpush1.msra.mxu0 0.0
      %4798 = vmatprep.subr.mxu0 0.0
      %4799 = vmatpush1.msra.mxu0 0.0
      %4800 = vmatprep.subr.mxu0 0.0
      %4801 = vmatpush1.msra.mxu0 0.0
      %4802 = vmatprep.subr.mxu0 0.0
      %4803 = vmatpush1.msra.mxu0 0.0
      %4804 = vmatprep.subr.mxu0 0.0
      %4805 = vmatpush1.msra.mxu0 0.0
      %4806 = vmatprep.subr.mxu0 0.0
      %4807 = vmatpush1.msra.mxu0 0.0
      %4808 = vmatprep.subr.mxu0 0.0
      %4809 = vmatpush1.msra.mxu0 0.0
      %4810 = vmatprep.subr.mxu0 0.0
      %4811 = vmatpush1.msra.mxu0 0.0
      %4812 = vmatprep.subr.mxu0 0.0
      %4813 = vmatpush1.msra.mxu0 0.0
      %4814 = vmatprep.subr.mxu0 0.0
      %4815 = vmatpush1.msra.mxu0 0.0
      %4816 = vmatprep.subr.mxu0 0.0
      %4817 = vmatpush1.msra.mxu0 0.0
      %4818 = vmatprep.subr.mxu0 0.0
      %4819 = vmatpush1.msra.mxu0 0.0
      %4820 = vmatprep.subr.mxu0 0.0
      %4821 = vmatpush1.msra.mxu0 0.0
      %4822 = vmatprep.subr.mxu0 0.0
      %4823 = vmatpush1.msra.mxu0 0.0
      %4824 = vmatprep.subr.mxu0 0.0
      %4825 = vmatpush1.msra.mxu0 0.0
      %4826 = vmatprep.subr.mxu0 0.0
      %4827 = vmatpush1.msra.mxu0 0.0
      %4828 = vmatprep.mubr.f32.mxu0 0.0
      %4829 = vmatmul.mubr.f32.gmra.mrb[0].mxu0 %v4762
      %v4830 = vpop.f32.mrb[0].mxu0
      %v4831 = vadd.f32 0.0, %v4830
      %v4832 = vpop.f32.mrb[0].mxu0
      %4833 = vdwg.mxu0
      %4834 = vrot.lane.b32.xlu0 %v325, 32
      %v4835 = vpop.permute.xlu0 %4834
      %v4836 = vsel %vm329, %v4835, 0
      %4838 = vmatprep.subr.mxu0 0.0
      %4839 = vmatpush1.msra.mxu0 %v238
      %4840 = vmatprep.subr.mxu0 0.0
      %4841 = vmatpush1.msra.mxu0 %v239
      %4842 = vmatprep.subr.mxu0 0.0
      %4843 = vmatpush1.msra.mxu0 0.0
      %4844 = vmatprep.subr.mxu0 0.0
      %4845 = vmatpush1.msra.mxu0 0.0
      %4846 = vmatprep.subr.mxu0 0.0
      %4847 = vmatpush1.msra.mxu0 0.0
      %4848 = vmatprep.subr.mxu0 0.0
      %4849 = vmatpush1.msra.mxu0 0.0
      %4850 = vmatprep.subr.mxu0 0.0
      %4851 = vmatpush1.msra.mxu0 0.0
      %4852 = vmatprep.subr.mxu0 0.0
      %4853 = vmatpush1.msra.mxu0 0.0
      %4854 = vmatprep.subr.mxu0 0.0
      %4855 = vmatpush1.msra.mxu0 0.0
      %4856 = vmatprep.subr.mxu0 0.0
      %4857 = vmatpush1.msra.mxu0 0.0
      %4858 = vmatprep.subr.mxu0 0.0
      %4859 = vmatpush1.msra.mxu0 0.0
      %4860 = vmatprep.subr.mxu0 0.0
      %4861 = vmatpush1.msra.mxu0 0.0
      %4862 = vmatprep.subr.mxu0 0.0
      %4863 = vmatpush1.msra.mxu0 0.0
      %4864 = vmatprep.subr.mxu0 0.0
      %4865 = vmatpush1.msra.mxu0 0.0
      %4866 = vmatprep.subr.mxu0 0.0
      %4867 = vmatpush1.msra.mxu0 0.0
      %4868 = vmatprep.subr.mxu0 0.0
      %4869 = vmatpush1.msra.mxu0 0.0
      %4870 = vmatprep.subr.mxu0 0.0
      %4871 = vmatpush1.msra.mxu0 0.0
      %4872 = vmatprep.subr.mxu0 0.0
      %4873 = vmatpush1.msra.mxu0 0.0
      %4874 = vmatprep.subr.mxu0 0.0
      %4875 = vmatpush1.msra.mxu0 0.0
      %4876 = vmatprep.subr.mxu0 0.0
      %4877 = vmatpush1.msra.mxu0 0.0
      %4878 = vmatprep.subr.mxu0 0.0
      %4879 = vmatpush1.msra.mxu0 0.0
      %4880 = vmatprep.subr.mxu0 0.0
      %4881 = vmatpush1.msra.mxu0 0.0
      %4882 = vmatprep.subr.mxu0 0.0
      %4883 = vmatpush1.msra.mxu0 0.0
      %4884 = vmatprep.subr.mxu0 0.0
      %4885 = vmatpush1.msra.mxu0 0.0
      %4886 = vmatprep.subr.mxu0 0.0
      %4887 = vmatpush1.msra.mxu0 0.0
      %4888 = vmatprep.subr.mxu0 0.0
      %4889 = vmatpush1.msra.mxu0 0.0
      %4890 = vmatprep.subr.mxu0 0.0
      %4891 = vmatpush1.msra.mxu0 0.0
      %4892 = vmatprep.subr.mxu0 0.0
      %4893 = vmatpush1.msra.mxu0 0.0
      %4894 = vmatprep.subr.mxu0 0.0
      %4895 = vmatpush1.msra.mxu0 0.0
      %4896 = vmatprep.subr.mxu0 0.0
      %4897 = vmatpush1.msra.mxu0 0.0
      %4898 = vmatprep.subr.mxu0 0.0
      %4899 = vmatpush1.msra.mxu0 0.0
      %4900 = vmatprep.subr.mxu0 0.0
      %4901 = vmatpush1.msra.mxu0 0.0
      %4902 = vmatprep.mubr.f32.mxu0 0.0
      %4903 = vmatmul.mubr.f32.gmra.mrb[0].mxu0 %v4836
      %v4904 = vpop.f32.mrb[0].mxu0
      %v4905 = vadd.f32 %v4831, %v4904
      %v4906 = vpop.f32.mrb[0].mxu0
      %4907 = vdwg.mxu0
      %v4908 = vadd.f32 %v4905, %v477
      %4909 = vst.msk [vmem:[%s235 + $0xe] sm:$0x3] %vm480, %v4908
      %4910 = vrot.lane.b32.xlu0 %v3013, 32
      %v4911 = vpop.permute.xlu0 %4910
      %v4912 = vsel %vm329, %v4911, 0
      %4914 = vmatprep.subr.mxu0 0.0
      %4915 = vmatpush1.msra.mxu0 %v241
      %4916 = vmatprep.subr.mxu0 0.0
      %4917 = vmatpush1.msra.mxu0 %v242
      %4918 = vmatprep.subr.mxu0 0.0
      %4919 = vmatpush1.msra.mxu0 0.0
      %4920 = vmatprep.subr.mxu0 0.0
      %4921 = vmatpush1.msra.mxu0 0.0
      %4922 = vmatprep.subr.mxu0 0.0
      %4923 = vmatpush1.msra.mxu0 0.0
      %4924 = vmatprep.subr.mxu0 0.0
      %4925 = vmatpush1.msra.mxu0 0.0
      %4926 = vmatprep.subr.mxu0 0.0
      %4927 = vmatpush1.msra.mxu0 0.0
      %4928 = vmatprep.subr.mxu0 0.0
      %4929 = vmatpush1.msra.mxu0 0.0
      %4930 = vmatprep.subr.mxu0 0.0
      %4931 = vmatpush1.msra.mxu0 0.0
      %4932 = vmatprep.subr.mxu0 0.0
      %4933 = vmatpush1.msra.mxu0 0.0
      %4934 = vmatprep.subr.mxu0 0.0
      %4935 = vmatpush1.msra.mxu0 0.0
      %4936 = vmatprep.subr.mxu0 0.0
      %4937 = vmatpush1.msra.mxu0 0.0
      %4938 = vmatprep.subr.mxu0 0.0
      %4939 = vmatpush1.msra.mxu0 0.0
      %4940 = vmatprep.subr.mxu0 0.0
      %4941 = vmatpush1.msra.mxu0 0.0
      %4942 = vmatprep.subr.mxu0 0.0
      %4943 = vmatpush1.msra.mxu0 0.0
      %4944 = vmatprep.subr.mxu0 0.0
      %4945 = vmatpush1.msra.mxu0 0.0
      %4946 = vmatprep.subr.mxu0 0.0
      %4947 = vmatpush1.msra.mxu0 0.0
      %4948 = vmatprep.subr.mxu0 0.0
      %4949 = vmatpush1.msra.mxu0 0.0
      %4950 = vmatprep.subr.mxu0 0.0
      %4951 = vmatpush1.msra.mxu0 0.0
      %4952 = vmatprep.subr.mxu0 0.0
      %4953 = vmatpush1.msra.mxu0 0.0
      %4954 = vmatprep.subr.mxu0 0.0
      %4955 = vmatpush1.msra.mxu0 0.0
      %4956 = vmatprep.subr.mxu0 0.0
      %4957 = vmatpush1.msra.mxu0 0.0
      %4958 = vmatprep.subr.mxu0 0.0
      %4959 = vmatpush1.msra.mxu0 0.0
      %4960 = vmatprep.subr.mxu0 0.0
      %4961 = vmatpush1.msra.mxu0 0.0
      %4962 = vmatprep.subr.mxu0 0.0
      %4963 = vmatpush1.msra.mxu0 0.0
      %4964 = vmatprep.subr.mxu0 0.0
      %4965 = vmatpush1.msra.mxu0 0.0
      %4966 = vmatprep.subr.mxu0 0.0
      %4967 = vmatpush1.msra.mxu0 0.0
      %4968 = vmatprep.subr.mxu0 0.0
      %4969 = vmatpush1.msra.mxu0 0.0
      %4970 = vmatprep.subr.mxu0 0.0
      %4971 = vmatpush1.msra.mxu0 0.0
      %4972 = vmatprep.subr.mxu0 0.0
      %4973 = vmatpush1.msra.mxu0 0.0
      %4974 = vmatprep.subr.mxu0 0.0
      %4975 = vmatpush1.msra.mxu0 0.0
      %4976 = vmatprep.subr.mxu0 0.0
      %4977 = vmatpush1.msra.mxu0 0.0
      %4978 = vmatprep.mubr.f32.mxu0 0.0
      %4979 = vmatmul.mubr.f32.gmra.mrb[0].mxu0 %v4912
      %v4980 = vpop.f32.mrb[0].mxu0
      %v4981 = vadd.f32 0.0, %v4980
      %v4982 = vpop.f32.mrb[0].mxu0
      %4983 = vdwg.mxu0
      %4984 = vrot.lane.b32.xlu0 %v3086, 32
      %v4985 = vpop.permute.xlu0 %4984
      %v4986 = vsel %vm329, %v4985, 0
      %4988 = vmatprep.subr.mxu0 0.0
      %4989 = vmatpush1.msra.mxu0 %v238
      %4990 = vmatprep.subr.mxu0 0.0
      %4991 = vmatpush1.msra.mxu0 %v239
      %4992 = vmatprep.subr.mxu0 0.0
      %4993 = vmatpush1.msra.mxu0 0.0
      %4994 = vmatprep.subr.mxu0 0.0
      %4995 = vmatpush1.msra.mxu0 0.0
      %4996 = vmatprep.subr.mxu0 0.0
      %4997 = vmatpush1.msra.mxu0 0.0
      %4998 = vmatprep.subr.mxu0 0.0
      %4999 = vmatpush1.msra.mxu0 0.0
      %5000 = vmatprep.subr.mxu0 0.0
      %5001 = vmatpush1.msra.mxu0 0.0
      %5002 = vmatprep.subr.mxu0 0.0
      %5003 = vmatpush1.msra.mxu0 0.0
      %5004 = vmatprep.subr.mxu0 0.0
      %5005 = vmatpush1.msra.mxu0 0.0
      %5006 = vmatprep.subr.mxu0 0.0
      %5007 = vmatpush1.msra.mxu0 0.0
      %5008 = vmatprep.subr.mxu0 0.0
      %5009 = vmatpush1.msra.mxu0 0.0
      %5010 = vmatprep.subr.mxu0 0.0
      %5011 = vmatpush1.msra.mxu0 0.0
      %5012 = vmatprep.subr.mxu0 0.0
      %5013 = vmatpush1.msra.mxu0 0.0
      %5014 = vmatprep.subr.mxu0 0.0
      %5015 = vmatpush1.msra.mxu0 0.0
      %5016 = vmatprep.subr.mxu0 0.0
      %5017 = vmatpush1.msra.mxu0 0.0
      %5018 = vmatprep.subr.mxu0 0.0
      %5019 = vmatpush1.msra.mxu0 0.0
      %5020 = vmatprep.subr.mxu0 0.0
      %5021 = vmatpush1.msra.mxu0 0.0
      %5022 = vmatprep.subr.mxu0 0.0
      %5023 = vmatpush1.msra.mxu0 0.0
      %5024 = vmatprep.subr.mxu0 0.0
      %5025 = vmatpush1.msra.mxu0 0.0
      %5026 = vmatprep.subr.mxu0 0.0
      %5027 = vmatpush1.msra.mxu0 0.0
      %5028 = vmatprep.subr.mxu0 0.0
      %5029 = vmatpush1.msra.mxu0 0.0
      %5030 = vmatprep.subr.mxu0 0.0
      %5031 = vmatpush1.msra.mxu0 0.0
      %5032 = vmatprep.subr.mxu0 0.0
      %5033 = vmatpush1.msra.mxu0 0.0
      %5034 = vmatprep.subr.mxu0 0.0
      %5035 = vmatpush1.msra.mxu0 0.0
      %5036 = vmatprep.subr.mxu0 0.0
      %5037 = vmatpush1.msra.mxu0 0.0
      %5038 = vmatprep.subr.mxu0 0.0
      %5039 = vmatpush1.msra.mxu0 0.0
      %5040 = vmatprep.subr.mxu0 0.0
      %5041 = vmatpush1.msra.mxu0 0.0
      %5042 = vmatprep.subr.mxu0 0.0
      %5043 = vmatpush1.msra.mxu0 0.0
      %5044 = vmatprep.subr.mxu0 0.0
      %5045 = vmatpush1.msra.mxu0 0.0
      %5046 = vmatprep.subr.mxu0 0.0
      %5047 = vmatpush1.msra.mxu0 0.0
      %5048 = vmatprep.subr.mxu0 0.0
      %5049 = vmatpush1.msra.mxu0 0.0
      %5050 = vmatprep.subr.mxu0 0.0
      %5051 = vmatpush1.msra.mxu0 0.0
      %5052 = vmatprep.mubr.f32.mxu0 0.0
      %5053 = vmatmul.mubr.f32.gmra.mrb[0].mxu0 %v4986
      %v5054 = vpop.f32.mrb[0].mxu0
      %v5055 = vadd.f32 %v4981, %v5054
      %v5056 = vpop.f32.mrb[0].mxu0
      %5057 = vdwg.mxu0
      %v5058 = vadd.f32 %v5055, %v477
      %v5061 = vunpack.c.l.s4 1983009808
      %v5062 = vunpack.c.0.s8 %v5061
      %v5063 = vlaneseq
      %v5064 = vshrl.u32 %v5063, 7
      %v5065 = vsub.s32 %v5062, %v5064
      %v5066 = vrot.slane %v5058, %v5065
      %5067 = vrot.lane.b32.xlu0 %v5066, 32
      %v5068 = vpop.permute.xlu0 %5067
      %5070 = vst.msk [vmem:[%s235 + $0xe] sm:$0x3] %vm640, %v5068
      %5071 = vrot.lane.b32.xlu0 %v2866, 16
      %v5072 = vpop.permute.xlu0 %5071
      %v5073 = vsel %vm329, %v5072, 0
      %5075 = vmatprep.subr.mxu0 0.0
      %5076 = vmatpush1.msra.mxu0 %v241
      %5077 = vmatprep.subr.mxu0 0.0
      %5078 = vmatpush1.msra.mxu0 %v242
      %5079 = vmatprep.subr.mxu0 0.0
      %5080 = vmatpush1.msra.mxu0 0.0
      %5081 = vmatprep.subr.mxu0 0.0
      %5082 = vmatpush1.msra.mxu0 0.0
      %5083 = vmatprep.subr.mxu0 0.0
      %5084 = vmatpush1.msra.mxu0 0.0
      %5085 = vmatprep.subr.mxu0 0.0
      %5086 = vmatpush1.msra.mxu0 0.0
      %5087 = vmatprep.subr.mxu0 0.0
      %5088 = vmatpush1.msra.mxu0 0.0
      %5089 = vmatprep.subr.mxu0 0.0
      %5090 = vmatpush1.msra.mxu0 0.0
      %5091 = vmatprep.subr.mxu0 0.0
      %5092 = vmatpush1.msra.mxu0 0.0
      %5093 = vmatprep.subr.mxu0 0.0
      %5094 = vmatpush1.msra.mxu0 0.0
      %5095 = vmatprep.subr.mxu0 0.0
      %5096 = vmatpush1.msra.mxu0 0.0
      %5097 = vmatprep.subr.mxu0 0.0
      %5098 = vmatpush1.msra.mxu0 0.0
      %5099 = vmatprep.subr.mxu0 0.0
      %5100 = vmatpush1.msra.mxu0 0.0
      %5101 = vmatprep.subr.mxu0 0.0
      %5102 = vmatpush1.msra.mxu0 0.0
      %5103 = vmatprep.subr.mxu0 0.0
      %5104 = vmatpush1.msra.mxu0 0.0
      %5105 = vmatprep.subr.mxu0 0.0
      %5106 = vmatpush1.msra.mxu0 0.0
      %5107 = vmatprep.subr.mxu0 0.0
      %5108 = vmatpush1.msra.mxu0 0.0
      %5109 = vmatprep.subr.mxu0 0.0
      %5110 = vmatpush1.msra.mxu0 0.0
      %5111 = vmatprep.subr.mxu0 0.0
      %5112 = vmatpush1.msra.mxu0 0.0
      %5113 = vmatprep.subr.mxu0 0.0
      %5114 = vmatpush1.msra.mxu0 0.0
      %5115 = vmatprep.subr.mxu0 0.0
      %5116 = vmatpush1.msra.mxu0 0.0
      %5117 = vmatprep.subr.mxu0 0.0
      %5118 = vmatpush1.msra.mxu0 0.0
      %5119 = vmatprep.subr.mxu0 0.0
      %5120 = vmatpush1.msra.mxu0 0.0
      %5121 = vmatprep.subr.mxu0 0.0
      %5122 = vmatpush1.msra.mxu0 0.0
      %5123 = vmatprep.subr.mxu0 0.0
      %5124 = vmatpush1.msra.mxu0 0.0
      %5125 = vmatprep.subr.mxu0 0.0
      %5126 = vmatpush1.msra.mxu0 0.0
      %5127 = vmatprep.subr.mxu0 0.0
      %5128 = vmatpush1.msra.mxu0 0.0
      %5129 = vmatprep.subr.mxu0 0.0
      %5130 = vmatpush1.msra.mxu0 0.0
      %5131 = vmatprep.subr.mxu0 0.0
      %5132 = vmatpush1.msra.mxu0 0.0
      %5133 = vmatprep.subr.mxu0 0.0
      %5134 = vmatpush1.msra.mxu0 0.0
      %5135 = vmatprep.subr.mxu0 0.0
      %5136 = vmatpush1.msra.mxu0 0.0
      %5137 = vmatprep.subr.mxu0 0.0
      %5138 = vmatpush1.msra.mxu0 0.0
      %5139 = vmatprep.mubr.f32.mxu0 0.0
      %5140 = vmatmul.mubr.f32.gmra.mrb[0].mxu0 %v5073
      %v5141 = vpop.f32.mrb[0].mxu0
      %v5142 = vadd.f32 0.0, %v5141
      %v5143 = vpop.f32.mrb[0].mxu0
      %5144 = vdwg.mxu0
      %5145 = vrot.lane.b32.xlu0 %v325, 16
      %v5146 = vpop.permute.xlu0 %5145
      %v5147 = vsel %vm329, %v5146, 0
      %5149 = vmatprep.subr.mxu0 0.0
      %5150 = vmatpush1.msra.mxu0 %v238
      %5151 = vmatprep.subr.mxu0 0.0
      %5152 = vmatpush1.msra.mxu0 %v239
      %5153 = vmatprep.subr.mxu0 0.0
      %5154 = vmatpush1.msra.mxu0 0.0
      %5155 = vmatprep.subr.mxu0 0.0
      %5156 = vmatpush1.msra.mxu0 0.0
      %5157 = vmatprep.subr.mxu0 0.0
      %5158 = vmatpush1.msra.mxu0 0.0
      %5159 = vmatprep.subr.mxu0 0.0
      %5160 = vmatpush1.msra.mxu0 0.0
      %5161 = vmatprep.subr.mxu0 0.0
      %5162 = vmatpush1.msra.mxu0 0.0
      %5163 = vmatprep.subr.mxu0 0.0
      %5164 = vmatpush1.msra.mxu0 0.0
      %5165 = vmatprep.subr.mxu0 0.0
      %5166 = vmatpush1.msra.mxu0 0.0
      %5167 = vmatprep.subr.mxu0 0.0
      %5168 = vmatpush1.msra.mxu0 0.0
      %5169 = vmatprep.subr.mxu0 0.0
      %5170 = vmatpush1.msra.mxu0 0.0
      %5171 = vmatprep.subr.mxu0 0.0
      %5172 = vmatpush1.msra.mxu0 0.0
      %5173 = vmatprep.subr.mxu0 0.0
      %5174 = vmatpush1.msra.mxu0 0.0
      %5175 = vmatprep.subr.mxu0 0.0
      %5176 = vmatpush1.msra.mxu0 0.0
      %5177 = vmatprep.subr.mxu0 0.0
      %5178 = vmatpush1.msra.mxu0 0.0
      %5179 = vmatprep.subr.mxu0 0.0
      %5180 = vmatpush1.msra.mxu0 0.0
      %5181 = vmatprep.subr.mxu0 0.0
      %5182 = vmatpush1.msra.mxu0 0.0
      %5183 = vmatprep.subr.mxu0 0.0
      %5184 = vmatpush1.msra.mxu0 0.0
      %5185 = vmatprep.subr.mxu0 0.0
      %5186 = vmatpush1.msra.mxu0 0.0
      %5187 = vmatprep.subr.mxu0 0.0
      %5188 = vmatpush1.msra.mxu0 0.0
      %5189 = vmatprep.subr.mxu0 0.0
      %5190 = vmatpush1.msra.mxu0 0.0
      %5191 = vmatprep.subr.mxu0 0.0
      %5192 = vmatpush1.msra.mxu0 0.0
      %5193 = vmatprep.subr.mxu0 0.0
      %5194 = vmatpush1.msra.mxu0 0.0
      %5195 = vmatprep.subr.mxu0 0.0
      %5196 = vmatpush1.msra.mxu0 0.0
      %5197 = vmatprep.subr.mxu0 0.0
      %5198 = vmatpush1.msra.mxu0 0.0
      %5199 = vmatprep.subr.mxu0 0.0
      %5200 = vmatpush1.msra.mxu0 0.0
      %5201 = vmatprep.subr.mxu0 0.0
      %5202 = vmatpush1.msra.mxu0 0.0
      %5203 = vmatprep.subr.mxu0 0.0
      %5204 = vmatpush1.msra.mxu0 0.0
      %5205 = vmatprep.subr.mxu0 0.0
      %5206 = vmatpush1.msra.mxu0 0.0
      %5207 = vmatprep.subr.mxu0 0.0
      %5208 = vmatpush1.msra.mxu0 0.0
      %5209 = vmatprep.subr.mxu0 0.0
      %5210 = vmatpush1.msra.mxu0 0.0
      %5211 = vmatprep.subr.mxu0 0.0
      %5212 = vmatpush1.msra.mxu0 0.0
      %5213 = vmatprep.mubr.f32.mxu0 0.0
      %5214 = vmatmul.mubr.f32.gmra.mrb[0].mxu0 %v5147
      %v5215 = vpop.f32.mrb[0].mxu0
      %v5216 = vadd.f32 %v5142, %v5215
      %v5217 = vpop.f32.mrb[0].mxu0
      %5218 = vdwg.mxu0
      %v5219 = vadd.f32 %v5216, %v477
      %v5222 = vunpack.c.l.s4 1983009808
      %v5223 = vunpack.c.0.s8 %v5222
      %v5224 = vlaneseq
      %v5225 = vshrl.u32 %v5224, 7
      %v5226 = vsub.s32 %v5223, %v5225
      %v5227 = vrot.slane %v5219, %v5226
      %5228 = vrot.lane.b32.xlu0 %v5227, 64
      %v5229 = vpop.permute.xlu0 %5228
      %5231 = vst.msk [vmem:[%s235 + $0xe] sm:$0x3] %vm802, %v5229
      %5232 = vrot.lane.b32.xlu0 %v3013, 16
      %v5233 = vpop.permute.xlu0 %5232
      %v5234 = vsel %vm329, %v5233, 0
      %5236 = vmatprep.subr.mxu0 0.0
      %5237 = vmatpush1.msra.mxu0 %v241
      %5238 = vmatprep.subr.mxu0 0.0
      %5239 = vmatpush1.msra.mxu0 %v242
      %5240 = vmatprep.subr.mxu0 0.0
      %5241 = vmatpush1.msra.mxu0 0.0
      %5242 = vmatprep.subr.mxu0 0.0
      %5243 = vmatpush1.msra.mxu0 0.0
      %5244 = vmatprep.subr.mxu0 0.0
      %5245 = vmatpush1.msra.mxu0 0.0
      %5246 = vmatprep.subr.mxu0 0.0
      %5247 = vmatpush1.msra.mxu0 0.0
      %5248 = vmatprep.subr.mxu0 0.0
      %5249 = vmatpush1.msra.mxu0 0.0
      %5250 = vmatprep.subr.mxu0 0.0
      %5251 = vmatpush1.msra.mxu0 0.0
      %5252 = vmatprep.subr.mxu0 0.0
      %5253 = vmatpush1.msra.mxu0 0.0
      %5254 = vmatprep.subr.mxu0 0.0
      %5255 = vmatpush1.msra.mxu0 0.0
      %5256 = vmatprep.subr.mxu0 0.0
      %5257 = vmatpush1.msra.mxu0 0.0
      %5258 = vmatprep.subr.mxu0 0.0
      %5259 = vmatpush1.msra.mxu0 0.0
      %5260 = vmatprep.subr.mxu0 0.0
      %5261 = vmatpush1.msra.mxu0 0.0
      %5262 = vmatprep.subr.mxu0 0.0
      %5263 = vmatpush1.msra.mxu0 0.0
      %5264 = vmatprep.subr.mxu0 0.0
      %5265 = vmatpush1.msra.mxu0 0.0
      %5266 = vmatprep.subr.mxu0 0.0
      %5267 = vmatpush1.msra.mxu0 0.0
      %5268 = vmatprep.subr.mxu0 0.0
      %5269 = vmatpush1.msra.mxu0 0.0
      %5270 = vmatprep.subr.mxu0 0.0
      %5271 = vmatpush1.msra.mxu0 0.0
      %5272 = vmatprep.subr.mxu0 0.0
      %5273 = vmatpush1.msra.mxu0 0.0
      %5274 = vmatprep.subr.mxu0 0.0
      %5275 = vmatpush1.msra.mxu0 0.0
      %5276 = vmatprep.subr.mxu0 0.0
      %5277 = vmatpush1.msra.mxu0 0.0
      %5278 = vmatprep.subr.mxu0 0.0
      %5279 = vmatpush1.msra.mxu0 0.0
      %5280 = vmatprep.subr.mxu0 0.0
      %5281 = vmatpush1.msra.mxu0 0.0
      %5282 = vmatprep.subr.mxu0 0.0
      %5283 = vmatpush1.msra.mxu0 0.0
      %5284 = vmatprep.subr.mxu0 0.0
      %5285 = vmatpush1.msra.mxu0 0.0
      %5286 = vmatprep.subr.mxu0 0.0
      %5287 = vmatpush1.msra.mxu0 0.0
      %5288 = vmatprep.subr.mxu0 0.0
      %5289 = vmatpush1.msra.mxu0 0.0
      %5290 = vmatprep.subr.mxu0 0.0
      %5291 = vmatpush1.msra.mxu0 0.0
      %5292 = vmatprep.subr.mxu0 0.0
      %5293 = vmatpush1.msra.mxu0 0.0
      %5294 = vmatprep.subr.mxu0 0.0
      %5295 = vmatpush1.msra.mxu0 0.0
      %5296 = vmatprep.subr.mxu0 0.0
      %5297 = vmatpush1.msra.mxu0 0.0
      %5298 = vmatprep.subr.mxu0 0.0
      %5299 = vmatpush1.msra.mxu0 0.0
      %5300 = vmatprep.mubr.f32.mxu0 0.0
      %5301 = vmatmul.mubr.f32.gmra.mrb[0].mxu0 %v5234
      %v5302 = vpop.f32.mrb[0].mxu0
      %v5303 = vadd.f32 0.0, %v5302
      %v5304 = vpop.f32.mrb[0].mxu0
      %5305 = vdwg.mxu0
      %5306 = vrot.lane.b32.xlu0 %v3086, 16
      %v5307 = vpop.permute.xlu0 %5306
      %v5308 = vsel %vm329, %v5307, 0
      %5310 = vmatprep.subr.mxu0 0.0
      %5311 = vmatpush1.msra.mxu0 %v238
      %5312 = vmatprep.subr.mxu0 0.0
      %5313 = vmatpush1.msra.mxu0 %v239
      %5314 = vmatprep.subr.mxu0 0.0
      %5315 = vmatpush1.msra.mxu0 0.0
      %5316 = vmatprep.subr.mxu0 0.0
      %5317 = vmatpush1.msra.mxu0 0.0
      %5318 = vmatprep.subr.mxu0 0.0
      %5319 = vmatpush1.msra.mxu0 0.0
      %5320 = vmatprep.subr.mxu0 0.0
      %5321 = vmatpush1.msra.mxu0 0.0
      %5322 = vmatprep.subr.mxu0 0.0
      %5323 = vmatpush1.msra.mxu0 0.0
      %5324 = vmatprep.subr.mxu0 0.0
      %5325 = vmatpush1.msra.mxu0 0.0
      %5326 = vmatprep.subr.mxu0 0.0
      %5327 = vmatpush1.msra.mxu0 0.0
      %5328 = vmatprep.subr.mxu0 0.0
      %5329 = vmatpush1.msra.mxu0 0.0
      %5330 = vmatprep.subr.mxu0 0.0
      %5331 = vmatpush1.msra.mxu0 0.0
      %5332 = vmatprep.subr.mxu0 0.0
      %5333 = vmatpush1.msra.mxu0 0.0
      %5334 = vmatprep.subr.mxu0 0.0
      %5335 = vmatpush1.msra.mxu0 0.0
      %5336 = vmatprep.subr.mxu0 0.0
      %5337 = vmatpush1.msra.mxu0 0.0
      %5338 = vmatprep.subr.mxu0 0.0
      %5339 = vmatpush1.msra.mxu0 0.0
      %5340 = vmatprep.subr.mxu0 0.0
      %5341 = vmatpush1.msra.mxu0 0.0
      %5342 = vmatprep.subr.mxu0 0.0
      %5343 = vmatpush1.msra.mxu0 0.0
      %5344 = vmatprep.subr.mxu0 0.0
      %5345 = vmatpush1.msra.mxu0 0.0
      %5346 = vmatprep.subr.mxu0 0.0
      %5347 = vmatpush1.msra.mxu0 0.0
      %5348 = vmatprep.subr.mxu0 0.0
      %5349 = vmatpush1.msra.mxu0 0.0
      %5350 = vmatprep.subr.mxu0 0.0
      %5351 = vmatpush1.msra.mxu0 0.0
      %5352 = vmatprep.subr.mxu0 0.0
      %5353 = vmatpush1.msra.mxu0 0.0
      %5354 = vmatprep.subr.mxu0 0.0
      %5355 = vmatpush1.msra.mxu0 0.0
      %5356 = vmatprep.subr.mxu0 0.0
      %5357 = vmatpush1.msra.mxu0 0.0
      %5358 = vmatprep.subr.mxu0 0.0
      %5359 = vmatpush1.msra.mxu0 0.0
      %5360 = vmatprep.subr.mxu0 0.0
      %5361 = vmatpush1.msra.mxu0 0.0
      %5362 = vmatprep.subr.mxu0 0.0
      %5363 = vmatpush1.msra.mxu0 0.0
      %5364 = vmatprep.subr.mxu0 0.0
      %5365 = vmatpush1.msra.mxu0 0.0
      %5366 = vmatprep.subr.mxu0 0.0
      %5367 = vmatpush1.msra.mxu0 0.0
      %5368 = vmatprep.subr.mxu0 0.0
      %5369 = vmatpush1.msra.mxu0 0.0
      %5370 = vmatprep.subr.mxu0 0.0
      %5371 = vmatpush1.msra.mxu0 0.0
      %5372 = vmatprep.subr.mxu0 0.0
      %5373 = vmatpush1.msra.mxu0 0.0
      %5374 = vmatprep.mubr.f32.mxu0 0.0
      %5375 = vmatmul.mubr.f32.gmra.mrb[0].mxu0 %v5308
      %v5376 = vpop.f32.mrb[0].mxu0
      %v5377 = vadd.f32 %v5303, %v5376
      %v5378 = vpop.f32.mrb[0].mxu0
      %5379 = vdwg.mxu0
      %v5380 = vadd.f32 %v5377, %v477
      %v5383 = vunpack.c.l.s4 1983009808
      %v5384 = vunpack.c.0.s8 %v5383
      %v5385 = vlaneseq
      %v5386 = vshrl.u32 %v5385, 7
      %v5387 = vsub.s32 %v5384, %v5386
      %v5388 = vrot.slane %v5380, %v5387
      %5389 = vrot.lane.b32.xlu0 %v5388, 96
      %v5390 = vpop.permute.xlu0 %5389
      %5392 = vst.msk [vmem:[%s235 + $0xe] sm:$0x3] %vm964, %v5390
      %s5393 = smul.u32 8, %s20
      %p5394 = scmp.lt.s32.totalorder %s19, 1
      %s5395 = scalar_select %p5394, %s19, 1
      %p5396 = scmp.lt.s32.totalorder %s5393, 7
      %s5397 = scalar_select %p5396, %s5393, 7
      %s5398 = smul.addr %s5395, 8
      %s5399 = sadd.s32 %s5397, %s5398
      %s5400 = smul.addr %s5399, 2
      %s5401 = scalar_lea.vmem %s4, %s5400
      // Predicated region
      $region37: #{_upsample_impl.1} parent=35 // pred_check
        %p5402 = pneg %p138
      $region38: #{_upsample_impl.1} parent=35 // pred_check_branch
        %5404 = sbr.rel (%p5402) target = $region40
      $region39: #{_upsample_impl.1} parent=35 // pred_region
        %s5405 = smul.u32 8, %s20
      $region40: #{_upsample_impl.1} parent=35 // pred_fallthru
        _
    $region36: #{_upsample_impl.1} parent=5 // pred_fallthru
      _
    %p5406 = scmp.le.s32.totalorder 2, %s10
    // Predicated region
    $region41: #{_upsample_impl.1} parent=5 // pred_check
      %p5407 = pneg %p5406
    $region42: #{_upsample_impl.1} parent=5 // pred_check_branch
      %5409 = sbr.rel (%p5407) target = $region44
    $region43: #{_upsample_impl.1} parent=5 // pred_region
      %s5410 = ssub.s32 %s10, 2
      // Predicated region
      $region45: #{_upsample_impl.1} parent=43 // pred_check
        %p5411 = pneg %p144
      $region46: #{_upsample_impl.1} parent=43 // pred_check_branch
        %5413 = sbr.rel (%p5411) target = $region48
      $region47: #{_upsample_impl.1} parent=43 // pred_region
        %s5414 = smul.u32 8, %s22
        %p5415 = scmp.lt.s32.totalorder %s21, 1
        %s5416 = scalar_select %p5415, %s21, 1
        %p5417 = scmp.lt.s32.totalorder %s5414, 7
        %s5418 = scalar_select %p5417, %s5414, 7
        %s5419 = smul.addr %s5416, 8
        %s5420 = sadd.s32 %s5418, %s5419
        %s5421 = smul.addr %s5420, 2
        %s5422 = scalar_lea.vmem %s4, %s5421
      $region48: #{_upsample_impl.1} parent=43 // pred_fallthru
        _
    $region44: #{_upsample_impl.1} parent=5 // pred_fallthru
      _
  $region6: #{_upsample_impl.1} parent=0 // loop_footer
    %s14 = sadd.s32 1, %s10
  $region7: #{_upsample_impl.1} parent=0 // loop_footer_branch
    %9 = sbr.rel target = $region3
  $region8: #{_upsample_impl.1} parent=0 // loop_exit
    _

</llo_original>
